<compile_context>
chip_gen: v5e
topology: v5e:2x2
jax: 0.10.0
libtpu: 0.0.40
codegen_flags: <defaults>
</compile_context>

<pallas_src>
import math
from functools import partial

import jax
import jax.numpy as jnp
from jax.experimental import pallas as pl
from jax.experimental.pallas import tpu as pltpu

# 48 MiB scoped VMEM: above the 16/32 MiB defaults, within every generation's
# physical budget (v7x has 64 MiB per TensorCore).
_CPARAMS = pltpu.CompilerParams(
    dimension_semantics=("parallel",),
    vmem_limit_bytes=48 * 1024 * 1024,
)


# ----------------------------- tiling helpers ------------------------------

def _row_tile(m, want=512):
    """Largest row tile <= want that divides m and is a multiple of 8, else m."""
    candidates = [t for t in range(8, min(want, m) + 1, 8) if m % t == 0]
    return max(candidates) if candidates else m


def _ff_chunk(f, want=512):
    """Chunk size for the FFN hidden dim (divides f, <= want)."""
    if f <= want:
        return f
    for c in range(want, 0, -1):
        if f % c == 0:
            return c
    return f


# ----------------------------- Pallas kernels ------------------------------

def _linear_kernel(x_ref, w_ref, b_ref, o_ref):
    # (tm, K) @ (K, N) + (1, N); bf16 MXU inputs, f32 accumulate, bf16 out.
    x = x_ref[...].astype(jnp.bfloat16)
    w = w_ref[...].astype(jnp.bfloat16)
    y = jnp.dot(x, w, preferred_element_type=jnp.float32)
    o_ref[...] = (y + b_ref[...].astype(jnp.float32)).astype(o_ref.dtype)


def pallas_linear(x2d, w, b):
    M, K = x2d.shape
    Nw = w.shape[1]
    tm = _row_tile(M)
    return pl.pallas_call(
        _linear_kernel,
        out_shape=jax.ShapeDtypeStruct((M, Nw), jnp.bfloat16),
        grid=(M // tm,),
        in_specs=[
            pl.BlockSpec((tm, K), lambda i: (i, 0)),
            pl.BlockSpec((K, Nw), lambda i: (0, 0)),
            pl.BlockSpec((1, Nw), lambda i: (0, 0)),
        ],
        out_specs=pl.BlockSpec((tm, Nw), lambda i: (i, 0)),
        compiler_params=_CPARAMS,
    )(x2d, w, b.reshape(1, -1))


def _attn_body(qa, kva, o_ref, nhead, causal):
    # qa: (Lq, E) bf16 (scale already folded into Wq); kva: (Lk, 2E) bf16.
    # Heads live in the lane dimension; static unroll over heads.
    Lq, E = qa.shape
    Lk = kva.shape[0]
    hd = E // nhead
    if causal:
        qi = jax.lax.broadcasted_iota(jnp.int32, (Lq, Lk), 0)
        ki = jax.lax.broadcasted_iota(jnp.int32, (Lq, Lk), 1)
        keep = ki <= qi
    for h in range(nhead):
        q = qa[:, h * hd:(h + 1) * hd]
        k = kva[:, h * hd:(h + 1) * hd]
        v = kva[:, E + h * hd:E + (h + 1) * hd]
        # q @ k^T via dot_general (contract last dims of both; no transpose op).
        s = jax.lax.dot_general(q, k, (((1,), (1,)), ((), ())),
                                preferred_element_type=jnp.float32)
        if causal:
            s = jnp.where(keep, s, -jnp.inf)
        m = jnp.max(s, axis=-1, keepdims=True)
        e = jnp.exp(s - m)
        p = e * pl.reciprocal(jnp.sum(e, axis=-1, keepdims=True), approx=True)
        o = jnp.dot(p.astype(jnp.bfloat16), v, preferred_element_type=jnp.float32)
        o_ref[0, :, h * hd:(h + 1) * hd] = o.astype(o_ref.dtype)


def _self_attn_kernel(qkv_ref, o_ref, *, nhead, causal):
    qkv = qkv_ref[0].astype(jnp.bfloat16)        # (L, 3E)
    E = qkv.shape[1] // 3
    _attn_body(qkv[:, :E], qkv[:, E:], o_ref, nhead, causal)


def _cross_attn_kernel(q_ref, kv_ref, o_ref, *, nhead):
    _attn_body(q_ref[0].astype(jnp.bfloat16), kv_ref[0].astype(jnp.bfloat16),
               o_ref, nhead, False)


def pallas_self_attention(qkv3, nhead, causal):
    N, L, E3 = qkv3.shape
    E = E3 // 3
    return pl.pallas_call(
        partial(_self_attn_kernel, nhead=nhead, causal=causal),
        out_shape=jax.ShapeDtypeStruct((N, L, E), jnp.bfloat16),
        grid=(N,),
        in_specs=[pl.BlockSpec((1, L, E3), lambda n: (n, 0, 0))],
        out_specs=pl.BlockSpec((1, L, E), lambda n: (n, 0, 0)),
        compiler_params=_CPARAMS,
    )(qkv3)


def pallas_cross_attention(q3, kv3, nhead):
    N, Lq, E = q3.shape
    Lk = kv3.shape[1]
    return pl.pallas_call(
        partial(_cross_attn_kernel, nhead=nhead),
        out_shape=jax.ShapeDtypeStruct((N, Lq, E), jnp.bfloat16),
        grid=(N,),
        in_specs=[
            pl.BlockSpec((1, Lq, E), lambda n: (n, 0, 0)),
            pl.BlockSpec((1, Lk, 2 * E), lambda n: (n, 0, 0)),
        ],
        out_specs=pl.BlockSpec((1, Lq, E), lambda n: (n, 0, 0)),
        compiler_params=_CPARAMS,
    )(q3, kv3)


def _proj_res_ln_kernel(a_ref, w_ref, b_ref, r_ref, g_ref, bt_ref, o_ref):
    # LayerNorm(residual + a @ w + b); eps = 1e-5 (PyTorch default).
    a = a_ref[...].astype(jnp.bfloat16)
    w = w_ref[...].astype(jnp.bfloat16)
    y = jnp.dot(a, w, preferred_element_type=jnp.float32) + b_ref[...].astype(jnp.float32)
    x = r_ref[...].astype(jnp.float32) + y
    mu = jnp.mean(x, axis=-1, keepdims=True)
    var = jnp.mean(jnp.square(x - mu), axis=-1, keepdims=True)
    xn = (x - mu) * jax.lax.rsqrt(var + 1e-5)
    o_ref[...] = (xn * g_ref[...] + bt_ref[...]).astype(o_ref.dtype)


def pallas_proj_residual_ln(a2d, w, b, res2d, gamma, beta):
    M, K = a2d.shape
    E = w.shape[1]
    tm = _row_tile(M)
    return pl.pallas_call(
        _proj_res_ln_kernel,
        out_shape=jax.ShapeDtypeStruct((M, E), jnp.bfloat16),
        grid=(M // tm,),
        in_specs=[
            pl.BlockSpec((tm, K), lambda i: (i, 0)),
            pl.BlockSpec((K, E), lambda i: (0, 0)),
            pl.BlockSpec((1, E), lambda i: (0, 0)),
            pl.BlockSpec((tm, E), lambda i: (i, 0)),
            pl.BlockSpec((1, E), lambda i: (0, 0)),
            pl.BlockSpec((1, E), lambda i: (0, 0)),
        ],
        out_specs=pl.BlockSpec((tm, E), lambda i: (i, 0)),
        compiler_params=_CPARAMS,
    )(a2d, w, b.reshape(1, -1), res2d, gamma.reshape(1, -1), beta.reshape(1, -1))


def _ffn_res_ln_kernel(x_ref, w1_ref, b1_ref, w2_ref, b2_ref, g_ref, bt_ref,
                       o_ref, *, chunk):
    # LayerNorm(x + linear2(relu(linear1(x)))) with the hidden dim chunked so
    # the (tm, F) f32 intermediate never materializes whole.
    x = x_ref[...]
    xb = x.astype(jnp.bfloat16)
    xf = x.astype(jnp.float32)
    F = w1_ref.shape[1]
    E = w2_ref.shape[1]
    tm = x.shape[0]
    y = jnp.zeros((tm, E), jnp.float32)
    for f0 in range(0, F, chunk):
        w1c = w1_ref[:, f0:f0 + chunk].astype(jnp.bfloat16)
        b1c = b1_ref[:, f0:f0 + chunk].astype(jnp.float32)
        h = jnp.maximum(jnp.dot(xb, w1c, preferred_element_type=jnp.float32) + b1c, 0.0)
        w2c = w2_ref[f0:f0 + chunk, :].astype(jnp.bfloat16)
        y = y + jnp.dot(h.astype(jnp.bfloat16), w2c, preferred_element_type=jnp.float32)
    z = xf + y + b2_ref[...].astype(jnp.float32)
    mu = jnp.mean(z, axis=-1, keepdims=True)
    var = jnp.mean(jnp.square(z - mu), axis=-1, keepdims=True)
    zn = (z - mu) * jax.lax.rsqrt(var + 1e-5)
    o_ref[...] = (zn * g_ref[...] + bt_ref[...]).astype(o_ref.dtype)


def pallas_ffn_residual_ln(x2d, w1, b1, w2, b2, gamma, beta):
    M, E = x2d.shape
    F = w1.shape[1]
    tm = _row_tile(M, want=256)          # keep the FFN tile modest (v7x VMEM)
    chunk = _ff_chunk(F)
    return pl.pallas_call(
        partial(_ffn_res_ln_kernel, chunk=chunk),
        out_shape=jax.ShapeDtypeStruct((M, E), jnp.bfloat16),
        grid=(M // tm,),
        in_specs=[
            pl.BlockSpec((tm, E), lambda i: (i, 0)),
            pl.BlockSpec((E, F), lambda i: (0, 0)),
            pl.BlockSpec((1, F), lambda i: (0, 0)),
            pl.BlockSpec((F, E), lambda i: (0, 0)),
            pl.BlockSpec((1, E), lambda i: (0, 0)),
            pl.BlockSpec((1, E), lambda i: (0, 0)),
            pl.BlockSpec((1, E), lambda i: (0, 0)),
        ],
        out_specs=pl.BlockSpec((tm, E), lambda i: (i, 0)),
        compiler_params=_CPARAMS,
    )(x2d, w1, b1.reshape(1, -1), w2, b2.reshape(1, -1),
      gamma.reshape(1, -1), beta.reshape(1, -1))


def _ln_kernel(x_ref, g_ref, b_ref, o_ref):
    x = x_ref[...].astype(jnp.float32)
    mu = jnp.mean(x, axis=-1, keepdims=True)
    var = jnp.mean(jnp.square(x - mu), axis=-1, keepdims=True)
    xn = (x - mu) * jax.lax.rsqrt(var + 1e-5)
    o_ref[...] = (xn * g_ref[...] + b_ref[...]).astype(o_ref.dtype)


def pallas_layernorm(x2d, gamma, beta):
    M, E = x2d.shape
    tm = _row_tile(M, want=1024)
    return pl.pallas_call(
        _ln_kernel,
        out_shape=jax.ShapeDtypeStruct((M, E), jnp.bfloat16),
        grid=(M // tm,),
        in_specs=[
            pl.BlockSpec((tm, E), lambda i: (i, 0)),
            pl.BlockSpec((1, E), lambda i: (0, 0)),
            pl.BlockSpec((1, E), lambda i: (0, 0)),
        ],
        out_specs=pl.BlockSpec((tm, E), lambda i: (i, 0)),
        compiler_params=_CPARAMS,
    )(x2d, gamma.reshape(1, -1), beta.reshape(1, -1))


def _proj_softmax_kernel(x_ref, w_ref, b_ref, o_ref):
    logits = jnp.dot(x_ref[...].astype(jnp.bfloat16), w_ref[...].astype(jnp.bfloat16),
                     preferred_element_type=jnp.float32) + b_ref[...].astype(jnp.float32)
    m = jnp.max(logits, axis=-1, keepdims=True)
    e = jnp.exp(logits - m)
    # Exact division (not approx) so probabilities sum to 1 at f32 accuracy.
    o_ref[...] = (e / jnp.sum(e, axis=-1, keepdims=True)).astype(o_ref.dtype)


def pallas_proj_softmax(x2d, w, b):
    M, E = x2d.shape
    V = w.shape[1]
    tm = _row_tile(M)
    return pl.pallas_call(
        _proj_softmax_kernel,
        out_shape=jax.ShapeDtypeStruct((M, V), jnp.float32),
        grid=(M // tm,),
        in_specs=[
            pl.BlockSpec((tm, E), lambda i: (i, 0)),
            pl.BlockSpec((E, V), lambda i: (0, 0)),
            pl.BlockSpec((1, V), lambda i: (0, 0)),
        ],
        out_specs=pl.BlockSpec((tm, V), lambda i: (i, 0)),
        compiler_params=_CPARAMS,
    )(x2d, w, b.reshape(1, -1))


# --------------------------- model building blocks --------------------------

def mha_self(x3, p, nhead, causal):
    """Self-attention core: fused QKV GEMM + attention; returns (N*L, E)."""
    N, L, E = x3.shape
    qkv = pallas_linear(x3.reshape(N * L, E), p['w_in'], p['b_in'])     # (N*L, 3E)
    out = pallas_self_attention(qkv.reshape(N, L, 3 * E), nhead, causal)
    return out.reshape(N * L, E)


def mha_cross(xq3, mem3, p, nhead):
    """Cross-attention core: Q GEMM + fused K|V GEMM + attention; (N*Lq, E)."""
    N, Lq, E = xq3.shape
    Lk = mem3.shape[1]
    q = pallas_linear(xq3.reshape(N * Lq, E), p['w_q'], p['b_q'])
    kv = pallas_linear(mem3.reshape(N * Lk, E), p['w_kv'], p['b_kv'])
    out = pallas_cross_attention(q.reshape(N, Lq, E), kv.reshape(N, Lk, 2 * E), nhead)
    return out.reshape(N * Lq, E)


def encoder_layer(src3, p, nhead):
    N, L, E = src3.shape
    src2d = src3.reshape(N * L, E)
    attn = mha_self(src3, p['self_attn'], nhead, causal=False)
    x = pallas_proj_residual_ln(attn, p['self_attn']['w_out'], p['self_attn']['b_out'],
                                src2d, p['norm1']['g'], p['norm1']['b'])
    x = pallas_ffn_residual_ln(x, p['linear1']['w'], p['linear1']['b'],
                               p['linear2']['w'], p['linear2']['b'],
                               p['norm2']['g'], p['norm2']['b'])
    return x.reshape(N, L, E)


def decoder_layer(tgt3, memory3, p, nhead):
    N, T, E = tgt3.shape
    tgt2d = tgt3.reshape(N * T, E)
    # masked self-attention (causal mask generated inside the attention kernel)
    attn = mha_self(tgt3, p['self_attn'], nhead, causal=True)
    x = pallas_proj_residual_ln(attn, p['self_attn']['w_out'], p['self_attn']['b_out'],
                                tgt2d, p['norm1']['g'], p['norm1']['b'])
    # cross attention over encoder memory
    attn = mha_cross(x.reshape(N, T, E), memory3, p['cross_attn'], nhead)
    x = pallas_proj_residual_ln(attn, p['cross_attn']['w_out'], p['cross_attn']['b_out'],
                                x, p['norm2']['g'], p['norm2']['b'])
    # FFN + residual + norm3
    x = pallas_ffn_residual_ln(x, p['linear1']['w'], p['linear1']['b'],
                               p['linear2']['w'], p['linear2']['b'],
                               p['norm3']['g'], p['norm3']['b'])
    return x.reshape(N, T, E)


def positional_encoding(max_len, d_model):
    pos = jnp.arange(max_len, dtype=jnp.float32)[:, None]
    div = jnp.exp(jnp.arange(0, d_model, 2, dtype=jnp.float32)
                  * (-math.log(10000.0) / d_model))
    pe = jnp.zeros((max_len, d_model), jnp.float32)
    pe = pe.at[:, 0::2].set(jnp.sin(pos * div))
    pe = pe.at[:, 1::2].set(jnp.cos(pos * div))
    return pe                                   # (max_len, d_model)


def aiayn_forward(params, src_ids, tgt_ids, nhead):
    S, N = src_ids.shape
    T, _ = tgt_ids.shape
    E = params['embedding'].shape[1]
    pe = params['pe']

    # Batch-major internal layout (N, L, E): contiguous rows per sequence so
    # every Pallas kernel sees lane-dense (…, E) blocks with no XLA transposes.
    # NOTE: the reference module does NOT scale embeddings by sqrt(d_model).
    src = (params['embedding'][src_ids.T] + pe[:S][None]).astype(jnp.bfloat16)
    tgt = (params['embedding'][tgt_ids.T] + pe[:T][None]).astype(jnp.bfloat16)
    # dropout1 / dropout2: identity (eval mode)

    # ---- encoder ----
    memory = src
    for lp in params['enc_layers']:
        memory = encoder_layer(memory, lp, nhead)
    memory = pallas_layernorm(memory.reshape(N * S, E),
                              params['enc_norm']['g'],
                              params['enc_norm']['b']).reshape(N, S, E)

    # ---- decoder ----
    out = tgt
    for lp in params['dec_layers']:
        out = decoder_layer(out, memory, lp, nhead)
    out = pallas_layernorm(out.reshape(N * T, E),
                           params['dec_norm']['g'], params['dec_norm']['b'])

    # ---- fused final projection + softmax over vocab (dim=2) ----
    probs = pallas_proj_softmax(out, params['linear']['w'], params['linear']['b'])
    # back to the PyTorch (T, N, V) output layout
    return jnp.transpose(probs.reshape(N, T, -1), (1, 0, 2))


# ------------------------------ parameter init ------------------------------

def init_linear(key, d_in, d_out):
    kw, kb = jax.random.split(key)
    bound = 1.0 / math.sqrt(d_in)
    w = jax.random.uniform(kw, (d_in, d_out), jnp.float32, -bound, bound)
    b = jax.random.uniform(kb, (d_out,), jnp.float32, -bound, bound)
    return {'w': w.astype(jnp.bfloat16), 'b': b}   # bf16 weights for the MXU


def init_mha(key, d_model, nhead, cross=False):
    k1, k2 = jax.random.split(key)
    bound = math.sqrt(6.0 / (4 * d_model))         # xavier_uniform for in_proj
    w_in = jax.random.uniform(k1, (d_model, 3 * d_model), jnp.float32, -bound, bound)
    b_in = jnp.zeros((3 * d_model,), jnp.float32)
    # Fold the 1/sqrt(head_dim) attention scale into the Q projection.
    scale = 1.0 / math.sqrt(d_model // nhead)
    w_in = w_in.at[:, :d_model].multiply(scale)
    b_in = b_in.at[:d_model].multiply(scale)
    out = init_linear(k2, d_model, d_model)
    p = {'w_out': out['w'], 'b_out': out['b']}
    if cross:
        # Pre-split Q / K|V in-proj weights (no per-call slab slicing).
        p['w_q'] = w_in[:, :d_model].astype(jnp.bfloat16)
        p['b_q'] = b_in[:d_model]
        p['w_kv'] = w_in[:, d_model:].astype(jnp.bfloat16)
        p['b_kv'] = b_in[d_model:]
    else:
        p['w_in'] = w_in.astype(jnp.bfloat16)
        p['b_in'] = b_in
    return p


def init_norm(d_model):
    return {'g': jnp.ones((d_model,), jnp.float32),
            'b': jnp.zeros((d_model,), jnp.float32)}


def init_params(key, vocab_size, d_model, nhead, n_layers, d_ff, max_len=5000):
    keys = iter(jax.random.split(key, 256))
    nk = lambda: next(keys)
    params = {
        'embedding': jax.random.normal(nk(), (vocab_size, d_model), jnp.float32),
        'pe': positional_encoding(max_len, d_model),
    }
    params['enc_layers'] = [{
        'self_attn': init_mha(nk(), d_model, nhead),
        'linear1': init_linear(nk(), d_model, d_ff),
        'linear2': init_linear(nk(), d_ff, d_model),
        'norm1': init_norm(d_model), 'norm2': init_norm(d_model),
    } for _ in range(n_layers)]
    params['enc_norm'] = init_norm(d_model)
    params['dec_layers'] = [{
        'self_attn': init_mha(nk(), d_model, nhead),
        'cross_attn': init_mha(nk(), d_model, nhead, cross=True),
        'linear1': init_linear(nk(), d_model, d_ff),
        'linear2': init_linear(nk(), d_ff, d_model),
        'norm1': init_norm(d_model), 'norm2': init_norm(d_model),
        'norm3': init_norm(d_model),
    } for _ in range(n_layers)]
    params['dec_norm'] = init_norm(d_model)
    params['linear'] = init_linear(nk(), d_model, vocab_size)
    return params


# ----------------------------------- main -----------------------------------

if __name__ == "__main__":
    vocab_size, d_model, n_heads, n_duplicates, d_ff, p_dropout = 32, 32, 4, 2, 64, 0.1
    S, T, N = 10, 8, 2   # src seq len, tgt seq len, batch

    params = init_params(jax.random.PRNGKey(0), vocab_size, d_model, n_heads,
                         n_duplicates, d_ff)

    k_src, k_tgt = jax.random.split(jax.random.PRNGKey(0))
    src_ids = jax.random.randint(k_src, (S, N), 0, vocab_size, dtype=jnp.int32)
    tgt_ids = jax.random.randint(k_tgt, (T, N), 0, vocab_size, dtype=jnp.int32)

    fwd = jax.jit(aiayn_forward, static_argnums=3)
    out = jax.block_until_ready(fwd(params, src_ids, tgt_ids, n_heads))

    assert out.shape == (T, N, vocab_size), out.shape
    assert bool(jnp.all(jnp.isfinite(out)))
    assert bool(jnp.allclose(jnp.sum(out, axis=-1), 1.0, atol=1e-4))
    print("KERNEL_OK")
</pallas_src>

<mosaic_0001>
module attributes {stable_mosaic.version = 11 : i64} {
  func.func @_proj_res_ln_kernel(%arg0: i32, %arg1: memref<20x32xbf16, #tpu.memory_space<vmem>>, %arg2: memref<32x32xbf16, #tpu.memory_space<vmem>>, %arg3: memref<1x32xf32, #tpu.memory_space<vmem>>, %arg4: memref<20x32xbf16, #tpu.memory_space<vmem>>, %arg5: memref<1x32xf32, #tpu.memory_space<vmem>>, %arg6: memref<1x32xf32, #tpu.memory_space<vmem>>, %arg7: memref<20x32xbf16, #tpu.memory_space<vmem>>) attributes {dimension_semantics = [#tpu.dimension_semantics<parallel>], iteration_bounds = array<i64: 1>, scalar_prefetch = 0 : i64, scratch_operands = 0 : i64, tpu.core_type = #tpu.core_type<tc>, window_params = [{transform_indices = @transform_0, window_bounds = array<i64: 20, 32>}, {pipeline_mode = #tpu.pipeline_mode<synchronous>, transform_indices = @transform_1, window_bounds = array<i64: 32, 32>}, {pipeline_mode = #tpu.pipeline_mode<synchronous>, transform_indices = @transform_2, window_bounds = array<i64: 1, 32>}, {transform_indices = @transform_3, window_bounds = array<i64: 20, 32>}, {pipeline_mode = #tpu.pipeline_mode<synchronous>, transform_indices = @transform_4, window_bounds = array<i64: 1, 32>}, {pipeline_mode = #tpu.pipeline_mode<synchronous>, transform_indices = @transform_5, window_bounds = array<i64: 1, 32>}, {transform_indices = @transform_6, window_bounds = array<i64: 20, 32>}]} {
    %c0 = arith.constant 0 : index
    %c0_0 = arith.constant 0 : index
    %0 = vector.load %arg1[%c0, %c0_0] : memref<20x32xbf16, #tpu.memory_space<vmem>>, vector<20x32xbf16>
    %c0_1 = arith.constant 0 : index
    %c0_2 = arith.constant 0 : index
    %1 = vector.load %arg2[%c0_1, %c0_2] : memref<32x32xbf16, #tpu.memory_space<vmem>>, vector<32x32xbf16>
    %cst = arith.constant dense<0.000000e+00> : vector<20x32xf32>
    %2 = tpu.matmul %0, %1, %cst {dimension_numbers = #tpu.dot_dimension_numbers<[1], [0], [0], [1], [0, 0, 1, 1], [], []>} : vector<20x32xbf16>, vector<32x32xbf16>, vector<20x32xf32> -> vector<20x32xf32>
    %c0_3 = arith.constant 0 : index
    %c0_4 = arith.constant 0 : index
    %3 = vector.load %arg3[%c0_3, %c0_4] : memref<1x32xf32, #tpu.memory_space<vmem>>, vector<1x32xf32>
    %4 = vector.broadcast %3 : vector<1x32xf32> to vector<20x32xf32>
    %5 = arith.addf %2, %4 : vector<20x32xf32>
    %c0_5 = arith.constant 0 : index
    %c0_6 = arith.constant 0 : index
    %6 = vector.load %arg4[%c0_5, %c0_6] : memref<20x32xbf16, #tpu.memory_space<vmem>>, vector<20x32xbf16>
    %7 = arith.extf %6 : vector<20x32xbf16> to vector<20x32xf32>
    %8 = arith.addf %7, %5 : vector<20x32xf32>
    %cst_7 = arith.constant dense<0.000000e+00> : vector<20xf32>
    %9 = vector.multi_reduction <add>, %8, %cst_7 [1] : vector<20x32xf32> to vector<20xf32>
    %10 = vector.shape_cast %9 : vector<20xf32> to vector<20x1xf32>
    %cst_8 = arith.constant 3.200000e+01 : f32
    %11 = vector.broadcast %cst_8 : f32 to vector<20x1xf32>
    %12 = arith.divf %10, %11 : vector<20x1xf32>
    %13 = vector.broadcast %12 : vector<20x1xf32> to vector<20x32xf32>
    %14 = arith.subf %8, %13 : vector<20x32xf32>
    %15 = arith.mulf %14, %14 : vector<20x32xf32>
    %cst_9 = arith.constant dense<0.000000e+00> : vector<20xf32>
    %16 = vector.multi_reduction <add>, %15, %cst_9 [1] : vector<20x32xf32> to vector<20xf32>
    %17 = vector.shape_cast %16 : vector<20xf32> to vector<20x1xf32>
    %cst_10 = arith.constant 3.200000e+01 : f32
    %18 = vector.broadcast %cst_10 : f32 to vector<20x1xf32>
    %19 = arith.divf %17, %18 : vector<20x1xf32>
    %20 = vector.broadcast %12 : vector<20x1xf32> to vector<20x32xf32>
    %21 = arith.subf %8, %20 : vector<20x32xf32>
    %cst_11 = arith.constant 9.99999974E-6 : f32
    %22 = vector.broadcast %cst_11 : f32 to vector<20x1xf32>
    %23 = arith.addf %19, %22 : vector<20x1xf32>
    %24 = math.rsqrt %23 : vector<20x1xf32>
    %25 = vector.broadcast %24 : vector<20x1xf32> to vector<20x32xf32>
    %26 = arith.mulf %21, %25 : vector<20x32xf32>
    %c0_12 = arith.constant 0 : index
    %c0_13 = arith.constant 0 : index
    %27 = vector.load %arg5[%c0_12, %c0_13] : memref<1x32xf32, #tpu.memory_space<vmem>>, vector<1x32xf32>
    %28 = vector.broadcast %27 : vector<1x32xf32> to vector<20x32xf32>
    %29 = arith.mulf %26, %28 : vector<20x32xf32>
    %c0_14 = arith.constant 0 : index
    %c0_15 = arith.constant 0 : index
    %30 = vector.load %arg6[%c0_14, %c0_15] : memref<1x32xf32, #tpu.memory_space<vmem>>, vector<1x32xf32>
    %31 = vector.broadcast %30 : vector<1x32xf32> to vector<20x32xf32>
    %32 = arith.addf %29, %31 : vector<20x32xf32>
    %33 = arith.truncf %32 : vector<20x32xf32> to vector<20x32xbf16>
    %c0_16 = arith.constant 0 : index
    %c0_17 = arith.constant 0 : index
    %34 = vector.load %arg7[%c0_16, %c0_17] : memref<20x32xbf16, #tpu.memory_space<vmem>>, vector<20x32xbf16>
    tpu.vector_store %arg7[%c0_16, %c0_17], %33 {strides = array<i32>} : memref<20x32xbf16, #tpu.memory_space<vmem>>, vector<20x32xbf16>,
    return
  }
  func.func @transform_0(%arg0: i32) -> (i32, i32) {
    %c0_i32 = arith.constant 0 : i32
    %c0_i32_0 = arith.constant 0 : i32
    return %arg0, %c0_i32 : i32, i32
  }
  func.func @transform_1(%arg0: i32) -> (i32, i32) {
    %c0_i32 = arith.constant 0 : i32
    %c0_i32_0 = arith.constant 0 : i32
    %c0_i32_1 = arith.constant 0 : i32
    return %c0_i32, %c0_i32_0 : i32, i32
  }
  func.func @transform_2(%arg0: i32) -> (i32, i32) {
    %c0_i32 = arith.constant 0 : i32
    %c0_i32_0 = arith.constant 0 : i32
    %c0_i32_1 = arith.constant 0 : i32
    return %c0_i32, %c0_i32_0 : i32, i32
  }
  func.func @transform_3(%arg0: i32) -> (i32, i32) {
    %c0_i32 = arith.constant 0 : i32
    %c0_i32_0 = arith.constant 0 : i32
    return %arg0, %c0_i32 : i32, i32
  }
  func.func @transform_4(%arg0: i32) -> (i32, i32) {
    %c0_i32 = arith.constant 0 : i32
    %c0_i32_0 = arith.constant 0 : i32
    %c0_i32_1 = arith.constant 0 : i32
    return %c0_i32, %c0_i32_0 : i32, i32
  }
  func.func @transform_5(%arg0: i32) -> (i32, i32) {
    %c0_i32 = arith.constant 0 : i32
    %c0_i32_0 = arith.constant 0 : i32
    %c0_i32_1 = arith.constant 0 : i32
    return %c0_i32, %c0_i32_0 : i32, i32
  }
  func.func @transform_6(%arg0: i32) -> (i32, i32) {
    %c0_i32 = arith.constant 0 : i32
    %c0_i32_0 = arith.constant 0 : i32
    return %arg0, %c0_i32 : i32, i32
  }
}

module attributes {stable_mosaic.version = 11 : i64} {
  func.func @_linear_kernel(%arg0: i32, %arg1: memref<20x32xbf16, #tpu.memory_space<vmem>>, %arg2: memref<32x96xbf16, #tpu.memory_space<vmem>>, %arg3: memref<1x96xf32, #tpu.memory_space<vmem>>, %arg4: memref<20x96xbf16, #tpu.memory_space<vmem>>) attributes {dimension_semantics = [#tpu.dimension_semantics<parallel>], iteration_bounds = array<i64: 1>, scalar_prefetch = 0 : i64, scratch_operands = 0 : i64, tpu.core_type = #tpu.core_type<tc>, window_params = [{transform_indices = @transform_0, window_bounds = array<i64: 20, 32>}, {pipeline_mode = #tpu.pipeline_mode<synchronous>, transform_indices = @transform_1, window_bounds = array<i64: 32, 96>}, {pipeline_mode = #tpu.pipeline_mode<synchronous>, transform_indices = @transform_2, window_bounds = array<i64: 1, 96>}, {transform_indices = @transform_3, window_bounds = array<i64: 20, 96>}]} {
    %c0 = arith.constant 0 : index
    %c0_0 = arith.constant 0 : index
    %0 = vector.load %arg1[%c0, %c0_0] : memref<20x32xbf16, #tpu.memory_space<vmem>>, vector<20x32xbf16>
    %c0_1 = arith.constant 0 : index
    %c0_2 = arith.constant 0 : index
    %1 = vector.load %arg2[%c0_1, %c0_2] : memref<32x96xbf16, #tpu.memory_space<vmem>>, vector<32x96xbf16>
    %cst = arith.constant dense<0.000000e+00> : vector<20x96xf32>
    %2 = tpu.matmul %0, %1, %cst {dimension_numbers = #tpu.dot_dimension_numbers<[1], [0], [0], [1], [0, 0, 1, 1], [], []>} : vector<20x32xbf16>, vector<32x96xbf16>, vector<20x96xf32> -> vector<20x96xf32>
    %c0_3 = arith.constant 0 : index
    %c0_4 = arith.constant 0 : index
    %3 = vector.load %arg3[%c0_3, %c0_4] : memref<1x96xf32, #tpu.memory_space<vmem>>, vector<1x96xf32>
    %4 = vector.broadcast %3 : vector<1x96xf32> to vector<20x96xf32>
    %5 = arith.addf %2, %4 : vector<20x96xf32>
    %6 = arith.truncf %5 : vector<20x96xf32> to vector<20x96xbf16>
    %c0_5 = arith.constant 0 : index
    %c0_6 = arith.constant 0 : index
    %7 = vector.load %arg4[%c0_5, %c0_6] : memref<20x96xbf16, #tpu.memory_space<vmem>>, vector<20x96xbf16>
    tpu.vector_store %arg4[%c0_5, %c0_6], %6 {strides = array<i32>} : memref<20x96xbf16, #tpu.memory_space<vmem>>, vector<20x96xbf16>,
    return
  }
  func.func @transform_0(%arg0: i32) -> (i32, i32) {
    %c0_i32 = arith.constant 0 : i32
    %c0_i32_0 = arith.constant 0 : i32
    return %arg0, %c0_i32 : i32, i32
  }
  func.func @transform_1(%arg0: i32) -> (i32, i32) {
    %c0_i32 = arith.constant 0 : i32
    %c0_i32_0 = arith.constant 0 : i32
    %c0_i32_1 = arith.constant 0 : i32
    return %c0_i32, %c0_i32_0 : i32, i32
  }
  func.func @transform_2(%arg0: i32) -> (i32, i32) {
    %c0_i32 = arith.constant 0 : i32
    %c0_i32_0 = arith.constant 0 : i32
    %c0_i32_1 = arith.constant 0 : i32
    return %c0_i32, %c0_i32_0 : i32, i32
  }
  func.func @transform_3(%arg0: i32) -> (i32, i32) {
    %c0_i32 = arith.constant 0 : i32
    %c0_i32_0 = arith.constant 0 : i32
    return %arg0, %c0_i32 : i32, i32
  }
}

module attributes {stable_mosaic.version = 11 : i64} {
  func.func @_self_attn_kernel(%arg0: i32, %arg1: memref<1x10x96xbf16, #tpu.memory_space<vmem>>, %arg2: memref<1x10x32xbf16, #tpu.memory_space<vmem>>) attributes {dimension_semantics = [#tpu.dimension_semantics<parallel>], iteration_bounds = array<i64: 2>, scalar_prefetch = 0 : i64, scratch_operands = 0 : i64, tpu.core_type = #tpu.core_type<tc>, window_params = [{transform_indices = @transform_0, window_bounds = array<i64: 1, 10, 96>}, {transform_indices = @transform_1, window_bounds = array<i64: 1, 10, 32>}]} {
    %c0 = arith.constant 0 : index
    %c0_0 = arith.constant 0 : index
    %c0_1 = arith.constant 0 : index
    %0 = vector.load %arg1[%c0, %c0_0, %c0_1] : memref<1x10x96xbf16, #tpu.memory_space<vmem>>, vector<1x10x96xbf16>
    %1 = vector.shape_cast %0 : vector<1x10x96xbf16> to vector<10x96xbf16>
    %2 = vector.extract_strided_slice %1 {offsets = [0, 0], sizes = [10, 32], strides = [1, 1]} : vector<10x96xbf16> to vector<10x32xbf16>
    %3 = vector.extract_strided_slice %1 {offsets = [0, 32], sizes = [10, 64], strides = [1, 1]} : vector<10x96xbf16> to vector<10x64xbf16>
    %4 = vector.extract_strided_slice %2 {offsets = [0, 0], sizes = [10, 8], strides = [1, 1]} : vector<10x32xbf16> to vector<10x8xbf16>
    %5 = vector.extract_strided_slice %3 {offsets = [0, 0], sizes = [10, 8], strides = [1, 1]} : vector<10x64xbf16> to vector<10x8xbf16>
    %6 = vector.extract_strided_slice %3 {offsets = [0, 32], sizes = [10, 8], strides = [1, 1]} : vector<10x64xbf16> to vector<10x8xbf16>
    %cst = arith.constant dense<0.000000e+00> : vector<10x10xf32>
    %7 = tpu.matmul %4, %5, %cst {dimension_numbers = #tpu.dot_dimension_numbers<[1], [1], [0], [0], [0, 0, 1, 0], [], []>} : vector<10x8xbf16>, vector<10x8xbf16>, vector<10x10xf32> -> vector<10x10xf32>
    %cst_2 = arith.constant dense<0xFF800000> : vector<10xf32>
    %8 = vector.multi_reduction <maximumf>, %7, %cst_2 [1] : vector<10x10xf32> to vector<10xf32>
    %9 = vector.shape_cast %8 : vector<10xf32> to vector<10x1xf32>
    %10 = vector.broadcast %9 : vector<10x1xf32> to vector<10x10xf32>
    %11 = arith.subf %7, %10 : vector<10x10xf32>
    %12 = math.exp %11 : vector<10x10xf32>
    %cst_3 = arith.constant dense<0.000000e+00> : vector<10xf32>
    %13 = vector.multi_reduction <add>, %12, %cst_3 [1] : vector<10x10xf32> to vector<10xf32>
    %14 = vector.shape_cast %13 : vector<10xf32> to vector<10x1xf32>
    %15 = tpu.reciprocal %14 {approx = true} : vector<10x1xf32> -> vector<10x1xf32>
    %16 = vector.broadcast %15 : vector<10x1xf32> to vector<10x10xf32>
    %17 = arith.mulf %12, %16 : vector<10x10xf32>
    %18 = arith.truncf %17 : vector<10x10xf32> to vector<10x10xbf16>
    %cst_4 = arith.constant dense<0.000000e+00> : vector<10x8xf32>
    %19 = tpu.matmul %18, %6, %cst_4 {dimension_numbers = #tpu.dot_dimension_numbers<[1], [0], [0], [1], [0, 0, 1, 1], [], []>} : vector<10x10xbf16>, vector<10x8xbf16>, vector<10x8xf32> -> vector<10x8xf32>
    %20 = arith.truncf %19 : vector<10x8xf32> to vector<10x8xbf16>
    %c0_5 = arith.constant 0 : index
    %c0_6 = arith.constant 0 : index
    %c0_7 = arith.constant 0 : index
    %21 = vector.load %arg2[%c0_5, %c0_6, %c0_7] : memref<1x10x32xbf16, #tpu.memory_space<vmem>>, vector<1x10x8xbf16>
    %22 = vector.shape_cast %21 : vector<1x10x8xbf16> to vector<10x8xbf16>
    %23 = vector.shape_cast %20 : vector<10x8xbf16> to vector<1x10x8xbf16>
    tpu.vector_store %arg2[%c0_5, %c0_6, %c0_7], %23 {strides = array<i32>} : memref<1x10x32xbf16, #tpu.memory_space<vmem>>, vector<1x10x8xbf16>,
    %24 = vector.extract_strided_slice %2 {offsets = [0, 8], sizes = [10, 8], strides = [1, 1]} : vector<10x32xbf16> to vector<10x8xbf16>
    %25 = vector.extract_strided_slice %3 {offsets = [0, 8], sizes = [10, 8], strides = [1, 1]} : vector<10x64xbf16> to vector<10x8xbf16>
    %26 = vector.extract_strided_slice %3 {offsets = [0, 40], sizes = [10, 8], strides = [1, 1]} : vector<10x64xbf16> to vector<10x8xbf16>
    %cst_8 = arith.constant dense<0.000000e+00> : vector<10x10xf32>
    %27 = tpu.matmul %24, %25, %cst_8 {dimension_numbers = #tpu.dot_dimension_numbers<[1], [1], [0], [0], [0, 0, 1, 0], [], []>} : vector<10x8xbf16>, vector<10x8xbf16>, vector<10x10xf32> -> vector<10x10xf32>
    %cst_9 = arith.constant dense<0xFF800000> : vector<10xf32>
    %28 = vector.multi_reduction <maximumf>, %27, %cst_9 [1] : vector<10x10xf32> to vector<10xf32>
    %29 = vector.shape_cast %28 : vector<10xf32> to vector<10x1xf32>
    %30 = vector.broadcast %29 : vector<10x1xf32> to vector<10x10xf32>
    %31 = arith.subf %27, %30 : vector<10x10xf32>
    %32 = math.exp %31 : vector<10x10xf32>
    %cst_10 = arith.constant dense<0.000000e+00> : vector<10xf32>
    %33 = vector.multi_reduction <add>, %32, %cst_10 [1] : vector<10x10xf32> to vector<10xf32>
    %34 = vector.shape_cast %33 : vector<10xf32> to vector<10x1xf32>
    %35 = tpu.reciprocal %34 {approx = true} : vector<10x1xf32> -> vector<10x1xf32>
    %36 = vector.broadcast %35 : vector<10x1xf32> to vector<10x10xf32>
    %37 = arith.mulf %32, %36 : vector<10x10xf32>
    %38 = arith.truncf %37 : vector<10x10xf32> to vector<10x10xbf16>
    %cst_11 = arith.constant dense<0.000000e+00> : vector<10x8xf32>
    %39 = tpu.matmul %38, %26, %cst_11 {dimension_numbers = #tpu.dot_dimension_numbers<[1], [0], [0], [1], [0, 0, 1, 1], [], []>} : vector<10x10xbf16>, vector<10x8xbf16>, vector<10x8xf32> -> vector<10x8xf32>
    %40 = arith.truncf %39 : vector<10x8xf32> to vector<10x8xbf16>
    %c0_12 = arith.constant 0 : index
    %c0_13 = arith.constant 0 : index
    %c8 = arith.constant 8 : index
    %41 = vector.load %arg2[%c0_12, %c0_13, %c8] : memref<1x10x32xbf16, #tpu.memory_space<vmem>>, vector<1x10x8xbf16>
    %42 = vector.shape_cast %41 : vector<1x10x8xbf16> to vector<10x8xbf16>
    %43 = vector.shape_cast %40 : vector<10x8xbf16> to vector<1x10x8xbf16>
    tpu.vector_store %arg2[%c0_12, %c0_13, %c8], %43 {strides = array<i32>} : memref<1x10x32xbf16, #tpu.memory_space<vmem>>, vector<1x10x8xbf16>,
    %44 = vector.extract_strided_slice %2 {offsets = [0, 16], sizes = [10, 8], strides = [1, 1]} : vector<10x32xbf16> to vector<10x8xbf16>
    %45 = vector.extract_strided_slice %3 {offsets = [0, 16], sizes = [10, 8], strides = [1, 1]} : vector<10x64xbf16> to vector<10x8xbf16>
    %46 = vector.extract_strided_slice %3 {offsets = [0, 48], sizes = [10, 8], strides = [1, 1]} : vector<10x64xbf16> to vector<10x8xbf16>
    %cst_14 = arith.constant dense<0.000000e+00> : vector<10x10xf32>
    %47 = tpu.matmul %44, %45, %cst_14 {dimension_numbers = #tpu.dot_dimension_numbers<[1], [1], [0], [0], [0, 0, 1, 0], [], []>} : vector<10x8xbf16>, vector<10x8xbf16>, vector<10x10xf32> -> vector<10x10xf32>
    %cst_15 = arith.constant dense<0xFF800000> : vector<10xf32>
    %48 = vector.multi_reduction <maximumf>, %47, %cst_15 [1] : vector<10x10xf32> to vector<10xf32>
    %49 = vector.shape_cast %48 : vector<10xf32> to vector<10x1xf32>
    %50 = vector.broadcast %49 : vector<10x1xf32> to vector<10x10xf32>
    %51 = arith.subf %47, %50 : vector<10x10xf32>
    %52 = math.exp %51 : vector<10x10xf32>
    %cst_16 = arith.constant dense<0.000000e+00> : vector<10xf32>
    %53 = vector.multi_reduction <add>, %52, %cst_16 [1] : vector<10x10xf32> to vector<10xf32>
    %54 = vector.shape_cast %53 : vector<10xf32> to vector<10x1xf32>
    %55 = tpu.reciprocal %54 {approx = true} : vector<10x1xf32> -> vector<10x1xf32>
    %56 = vector.broadcast %55 : vector<10x1xf32> to vector<10x10xf32>
    %57 = arith.mulf %52, %56 : vector<10x10xf32>
    %58 = arith.truncf %57 : vector<10x10xf32> to vector<10x10xbf16>
    %cst_17 = arith.constant dense<0.000000e+00> : vector<10x8xf32>
    %59 = tpu.matmul %58, %46, %cst_17 {dimension_numbers = #tpu.dot_dimension_numbers<[1], [0], [0], [1], [0, 0, 1, 1], [], []>} : vector<10x10xbf16>, vector<10x8xbf16>, vector<10x8xf32> -> vector<10x8xf32>
    %60 = arith.truncf %59 : vector<10x8xf32> to vector<10x8xbf16>
    %c0_18 = arith.constant 0 : index
    %c0_19 = arith.constant 0 : index
    %c16 = arith.constant 16 : index
    %61 = vector.load %arg2[%c0_18, %c0_19, %c16] : memref<1x10x32xbf16, #tpu.memory_space<vmem>>, vector<1x10x8xbf16>
    %62 = vector.shape_cast %61 : vector<1x10x8xbf16> to vector<10x8xbf16>
    %63 = vector.shape_cast %60 : vector<10x8xbf16> to vector<1x10x8xbf16>
    tpu.vector_store %arg2[%c0_18, %c0_19, %c16], %63 {strides = array<i32>} : memref<1x10x32xbf16, #tpu.memory_space<vmem>>, vector<1x10x8xbf16>,
    %64 = vector.extract_strided_slice %2 {offsets = [0, 24], sizes = [10, 8], strides = [1, 1]} : vector<10x32xbf16> to vector<10x8xbf16>
    %65 = vector.extract_strided_slice %3 {offsets = [0, 24], sizes = [10, 8], strides = [1, 1]} : vector<10x64xbf16> to vector<10x8xbf16>
    %66 = vector.extract_strided_slice %3 {offsets = [0, 56], sizes = [10, 8], strides = [1, 1]} : vector<10x64xbf16> to vector<10x8xbf16>
    %cst_20 = arith.constant dense<0.000000e+00> : vector<10x10xf32>
    %67 = tpu.matmul %64, %65, %cst_20 {dimension_numbers = #tpu.dot_dimension_numbers<[1], [1], [0], [0], [0, 0, 1, 0], [], []>} : vector<10x8xbf16>, vector<10x8xbf16>, vector<10x10xf32> -> vector<10x10xf32>
    %cst_21 = arith.constant dense<0xFF800000> : vector<10xf32>
    %68 = vector.multi_reduction <maximumf>, %67, %cst_21 [1] : vector<10x10xf32> to vector<10xf32>
    %69 = vector.shape_cast %68 : vector<10xf32> to vector<10x1xf32>
    %70 = vector.broadcast %69 : vector<10x1xf32> to vector<10x10xf32>
    %71 = arith.subf %67, %70 : vector<10x10xf32>
    %72 = math.exp %71 : vector<10x10xf32>
    %cst_22 = arith.constant dense<0.000000e+00> : vector<10xf32>
    %73 = vector.multi_reduction <add>, %72, %cst_22 [1] : vector<10x10xf32> to vector<10xf32>
    %74 = vector.shape_cast %73 : vector<10xf32> to vector<10x1xf32>
    %75 = tpu.reciprocal %74 {approx = true} : vector<10x1xf32> -> vector<10x1xf32>
    %76 = vector.broadcast %75 : vector<10x1xf32> to vector<10x10xf32>
    %77 = arith.mulf %72, %76 : vector<10x10xf32>
    %78 = arith.truncf %77 : vector<10x10xf32> to vector<10x10xbf16>
    %cst_23 = arith.constant dense<0.000000e+00> : vector<10x8xf32>
    %79 = tpu.matmul %78, %66, %cst_23 {dimension_numbers = #tpu.dot_dimension_numbers<[1], [0], [0], [1], [0, 0, 1, 1], [], []>} : vector<10x10xbf16>, vector<10x8xbf16>, vector<10x8xf32> -> vector<10x8xf32>
    %80 = arith.truncf %79 : vector<10x8xf32> to vector<10x8xbf16>
    %c0_24 = arith.constant 0 : index
    %c0_25 = arith.constant 0 : index
    %c24 = arith.constant 24 : index
    %81 = vector.load %arg2[%c0_24, %c0_25, %c24] : memref<1x10x32xbf16, #tpu.memory_space<vmem>>, vector<1x10x8xbf16>
    %82 = vector.shape_cast %81 : vector<1x10x8xbf16> to vector<10x8xbf16>
    %83 = vector.shape_cast %80 : vector<10x8xbf16> to vector<1x10x8xbf16>
    tpu.vector_store %arg2[%c0_24, %c0_25, %c24], %83 {strides = array<i32>} : memref<1x10x32xbf16, #tpu.memory_space<vmem>>, vector<1x10x8xbf16>,
    return
  }
  func.func @transform_0(%arg0: i32) -> (i32, i32, i32) {
    %c0_i32 = arith.constant 0 : i32
    %c0_i32_0 = arith.constant 0 : i32
    %c0_i32_1 = arith.constant 0 : i32
    return %arg0, %c0_i32, %c0_i32_0 : i32, i32, i32
  }
  func.func @transform_1(%arg0: i32) -> (i32, i32, i32) {
    %c0_i32 = arith.constant 0 : i32
    %c0_i32_0 = arith.constant 0 : i32
    %c0_i32_1 = arith.constant 0 : i32
    return %arg0, %c0_i32, %c0_i32_0 : i32, i32, i32
  }
}

module attributes {stable_mosaic.version = 11 : i64} {
  func.func @_ffn_res_ln_kernel(%arg0: i32, %arg1: memref<20x32xbf16, #tpu.memory_space<vmem>>, %arg2: memref<32x64xbf16, #tpu.memory_space<vmem>>, %arg3: memref<1x64xf32, #tpu.memory_space<vmem>>, %arg4: memref<64x32xbf16, #tpu.memory_space<vmem>>, %arg5: memref<1x32xf32, #tpu.memory_space<vmem>>, %arg6: memref<1x32xf32, #tpu.memory_space<vmem>>, %arg7: memref<1x32xf32, #tpu.memory_space<vmem>>, %arg8: memref<20x32xbf16, #tpu.memory_space<vmem>>) attributes {dimension_semantics = [#tpu.dimension_semantics<parallel>], iteration_bounds = array<i64: 1>, scalar_prefetch = 0 : i64, scratch_operands = 0 : i64, tpu.core_type = #tpu.core_type<tc>, window_params = [{transform_indices = @transform_0, window_bounds = array<i64: 20, 32>}, {pipeline_mode = #tpu.pipeline_mode<synchronous>, transform_indices = @transform_1, window_bounds = array<i64: 32, 64>}, {pipeline_mode = #tpu.pipeline_mode<synchronous>, transform_indices = @transform_2, window_bounds = array<i64: 1, 64>}, {pipeline_mode = #tpu.pipeline_mode<synchronous>, transform_indices = @transform_3, window_bounds = array<i64: 64, 32>}, {pipeline_mode = #tpu.pipeline_mode<synchronous>, transform_indices = @transform_4, window_bounds = array<i64: 1, 32>}, {pipeline_mode = #tpu.pipeline_mode<synchronous>, transform_indices = @transform_5, window_bounds = array<i64: 1, 32>}, {pipeline_mode = #tpu.pipeline_mode<synchronous>, transform_indices = @transform_6, window_bounds = array<i64: 1, 32>}, {transform_indices = @transform_7, window_bounds = array<i64: 20, 32>}]} {
    %c0 = arith.constant 0 : index
    %c0_0 = arith.constant 0 : index
    %0 = vector.load %arg1[%c0, %c0_0] : memref<20x32xbf16, #tpu.memory_space<vmem>>, vector<20x32xbf16>
    %1 = arith.extf %0 : vector<20x32xbf16> to vector<20x32xf32>
    %cst = arith.constant 0.000000e+00 : f32
    %2 = vector.broadcast %cst : f32 to vector<20x32xf32>
    %c0_1 = arith.constant 0 : index
    %c0_2 = arith.constant 0 : index
    %3 = vector.load %arg2[%c0_1, %c0_2] : memref<32x64xbf16, #tpu.memory_space<vmem>>, vector<32x64xbf16>
    %c0_3 = arith.constant 0 : index
    %c0_4 = arith.constant 0 : index
    %4 = vector.load %arg3[%c0_3, %c0_4] : memref<1x64xf32, #tpu.memory_space<vmem>>, vector<1x64xf32>
    %cst_5 = arith.constant dense<0.000000e+00> : vector<20x64xf32>
    %5 = tpu.matmul %0, %3, %cst_5 {dimension_numbers = #tpu.dot_dimension_numbers<[1], [0], [0], [1], [0, 0, 1, 1], [], []>} : vector<20x32xbf16>, vector<32x64xbf16>, vector<20x64xf32> -> vector<20x64xf32>
    %6 = vector.broadcast %4 : vector<1x64xf32> to vector<20x64xf32>
    %7 = arith.addf %5, %6 : vector<20x64xf32>
    %cst_6 = arith.constant 0.000000e+00 : f32
    %8 = vector.broadcast %cst_6 : f32 to vector<20x64xf32>
    %9 = arith.maximumf %7, %8 : vector<20x64xf32>
    %c0_7 = arith.constant 0 : index
    %c0_8 = arith.constant 0 : index
    %10 = vector.load %arg4[%c0_7, %c0_8] : memref<64x32xbf16, #tpu.memory_space<vmem>>, vector<64x32xbf16>
    %11 = arith.truncf %9 : vector<20x64xf32> to vector<20x64xbf16>
    %cst_9 = arith.constant dense<0.000000e+00> : vector<20x32xf32>
    %12 = tpu.matmul %11, %10, %cst_9 {dimension_numbers = #tpu.dot_dimension_numbers<[1], [0], [0], [1], [0, 0, 1, 1], [], []>} : vector<20x64xbf16>, vector<64x32xbf16>, vector<20x32xf32> -> vector<20x32xf32>
    %13 = arith.addf %2, %12 : vector<20x32xf32>
    %14 = arith.addf %1, %13 : vector<20x32xf32>
    %c0_10 = arith.constant 0 : index
    %c0_11 = arith.constant 0 : index
    %15 = vector.load %arg5[%c0_10, %c0_11] : memref<1x32xf32, #tpu.memory_space<vmem>>, vector<1x32xf32>
    %16 = vector.broadcast %15 : vector<1x32xf32> to vector<20x32xf32>
    %17 = arith.addf %14, %16 : vector<20x32xf32>
    %cst_12 = arith.constant dense<0.000000e+00> : vector<20xf32>
    %18 = vector.multi_reduction <add>, %17, %cst_12 [1] : vector<20x32xf32> to vector<20xf32>
    %19 = vector.shape_cast %18 : vector<20xf32> to vector<20x1xf32>
    %cst_13 = arith.constant 3.200000e+01 : f32
    %20 = vector.broadcast %cst_13 : f32 to vector<20x1xf32>
    %21 = arith.divf %19, %20 : vector<20x1xf32>
    %22 = vector.broadcast %21 : vector<20x1xf32> to vector<20x32xf32>
    %23 = arith.subf %17, %22 : vector<20x32xf32>
    %24 = arith.mulf %23, %23 : vector<20x32xf32>
    %cst_14 = arith.constant dense<0.000000e+00> : vector<20xf32>
    %25 = vector.multi_reduction <add>, %24, %cst_14 [1] : vector<20x32xf32> to vector<20xf32>
    %26 = vector.shape_cast %25 : vector<20xf32> to vector<20x1xf32>
    %cst_15 = arith.constant 3.200000e+01 : f32
    %27 = vector.broadcast %cst_15 : f32 to vector<20x1xf32>
    %28 = arith.divf %26, %27 : vector<20x1xf32>
    %29 = vector.broadcast %21 : vector<20x1xf32> to vector<20x32xf32>
    %30 = arith.subf %17, %29 : vector<20x32xf32>
    %cst_16 = arith.constant 9.99999974E-6 : f32
    %31 = vector.broadcast %cst_16 : f32 to vector<20x1xf32>
    %32 = arith.addf %28, %31 : vector<20x1xf32>
    %33 = math.rsqrt %32 : vector<20x1xf32>
    %34 = vector.broadcast %33 : vector<20x1xf32> to vector<20x32xf32>
    %35 = arith.mulf %30, %34 : vector<20x32xf32>
    %c0_17 = arith.constant 0 : index
    %c0_18 = arith.constant 0 : index
    %36 = vector.load %arg6[%c0_17, %c0_18] : memref<1x32xf32, #tpu.memory_space<vmem>>, vector<1x32xf32>
    %37 = vector.broadcast %36 : vector<1x32xf32> to vector<20x32xf32>
    %38 = arith.mulf %35, %37 : vector<20x32xf32>
    %c0_19 = arith.constant 0 : index
    %c0_20 = arith.constant 0 : index
    %39 = vector.load %arg7[%c0_19, %c0_20] : memref<1x32xf32, #tpu.memory_space<vmem>>, vector<1x32xf32>
    %40 = vector.broadcast %39 : vector<1x32xf32> to vector<20x32xf32>
    %41 = arith.addf %38, %40 : vector<20x32xf32>
    %42 = arith.truncf %41 : vector<20x32xf32> to vector<20x32xbf16>
    %c0_21 = arith.constant 0 : index
    %c0_22 = arith.constant 0 : index
    %43 = vector.load %arg8[%c0_21, %c0_22] : memref<20x32xbf16, #tpu.memory_space<vmem>>, vector<20x32xbf16>
    tpu.vector_store %arg8[%c0_21, %c0_22], %42 {strides = array<i32>} : memref<20x32xbf16, #tpu.memory_space<vmem>>, vector<20x32xbf16>,
    return
  }
  func.func @transform_0(%arg0: i32) -> (i32, i32) {
    %c0_i32 = arith.constant 0 : i32
    %c0_i32_0 = arith.constant 0 : i32
    return %arg0, %c0_i32 : i32, i32
  }
  func.func @transform_1(%arg0: i32) -> (i32, i32) {
    %c0_i32 = arith.constant 0 : i32
    %c0_i32_0 = arith.constant 0 : i32
    %c0_i32_1 = arith.constant 0 : i32
    return %c0_i32, %c0_i32_0 : i32, i32
  }
  func.func @transform_2(%arg0: i32) -> (i32, i32) {
    %c0_i32 = arith.constant 0 : i32
    %c0_i32_0 = arith.constant 0 : i32
    %c0_i32_1 = arith.constant 0 : i32
    return %c0_i32, %c0_i32_0 : i32, i32
  }
  func.func @transform_3(%arg0: i32) -> (i32, i32) {
    %c0_i32 = arith.constant 0 : i32
    %c0_i32_0 = arith.constant 0 : i32
    %c0_i32_1 = arith.constant 0 : i32
    return %c0_i32, %c0_i32_0 : i32, i32
  }
  func.func @transform_4(%arg0: i32) -> (i32, i32) {
    %c0_i32 = arith.constant 0 : i32
    %c0_i32_0 = arith.constant 0 : i32
    %c0_i32_1 = arith.constant 0 : i32
    return %c0_i32, %c0_i32_0 : i32, i32
  }
  func.func @transform_5(%arg0: i32) -> (i32, i32) {
    %c0_i32 = arith.constant 0 : i32
    %c0_i32_0 = arith.constant 0 : i32
    %c0_i32_1 = arith.constant 0 : i32
    return %c0_i32, %c0_i32_0 : i32, i32
  }
  func.func @transform_6(%arg0: i32) -> (i32, i32) {
    %c0_i32 = arith.constant 0 : i32
    %c0_i32_0 = arith.constant 0 : i32
    %c0_i32_1 = arith.constant 0 : i32
    return %c0_i32, %c0_i32_0 : i32, i32
  }
  func.func @transform_7(%arg0: i32) -> (i32, i32) {
    %c0_i32 = arith.constant 0 : i32
    %c0_i32_0 = arith.constant 0 : i32
    return %arg0, %c0_i32 : i32, i32
  }
}

module attributes {stable_mosaic.version = 11 : i64} {
  func.func @_linear_kernel(%arg0: i32, %arg1: memref<20x32xbf16, #tpu.memory_space<vmem>>, %arg2: memref<32x64xbf16, #tpu.memory_space<vmem>>, %arg3: memref<1x64xf32, #tpu.memory_space<vmem>>, %arg4: memref<20x64xbf16, #tpu.memory_space<vmem>>) attributes {dimension_semantics = [#tpu.dimension_semantics<parallel>], iteration_bounds = array<i64: 1>, scalar_prefetch = 0 : i64, scratch_operands = 0 : i64, tpu.core_type = #tpu.core_type<tc>, window_params = [{transform_indices = @transform_0, window_bounds = array<i64: 20, 32>}, {pipeline_mode = #tpu.pipeline_mode<synchronous>, transform_indices = @transform_1, window_bounds = array<i64: 32, 64>}, {pipeline_mode = #tpu.pipeline_mode<synchronous>, transform_indices = @transform_2, window_bounds = array<i64: 1, 64>}, {transform_indices = @transform_3, window_bounds = array<i64: 20, 64>}]} {
    %c0 = arith.constant 0 : index
    %c0_0 = arith.constant 0 : index
    %0 = vector.load %arg1[%c0, %c0_0] : memref<20x32xbf16, #tpu.memory_space<vmem>>, vector<20x32xbf16>
    %c0_1 = arith.constant 0 : index
    %c0_2 = arith.constant 0 : index
    %1 = vector.load %arg2[%c0_1, %c0_2] : memref<32x64xbf16, #tpu.memory_space<vmem>>, vector<32x64xbf16>
    %cst = arith.constant dense<0.000000e+00> : vector<20x64xf32>
    %2 = tpu.matmul %0, %1, %cst {dimension_numbers = #tpu.dot_dimension_numbers<[1], [0], [0], [1], [0, 0, 1, 1], [], []>} : vector<20x32xbf16>, vector<32x64xbf16>, vector<20x64xf32> -> vector<20x64xf32>
    %c0_3 = arith.constant 0 : index
    %c0_4 = arith.constant 0 : index
    %3 = vector.load %arg3[%c0_3, %c0_4] : memref<1x64xf32, #tpu.memory_space<vmem>>, vector<1x64xf32>
    %4 = vector.broadcast %3 : vector<1x64xf32> to vector<20x64xf32>
    %5 = arith.addf %2, %4 : vector<20x64xf32>
    %6 = arith.truncf %5 : vector<20x64xf32> to vector<20x64xbf16>
    %c0_5 = arith.constant 0 : index
    %c0_6 = arith.constant 0 : index
    %7 = vector.load %arg4[%c0_5, %c0_6] : memref<20x64xbf16, #tpu.memory_space<vmem>>, vector<20x64xbf16>
    tpu.vector_store %arg4[%c0_5, %c0_6], %6 {strides = array<i32>} : memref<20x64xbf16, #tpu.memory_space<vmem>>, vector<20x64xbf16>,
    return
  }
  func.func @transform_0(%arg0: i32) -> (i32, i32) {
    %c0_i32 = arith.constant 0 : i32
    %c0_i32_0 = arith.constant 0 : i32
    return %arg0, %c0_i32 : i32, i32
  }
  func.func @transform_1(%arg0: i32) -> (i32, i32) {
    %c0_i32 = arith.constant 0 : i32
    %c0_i32_0 = arith.constant 0 : i32
    %c0_i32_1 = arith.constant 0 : i32
    return %c0_i32, %c0_i32_0 : i32, i32
  }
  func.func @transform_2(%arg0: i32) -> (i32, i32) {
    %c0_i32 = arith.constant 0 : i32
    %c0_i32_0 = arith.constant 0 : i32
    %c0_i32_1 = arith.constant 0 : i32
    return %c0_i32, %c0_i32_0 : i32, i32
  }
  func.func @transform_3(%arg0: i32) -> (i32, i32) {
    %c0_i32 = arith.constant 0 : i32
    %c0_i32_0 = arith.constant 0 : i32
    return %arg0, %c0_i32 : i32, i32
  }
}

module attributes {stable_mosaic.version = 11 : i64} {
  func.func @_ln_kernel(%arg0: i32, %arg1: memref<20x32xbf16, #tpu.memory_space<vmem>>, %arg2: memref<1x32xf32, #tpu.memory_space<vmem>>, %arg3: memref<1x32xf32, #tpu.memory_space<vmem>>, %arg4: memref<20x32xbf16, #tpu.memory_space<vmem>>) attributes {dimension_semantics = [#tpu.dimension_semantics<parallel>], iteration_bounds = array<i64: 1>, scalar_prefetch = 0 : i64, scratch_operands = 0 : i64, tpu.core_type = #tpu.core_type<tc>, window_params = [{transform_indices = @transform_0, window_bounds = array<i64: 20, 32>}, {pipeline_mode = #tpu.pipeline_mode<synchronous>, transform_indices = @transform_1, window_bounds = array<i64: 1, 32>}, {pipeline_mode = #tpu.pipeline_mode<synchronous>, transform_indices = @transform_2, window_bounds = array<i64: 1, 32>}, {transform_indices = @transform_3, window_bounds = array<i64: 20, 32>}]} {
    %c0 = arith.constant 0 : index
    %c0_0 = arith.constant 0 : index
    %0 = vector.load %arg1[%c0, %c0_0] : memref<20x32xbf16, #tpu.memory_space<vmem>>, vector<20x32xbf16>
    %1 = arith.extf %0 : vector<20x32xbf16> to vector<20x32xf32>
    %cst = arith.constant dense<0.000000e+00> : vector<20xf32>
    %2 = vector.multi_reduction <add>, %1, %cst [1] : vector<20x32xf32> to vector<20xf32>
    %3 = vector.shape_cast %2 : vector<20xf32> to vector<20x1xf32>
    %cst_1 = arith.constant 3.200000e+01 : f32
    %4 = vector.broadcast %cst_1 : f32 to vector<20x1xf32>
    %5 = arith.divf %3, %4 : vector<20x1xf32>
    %6 = vector.broadcast %5 : vector<20x1xf32> to vector<20x32xf32>
    %7 = arith.subf %1, %6 : vector<20x32xf32>
    %8 = arith.mulf %7, %7 : vector<20x32xf32>
    %cst_2 = arith.constant dense<0.000000e+00> : vector<20xf32>
    %9 = vector.multi_reduction <add>, %8, %cst_2 [1] : vector<20x32xf32> to vector<20xf32>
    %10 = vector.shape_cast %9 : vector<20xf32> to vector<20x1xf32>
    %cst_3 = arith.constant 3.200000e+01 : f32
    %11 = vector.broadcast %cst_3 : f32 to vector<20x1xf32>
    %12 = arith.divf %10, %11 : vector<20x1xf32>
    %13 = vector.broadcast %5 : vector<20x1xf32> to vector<20x32xf32>
    %14 = arith.subf %1, %13 : vector<20x32xf32>
    %cst_4 = arith.constant 9.99999974E-6 : f32
    %15 = vector.broadcast %cst_4 : f32 to vector<20x1xf32>
    %16 = arith.addf %12, %15 : vector<20x1xf32>
    %17 = math.rsqrt %16 : vector<20x1xf32>
    %18 = vector.broadcast %17 : vector<20x1xf32> to vector<20x32xf32>
    %19 = arith.mulf %14, %18 : vector<20x32xf32>
    %c0_5 = arith.constant 0 : index
    %c0_6 = arith.constant 0 : index
    %20 = vector.load %arg2[%c0_5, %c0_6] : memref<1x32xf32, #tpu.memory_space<vmem>>, vector<1x32xf32>
    %21 = vector.broadcast %20 : vector<1x32xf32> to vector<20x32xf32>
    %22 = arith.mulf %19, %21 : vector<20x32xf32>
    %c0_7 = arith.constant 0 : index
    %c0_8 = arith.constant 0 : index
    %23 = vector.load %arg3[%c0_7, %c0_8] : memref<1x32xf32, #tpu.memory_space<vmem>>, vector<1x32xf32>
    %24 = vector.broadcast %23 : vector<1x32xf32> to vector<20x32xf32>
    %25 = arith.addf %22, %24 : vector<20x32xf32>
    %26 = arith.truncf %25 : vector<20x32xf32> to vector<20x32xbf16>
    %c0_9 = arith.constant 0 : index
    %c0_10 = arith.constant 0 : index
    %27 = vector.load %arg4[%c0_9, %c0_10] : memref<20x32xbf16, #tpu.memory_space<vmem>>, vector<20x32xbf16>
    tpu.vector_store %arg4[%c0_9, %c0_10], %26 {strides = array<i32>} : memref<20x32xbf16, #tpu.memory_space<vmem>>, vector<20x32xbf16>,
    return
  }
  func.func @transform_0(%arg0: i32) -> (i32, i32) {
    %c0_i32 = arith.constant 0 : i32
    %c0_i32_0 = arith.constant 0 : i32
    return %arg0, %c0_i32 : i32, i32
  }
  func.func @transform_1(%arg0: i32) -> (i32, i32) {
    %c0_i32 = arith.constant 0 : i32
    %c0_i32_0 = arith.constant 0 : i32
    %c0_i32_1 = arith.constant 0 : i32
    return %c0_i32, %c0_i32_0 : i32, i32
  }
  func.func @transform_2(%arg0: i32) -> (i32, i32) {
    %c0_i32 = arith.constant 0 : i32
    %c0_i32_0 = arith.constant 0 : i32
    %c0_i32_1 = arith.constant 0 : i32
    return %c0_i32, %c0_i32_0 : i32, i32
  }
  func.func @transform_3(%arg0: i32) -> (i32, i32) {
    %c0_i32 = arith.constant 0 : i32
    %c0_i32_0 = arith.constant 0 : i32
    return %arg0, %c0_i32 : i32, i32
  }
}

module attributes {stable_mosaic.version = 11 : i64} {
  func.func @_linear_kernel(%arg0: i32, %arg1: memref<16x32xbf16, #tpu.memory_space<vmem>>, %arg2: memref<32x96xbf16, #tpu.memory_space<vmem>>, %arg3: memref<1x96xf32, #tpu.memory_space<vmem>>, %arg4: memref<16x96xbf16, #tpu.memory_space<vmem>>) attributes {dimension_semantics = [#tpu.dimension_semantics<parallel>], iteration_bounds = array<i64: 1>, scalar_prefetch = 0 : i64, scratch_operands = 0 : i64, tpu.core_type = #tpu.core_type<tc>, window_params = [{transform_indices = @transform_0, window_bounds = array<i64: 16, 32>}, {pipeline_mode = #tpu.pipeline_mode<synchronous>, transform_indices = @transform_1, window_bounds = array<i64: 32, 96>}, {pipeline_mode = #tpu.pipeline_mode<synchronous>, transform_indices = @transform_2, window_bounds = array<i64: 1, 96>}, {transform_indices = @transform_3, window_bounds = array<i64: 16, 96>}]} {
    %c0 = arith.constant 0 : index
    %c0_0 = arith.constant 0 : index
    %0 = vector.load %arg1[%c0, %c0_0] : memref<16x32xbf16, #tpu.memory_space<vmem>>, vector<16x32xbf16>
    %c0_1 = arith.constant 0 : index
    %c0_2 = arith.constant 0 : index
    %1 = vector.load %arg2[%c0_1, %c0_2] : memref<32x96xbf16, #tpu.memory_space<vmem>>, vector<32x96xbf16>
    %cst = arith.constant dense<0.000000e+00> : vector<16x96xf32>
    %2 = tpu.matmul %0, %1, %cst {dimension_numbers = #tpu.dot_dimension_numbers<[1], [0], [0], [1], [0, 0, 1, 1], [], []>} : vector<16x32xbf16>, vector<32x96xbf16>, vector<16x96xf32> -> vector<16x96xf32>
    %c0_3 = arith.constant 0 : index
    %c0_4 = arith.constant 0 : index
    %3 = vector.load %arg3[%c0_3, %c0_4] : memref<1x96xf32, #tpu.memory_space<vmem>>, vector<1x96xf32>
    %4 = vector.broadcast %3 : vector<1x96xf32> to vector<16x96xf32>
    %5 = arith.addf %2, %4 : vector<16x96xf32>
    %6 = arith.truncf %5 : vector<16x96xf32> to vector<16x96xbf16>
    %c0_5 = arith.constant 0 : index
    %c0_6 = arith.constant 0 : index
    %7 = vector.load %arg4[%c0_5, %c0_6] : memref<16x96xbf16, #tpu.memory_space<vmem>>, vector<16x96xbf16>
    tpu.vector_store %arg4[%c0_5, %c0_6], %6 {strides = array<i32>} : memref<16x96xbf16, #tpu.memory_space<vmem>>, vector<16x96xbf16>,
    return
  }
  func.func @transform_0(%arg0: i32) -> (i32, i32) {
    %c0_i32 = arith.constant 0 : i32
    %c0_i32_0 = arith.constant 0 : i32
    return %arg0, %c0_i32 : i32, i32
  }
  func.func @transform_1(%arg0: i32) -> (i32, i32) {
    %c0_i32 = arith.constant 0 : i32
    %c0_i32_0 = arith.constant 0 : i32
    %c0_i32_1 = arith.constant 0 : i32
    return %c0_i32, %c0_i32_0 : i32, i32
  }
  func.func @transform_2(%arg0: i32) -> (i32, i32) {
    %c0_i32 = arith.constant 0 : i32
    %c0_i32_0 = arith.constant 0 : i32
    %c0_i32_1 = arith.constant 0 : i32
    return %c0_i32, %c0_i32_0 : i32, i32
  }
  func.func @transform_3(%arg0: i32) -> (i32, i32) {
    %c0_i32 = arith.constant 0 : i32
    %c0_i32_0 = arith.constant 0 : i32
    return %arg0, %c0_i32 : i32, i32
  }
}

module attributes {stable_mosaic.version = 11 : i64} {
  func.func @_proj_res_ln_kernel(%arg0: i32, %arg1: memref<16x32xbf16, #tpu.memory_space<vmem>>, %arg2: memref<32x32xbf16, #tpu.memory_space<vmem>>, %arg3: memref<1x32xf32, #tpu.memory_space<vmem>>, %arg4: memref<16x32xbf16, #tpu.memory_space<vmem>>, %arg5: memref<1x32xf32, #tpu.memory_space<vmem>>, %arg6: memref<1x32xf32, #tpu.memory_space<vmem>>, %arg7: memref<16x32xbf16, #tpu.memory_space<vmem>>) attributes {dimension_semantics = [#tpu.dimension_semantics<parallel>], iteration_bounds = array<i64: 1>, scalar_prefetch = 0 : i64, scratch_operands = 0 : i64, tpu.core_type = #tpu.core_type<tc>, window_params = [{transform_indices = @transform_0, window_bounds = array<i64: 16, 32>}, {pipeline_mode = #tpu.pipeline_mode<synchronous>, transform_indices = @transform_1, window_bounds = array<i64: 32, 32>}, {pipeline_mode = #tpu.pipeline_mode<synchronous>, transform_indices = @transform_2, window_bounds = array<i64: 1, 32>}, {transform_indices = @transform_3, window_bounds = array<i64: 16, 32>}, {pipeline_mode = #tpu.pipeline_mode<synchronous>, transform_indices = @transform_4, window_bounds = array<i64: 1, 32>}, {pipeline_mode = #tpu.pipeline_mode<synchronous>, transform_indices = @transform_5, window_bounds = array<i64: 1, 32>}, {transform_indices = @transform_6, window_bounds = array<i64: 16, 32>}]} {
    %c0 = arith.constant 0 : index
    %c0_0 = arith.constant 0 : index
    %0 = vector.load %arg1[%c0, %c0_0] : memref<16x32xbf16, #tpu.memory_space<vmem>>, vector<16x32xbf16>
    %c0_1 = arith.constant 0 : index
    %c0_2 = arith.constant 0 : index
    %1 = vector.load %arg2[%c0_1, %c0_2] : memref<32x32xbf16, #tpu.memory_space<vmem>>, vector<32x32xbf16>
    %cst = arith.constant dense<0.000000e+00> : vector<16x32xf32>
    %2 = tpu.matmul %0, %1, %cst {dimension_numbers = #tpu.dot_dimension_numbers<[1], [0], [0], [1], [0, 0, 1, 1], [], []>} : vector<16x32xbf16>, vector<32x32xbf16>, vector<16x32xf32> -> vector<16x32xf32>
    %c0_3 = arith.constant 0 : index
    %c0_4 = arith.constant 0 : index
    %3 = vector.load %arg3[%c0_3, %c0_4] : memref<1x32xf32, #tpu.memory_space<vmem>>, vector<1x32xf32>
    %4 = vector.broadcast %3 : vector<1x32xf32> to vector<16x32xf32>
    %5 = arith.addf %2, %4 : vector<16x32xf32>
    %c0_5 = arith.constant 0 : index
    %c0_6 = arith.constant 0 : index
    %6 = vector.load %arg4[%c0_5, %c0_6] : memref<16x32xbf16, #tpu.memory_space<vmem>>, vector<16x32xbf16>
    %7 = arith.extf %6 : vector<16x32xbf16> to vector<16x32xf32>
    %8 = arith.addf %7, %5 : vector<16x32xf32>
    %cst_7 = arith.constant dense<0.000000e+00> : vector<16xf32>
    %9 = vector.multi_reduction <add>, %8, %cst_7 [1] : vector<16x32xf32> to vector<16xf32>
    %10 = vector.shape_cast %9 : vector<16xf32> to vector<16x1xf32>
    %cst_8 = arith.constant 3.200000e+01 : f32
    %11 = vector.broadcast %cst_8 : f32 to vector<16x1xf32>
    %12 = arith.divf %10, %11 : vector<16x1xf32>
    %13 = vector.broadcast %12 : vector<16x1xf32> to vector<16x32xf32>
    %14 = arith.subf %8, %13 : vector<16x32xf32>
    %15 = arith.mulf %14, %14 : vector<16x32xf32>
    %cst_9 = arith.constant dense<0.000000e+00> : vector<16xf32>
    %16 = vector.multi_reduction <add>, %15, %cst_9 [1] : vector<16x32xf32> to vector<16xf32>
    %17 = vector.shape_cast %16 : vector<16xf32> to vector<16x1xf32>
    %cst_10 = arith.constant 3.200000e+01 : f32
    %18 = vector.broadcast %cst_10 : f32 to vector<16x1xf32>
    %19 = arith.divf %17, %18 : vector<16x1xf32>
    %20 = vector.broadcast %12 : vector<16x1xf32> to vector<16x32xf32>
    %21 = arith.subf %8, %20 : vector<16x32xf32>
    %cst_11 = arith.constant 9.99999974E-6 : f32
    %22 = vector.broadcast %cst_11 : f32 to vector<16x1xf32>
    %23 = arith.addf %19, %22 : vector<16x1xf32>
    %24 = math.rsqrt %23 : vector<16x1xf32>
    %25 = vector.broadcast %24 : vector<16x1xf32> to vector<16x32xf32>
    %26 = arith.mulf %21, %25 : vector<16x32xf32>
    %c0_12 = arith.constant 0 : index
    %c0_13 = arith.constant 0 : index
    %27 = vector.load %arg5[%c0_12, %c0_13] : memref<1x32xf32, #tpu.memory_space<vmem>>, vector<1x32xf32>
    %28 = vector.broadcast %27 : vector<1x32xf32> to vector<16x32xf32>
    %29 = arith.mulf %26, %28 : vector<16x32xf32>
    %c0_14 = arith.constant 0 : index
    %c0_15 = arith.constant 0 : index
    %30 = vector.load %arg6[%c0_14, %c0_15] : memref<1x32xf32, #tpu.memory_space<vmem>>, vector<1x32xf32>
    %31 = vector.broadcast %30 : vector<1x32xf32> to vector<16x32xf32>
    %32 = arith.addf %29, %31 : vector<16x32xf32>
    %33 = arith.truncf %32 : vector<16x32xf32> to vector<16x32xbf16>
    %c0_16 = arith.constant 0 : index
    %c0_17 = arith.constant 0 : index
    %34 = vector.load %arg7[%c0_16, %c0_17] : memref<16x32xbf16, #tpu.memory_space<vmem>>, vector<16x32xbf16>
    tpu.vector_store %arg7[%c0_16, %c0_17], %33 {strides = array<i32>} : memref<16x32xbf16, #tpu.memory_space<vmem>>, vector<16x32xbf16>,
    return
  }
  func.func @transform_0(%arg0: i32) -> (i32, i32) {
    %c0_i32 = arith.constant 0 : i32
    %c0_i32_0 = arith.constant 0 : i32
    return %arg0, %c0_i32 : i32, i32
  }
  func.func @transform_1(%arg0: i32) -> (i32, i32) {
    %c0_i32 = arith.constant 0 : i32
    %c0_i32_0 = arith.constant 0 : i32
    %c0_i32_1 = arith.constant 0 : i32
    return %c0_i32, %c0_i32_0 : i32, i32
  }
  func.func @transform_2(%arg0: i32) -> (i32, i32) {
    %c0_i32 = arith.constant 0 : i32
    %c0_i32_0 = arith.constant 0 : i32
    %c0_i32_1 = arith.constant 0 : i32
    return %c0_i32, %c0_i32_0 : i32, i32
  }
  func.func @transform_3(%arg0: i32) -> (i32, i32) {
    %c0_i32 = arith.constant 0 : i32
    %c0_i32_0 = arith.constant 0 : i32
    return %arg0, %c0_i32 : i32, i32
  }
  func.func @transform_4(%arg0: i32) -> (i32, i32) {
    %c0_i32 = arith.constant 0 : i32
    %c0_i32_0 = arith.constant 0 : i32
    %c0_i32_1 = arith.constant 0 : i32
    return %c0_i32, %c0_i32_0 : i32, i32
  }
  func.func @transform_5(%arg0: i32) -> (i32, i32) {
    %c0_i32 = arith.constant 0 : i32
    %c0_i32_0 = arith.constant 0 : i32
    %c0_i32_1 = arith.constant 0 : i32
    return %c0_i32, %c0_i32_0 : i32, i32
  }
  func.func @transform_6(%arg0: i32) -> (i32, i32) {
    %c0_i32 = arith.constant 0 : i32
    %c0_i32_0 = arith.constant 0 : i32
    return %arg0, %c0_i32 : i32, i32
  }
}

module attributes {stable_mosaic.version = 11 : i64} {
  func.func @_self_attn_kernel(%arg0: i32, %arg1: memref<1x8x96xbf16, #tpu.memory_space<vmem>>, %arg2: memref<1x8x32xbf16, #tpu.memory_space<vmem>>) attributes {dimension_semantics = [#tpu.dimension_semantics<parallel>], iteration_bounds = array<i64: 2>, scalar_prefetch = 0 : i64, scratch_operands = 0 : i64, tpu.core_type = #tpu.core_type<tc>, window_params = [{transform_indices = @transform_0, window_bounds = array<i64: 1, 8, 96>}, {transform_indices = @transform_1, window_bounds = array<i64: 1, 8, 32>}]} {
    %c0 = arith.constant 0 : index
    %c0_0 = arith.constant 0 : index
    %c0_1 = arith.constant 0 : index
    %0 = vector.load %arg1[%c0, %c0_0, %c0_1] : memref<1x8x96xbf16, #tpu.memory_space<vmem>>, vector<1x8x96xbf16>
    %1 = vector.shape_cast %0 : vector<1x8x96xbf16> to vector<8x96xbf16>
    %2 = vector.extract_strided_slice %1 {offsets = [0, 0], sizes = [8, 32], strides = [1, 1]} : vector<8x96xbf16> to vector<8x32xbf16>
    %3 = vector.extract_strided_slice %1 {offsets = [0, 32], sizes = [8, 64], strides = [1, 1]} : vector<8x96xbf16> to vector<8x64xbf16>
    %4 = tpu.iota {dimensions = array<i32: 0>} : vector<8x8xi32>
    %5 = tpu.iota {dimensions = array<i32: 1>} : vector<8x8xi32>
    %6 = arith.cmpi sle, %5, %4 : vector<8x8xi32>
    %7 = vector.extract_strided_slice %2 {offsets = [0, 0], sizes = [8, 8], strides = [1, 1]} : vector<8x32xbf16> to vector<8x8xbf16>
    %8 = vector.extract_strided_slice %3 {offsets = [0, 0], sizes = [8, 8], strides = [1, 1]} : vector<8x64xbf16> to vector<8x8xbf16>
    %9 = vector.extract_strided_slice %3 {offsets = [0, 32], sizes = [8, 8], strides = [1, 1]} : vector<8x64xbf16> to vector<8x8xbf16>
    %cst = arith.constant dense<0.000000e+00> : vector<8x8xf32>
    %10 = tpu.matmul %7, %8, %cst {dimension_numbers = #tpu.dot_dimension_numbers<[1], [1], [0], [0], [0, 0, 1, 0], [], []>} : vector<8x8xbf16>, vector<8x8xbf16>, vector<8x8xf32> -> vector<8x8xf32>
    %cst_2 = arith.constant 0xFF800000 : f32
    %11 = vector.broadcast %cst_2 : f32 to vector<8x8xf32>
    %12 = arith.select %6, %10, %11 : vector<8x8xi1>, vector<8x8xf32>
    %cst_3 = arith.constant dense<0xFF800000> : vector<8xf32>
    %13 = vector.multi_reduction <maximumf>, %12, %cst_3 [1] : vector<8x8xf32> to vector<8xf32>
    %14 = vector.shape_cast %13 : vector<8xf32> to vector<8x1xf32>
    %15 = vector.broadcast %14 : vector<8x1xf32> to vector<8x8xf32>
    %16 = arith.subf %12, %15 : vector<8x8xf32>
    %17 = math.exp %16 : vector<8x8xf32>
    %cst_4 = arith.constant dense<0.000000e+00> : vector<8xf32>
    %18 = vector.multi_reduction <add>, %17, %cst_4 [1] : vector<8x8xf32> to vector<8xf32>
    %19 = vector.shape_cast %18 : vector<8xf32> to vector<8x1xf32>
    %20 = tpu.reciprocal %19 {approx = true} : vector<8x1xf32> -> vector<8x1xf32>
    %21 = vector.broadcast %20 : vector<8x1xf32> to vector<8x8xf32>
    %22 = arith.mulf %17, %21 : vector<8x8xf32>
    %23 = arith.truncf %22 : vector<8x8xf32> to vector<8x8xbf16>
    %cst_5 = arith.constant dense<0.000000e+00> : vector<8x8xf32>
    %24 = tpu.matmul %23, %9, %cst_5 {dimension_numbers = #tpu.dot_dimension_numbers<[1], [0], [0], [1], [0, 0, 1, 1], [], []>} : vector<8x8xbf16>, vector<8x8xbf16>, vector<8x8xf32> -> vector<8x8xf32>
    %25 = arith.truncf %24 : vector<8x8xf32> to vector<8x8xbf16>
    %c0_6 = arith.constant 0 : index
    %c0_7 = arith.constant 0 : index
    %c0_8 = arith.constant 0 : index
    %26 = vector.load %arg2[%c0_6, %c0_7, %c0_8] : memref<1x8x32xbf16, #tpu.memory_space<vmem>>, vector<1x8x8xbf16>
    %27 = vector.shape_cast %26 : vector<1x8x8xbf16> to vector<8x8xbf16>
    %28 = vector.shape_cast %25 : vector<8x8xbf16> to vector<1x8x8xbf16>
    tpu.vector_store %arg2[%c0_6, %c0_7, %c0_8], %28 {strides = array<i32>} : memref<1x8x32xbf16, #tpu.memory_space<vmem>>, vector<1x8x8xbf16>,
    %29 = vector.extract_strided_slice %2 {offsets = [0, 8], sizes = [8, 8], strides = [1, 1]} : vector<8x32xbf16> to vector<8x8xbf16>
    %30 = vector.extract_strided_slice %3 {offsets = [0, 8], sizes = [8, 8], strides = [1, 1]} : vector<8x64xbf16> to vector<8x8xbf16>
    %31 = vector.extract_strided_slice %3 {offsets = [0, 40], sizes = [8, 8], strides = [1, 1]} : vector<8x64xbf16> to vector<8x8xbf16>
    %cst_9 = arith.constant dense<0.000000e+00> : vector<8x8xf32>
    %32 = tpu.matmul %29, %30, %cst_9 {dimension_numbers = #tpu.dot_dimension_numbers<[1], [1], [0], [0], [0, 0, 1, 0], [], []>} : vector<8x8xbf16>, vector<8x8xbf16>, vector<8x8xf32> -> vector<8x8xf32>
    %cst_10 = arith.constant 0xFF800000 : f32
    %33 = vector.broadcast %cst_10 : f32 to vector<8x8xf32>
    %34 = arith.select %6, %32, %33 : vector<8x8xi1>, vector<8x8xf32>
    %cst_11 = arith.constant dense<0xFF800000> : vector<8xf32>
    %35 = vector.multi_reduction <maximumf>, %34, %cst_11 [1] : vector<8x8xf32> to vector<8xf32>
    %36 = vector.shape_cast %35 : vector<8xf32> to vector<8x1xf32>
    %37 = vector.broadcast %36 : vector<8x1xf32> to vector<8x8xf32>
    %38 = arith.subf %34, %37 : vector<8x8xf32>
    %39 = math.exp %38 : vector<8x8xf32>
    %cst_12 = arith.constant dense<0.000000e+00> : vector<8xf32>
    %40 = vector.multi_reduction <add>, %39, %cst_12 [1] : vector<8x8xf32> to vector<8xf32>
    %41 = vector.shape_cast %40 : vector<8xf32> to vector<8x1xf32>
    %42 = tpu.reciprocal %41 {approx = true} : vector<8x1xf32> -> vector<8x1xf32>
    %43 = vector.broadcast %42 : vector<8x1xf32> to vector<8x8xf32>
    %44 = arith.mulf %39, %43 : vector<8x8xf32>
    %45 = arith.truncf %44 : vector<8x8xf32> to vector<8x8xbf16>
    %cst_13 = arith.constant dense<0.000000e+00> : vector<8x8xf32>
    %46 = tpu.matmul %45, %31, %cst_13 {dimension_numbers = #tpu.dot_dimension_numbers<[1], [0], [0], [1], [0, 0, 1, 1], [], []>} : vector<8x8xbf16>, vector<8x8xbf16>, vector<8x8xf32> -> vector<8x8xf32>
    %47 = arith.truncf %46 : vector<8x8xf32> to vector<8x8xbf16>
    %c0_14 = arith.constant 0 : index
    %c0_15 = arith.constant 0 : index
    %c8 = arith.constant 8 : index
    %48 = vector.load %arg2[%c0_14, %c0_15, %c8] : memref<1x8x32xbf16, #tpu.memory_space<vmem>>, vector<1x8x8xbf16>
    %49 = vector.shape_cast %48 : vector<1x8x8xbf16> to vector<8x8xbf16>
    %50 = vector.shape_cast %47 : vector<8x8xbf16> to vector<1x8x8xbf16>
    tpu.vector_store %arg2[%c0_14, %c0_15, %c8], %50 {strides = array<i32>} : memref<1x8x32xbf16, #tpu.memory_space<vmem>>, vector<1x8x8xbf16>,
    %51 = vector.extract_strided_slice %2 {offsets = [0, 16], sizes = [8, 8], strides = [1, 1]} : vector<8x32xbf16> to vector<8x8xbf16>
    %52 = vector.extract_strided_slice %3 {offsets = [0, 16], sizes = [8, 8], strides = [1, 1]} : vector<8x64xbf16> to vector<8x8xbf16>
    %53 = vector.extract_strided_slice %3 {offsets = [0, 48], sizes = [8, 8], strides = [1, 1]} : vector<8x64xbf16> to vector<8x8xbf16>
    %cst_16 = arith.constant dense<0.000000e+00> : vector<8x8xf32>
    %54 = tpu.matmul %51, %52, %cst_16 {dimension_numbers = #tpu.dot_dimension_numbers<[1], [1], [0], [0], [0, 0, 1, 0], [], []>} : vector<8x8xbf16>, vector<8x8xbf16>, vector<8x8xf32> -> vector<8x8xf32>
    %cst_17 = arith.constant 0xFF800000 : f32
    %55 = vector.broadcast %cst_17 : f32 to vector<8x8xf32>
    %56 = arith.select %6, %54, %55 : vector<8x8xi1>, vector<8x8xf32>
    %cst_18 = arith.constant dense<0xFF800000> : vector<8xf32>
    %57 = vector.multi_reduction <maximumf>, %56, %cst_18 [1] : vector<8x8xf32> to vector<8xf32>
    %58 = vector.shape_cast %57 : vector<8xf32> to vector<8x1xf32>
    %59 = vector.broadcast %58 : vector<8x1xf32> to vector<8x8xf32>
    %60 = arith.subf %56, %59 : vector<8x8xf32>
    %61 = math.exp %60 : vector<8x8xf32>
    %cst_19 = arith.constant dense<0.000000e+00> : vector<8xf32>
    %62 = vector.multi_reduction <add>, %61, %cst_19 [1] : vector<8x8xf32> to vector<8xf32>
    %63 = vector.shape_cast %62 : vector<8xf32> to vector<8x1xf32>
    %64 = tpu.reciprocal %63 {approx = true} : vector<8x1xf32> -> vector<8x1xf32>
    %65 = vector.broadcast %64 : vector<8x1xf32> to vector<8x8xf32>
    %66 = arith.mulf %61, %65 : vector<8x8xf32>
    %67 = arith.truncf %66 : vector<8x8xf32> to vector<8x8xbf16>
    %cst_20 = arith.constant dense<0.000000e+00> : vector<8x8xf32>
    %68 = tpu.matmul %67, %53, %cst_20 {dimension_numbers = #tpu.dot_dimension_numbers<[1], [0], [0], [1], [0, 0, 1, 1], [], []>} : vector<8x8xbf16>, vector<8x8xbf16>, vector<8x8xf32> -> vector<8x8xf32>
    %69 = arith.truncf %68 : vector<8x8xf32> to vector<8x8xbf16>
    %c0_21 = arith.constant 0 : index
    %c0_22 = arith.constant 0 : index
    %c16 = arith.constant 16 : index
    %70 = vector.load %arg2[%c0_21, %c0_22, %c16] : memref<1x8x32xbf16, #tpu.memory_space<vmem>>, vector<1x8x8xbf16>
    %71 = vector.shape_cast %70 : vector<1x8x8xbf16> to vector<8x8xbf16>
    %72 = vector.shape_cast %69 : vector<8x8xbf16> to vector<1x8x8xbf16>
    tpu.vector_store %arg2[%c0_21, %c0_22, %c16], %72 {strides = array<i32>} : memref<1x8x32xbf16, #tpu.memory_space<vmem>>, vector<1x8x8xbf16>,
    %73 = vector.extract_strided_slice %2 {offsets = [0, 24], sizes = [8, 8], strides = [1, 1]} : vector<8x32xbf16> to vector<8x8xbf16>
    %74 = vector.extract_strided_slice %3 {offsets = [0, 24], sizes = [8, 8], strides = [1, 1]} : vector<8x64xbf16> to vector<8x8xbf16>
    %75 = vector.extract_strided_slice %3 {offsets = [0, 56], sizes = [8, 8], strides = [1, 1]} : vector<8x64xbf16> to vector<8x8xbf16>
    %cst_23 = arith.constant dense<0.000000e+00> : vector<8x8xf32>
    %76 = tpu.matmul %73, %74, %cst_23 {dimension_numbers = #tpu.dot_dimension_numbers<[1], [1], [0], [0], [0, 0, 1, 0], [], []>} : vector<8x8xbf16>, vector<8x8xbf16>, vector<8x8xf32> -> vector<8x8xf32>
    %cst_24 = arith.constant 0xFF800000 : f32
    %77 = vector.broadcast %cst_24 : f32 to vector<8x8xf32>
    %78 = arith.select %6, %76, %77 : vector<8x8xi1>, vector<8x8xf32>
    %cst_25 = arith.constant dense<0xFF800000> : vector<8xf32>
    %79 = vector.multi_reduction <maximumf>, %78, %cst_25 [1] : vector<8x8xf32> to vector<8xf32>
    %80 = vector.shape_cast %79 : vector<8xf32> to vector<8x1xf32>
    %81 = vector.broadcast %80 : vector<8x1xf32> to vector<8x8xf32>
    %82 = arith.subf %78, %81 : vector<8x8xf32>
    %83 = math.exp %82 : vector<8x8xf32>
    %cst_26 = arith.constant dense<0.000000e+00> : vector<8xf32>
    %84 = vector.multi_reduction <add>, %83, %cst_26 [1] : vector<8x8xf32> to vector<8xf32>
    %85 = vector.shape_cast %84 : vector<8xf32> to vector<8x1xf32>
    %86 = tpu.reciprocal %85 {approx = true} : vector<8x1xf32> -> vector<8x1xf32>
    %87 = vector.broadcast %86 : vector<8x1xf32> to vector<8x8xf32>
    %88 = arith.mulf %83, %87 : vector<8x8xf32>
    %89 = arith.truncf %88 : vector<8x8xf32> to vector<8x8xbf16>
    %cst_27 = arith.constant dense<0.000000e+00> : vector<8x8xf32>
    %90 = tpu.matmul %89, %75, %cst_27 {dimension_numbers = #tpu.dot_dimension_numbers<[1], [0], [0], [1], [0, 0, 1, 1], [], []>} : vector<8x8xbf16>, vector<8x8xbf16>, vector<8x8xf32> -> vector<8x8xf32>
    %91 = arith.truncf %90 : vector<8x8xf32> to vector<8x8xbf16>
    %c0_28 = arith.constant 0 : index
    %c0_29 = arith.constant 0 : index
    %c24 = arith.constant 24 : index
    %92 = vector.load %arg2[%c0_28, %c0_29, %c24] : memref<1x8x32xbf16, #tpu.memory_space<vmem>>, vector<1x8x8xbf16>
    %93 = vector.shape_cast %92 : vector<1x8x8xbf16> to vector<8x8xbf16>
    %94 = vector.shape_cast %91 : vector<8x8xbf16> to vector<1x8x8xbf16>
    tpu.vector_store %arg2[%c0_28, %c0_29, %c24], %94 {strides = array<i32>} : memref<1x8x32xbf16, #tpu.memory_space<vmem>>, vector<1x8x8xbf16>,
    return
  }
  func.func @transform_0(%arg0: i32) -> (i32, i32, i32) {
    %c0_i32 = arith.constant 0 : i32
    %c0_i32_0 = arith.constant 0 : i32
    %c0_i32_1 = arith.constant 0 : i32
    return %arg0, %c0_i32, %c0_i32_0 : i32, i32, i32
  }
  func.func @transform_1(%arg0: i32) -> (i32, i32, i32) {
    %c0_i32 = arith.constant 0 : i32
    %c0_i32_0 = arith.constant 0 : i32
    %c0_i32_1 = arith.constant 0 : i32
    return %arg0, %c0_i32, %c0_i32_0 : i32, i32, i32
  }
}

module attributes {stable_mosaic.version = 11 : i64} {
  func.func @_linear_kernel(%arg0: i32, %arg1: memref<16x32xbf16, #tpu.memory_space<vmem>>, %arg2: memref<32x32xbf16, #tpu.memory_space<vmem>>, %arg3: memref<1x32xf32, #tpu.memory_space<vmem>>, %arg4: memref<16x32xbf16, #tpu.memory_space<vmem>>) attributes {dimension_semantics = [#tpu.dimension_semantics<parallel>], iteration_bounds = array<i64: 1>, scalar_prefetch = 0 : i64, scratch_operands = 0 : i64, tpu.core_type = #tpu.core_type<tc>, window_params = [{transform_indices = @transform_0, window_bounds = array<i64: 16, 32>}, {pipeline_mode = #tpu.pipeline_mode<synchronous>, transform_indices = @transform_1, window_bounds = array<i64: 32, 32>}, {pipeline_mode = #tpu.pipeline_mode<synchronous>, transform_indices = @transform_2, window_bounds = array<i64: 1, 32>}, {transform_indices = @transform_3, window_bounds = array<i64: 16, 32>}]} {
    %c0 = arith.constant 0 : index
    %c0_0 = arith.constant 0 : index
    %0 = vector.load %arg1[%c0, %c0_0] : memref<16x32xbf16, #tpu.memory_space<vmem>>, vector<16x32xbf16>
    %c0_1 = arith.constant 0 : index
    %c0_2 = arith.constant 0 : index
    %1 = vector.load %arg2[%c0_1, %c0_2] : memref<32x32xbf16, #tpu.memory_space<vmem>>, vector<32x32xbf16>
    %cst = arith.constant dense<0.000000e+00> : vector<16x32xf32>
    %2 = tpu.matmul %0, %1, %cst {dimension_numbers = #tpu.dot_dimension_numbers<[1], [0], [0], [1], [0, 0, 1, 1], [], []>} : vector<16x32xbf16>, vector<32x32xbf16>, vector<16x32xf32> -> vector<16x32xf32>
    %c0_3 = arith.constant 0 : index
    %c0_4 = arith.constant 0 : index
    %3 = vector.load %arg3[%c0_3, %c0_4] : memref<1x32xf32, #tpu.memory_space<vmem>>, vector<1x32xf32>
    %4 = vector.broadcast %3 : vector<1x32xf32> to vector<16x32xf32>
    %5 = arith.addf %2, %4 : vector<16x32xf32>
    %6 = arith.truncf %5 : vector<16x32xf32> to vector<16x32xbf16>
    %c0_5 = arith.constant 0 : index
    %c0_6 = arith.constant 0 : index
    %7 = vector.load %arg4[%c0_5, %c0_6] : memref<16x32xbf16, #tpu.memory_space<vmem>>, vector<16x32xbf16>
    tpu.vector_store %arg4[%c0_5, %c0_6], %6 {strides = array<i32>} : memref<16x32xbf16, #tpu.memory_space<vmem>>, vector<16x32xbf16>,
    return
  }
  func.func @transform_0(%arg0: i32) -> (i32, i32) {
    %c0_i32 = arith.constant 0 : i32
    %c0_i32_0 = arith.constant 0 : i32
    return %arg0, %c0_i32 : i32, i32
  }
  func.func @transform_1(%arg0: i32) -> (i32, i32) {
    %c0_i32 = arith.constant 0 : i32
    %c0_i32_0 = arith.constant 0 : i32
    %c0_i32_1 = arith.constant 0 : i32
    return %c0_i32, %c0_i32_0 : i32, i32
  }
  func.func @transform_2(%arg0: i32) -> (i32, i32) {
    %c0_i32 = arith.constant 0 : i32
    %c0_i32_0 = arith.constant 0 : i32
    %c0_i32_1 = arith.constant 0 : i32
    return %c0_i32, %c0_i32_0 : i32, i32
  }
  func.func @transform_3(%arg0: i32) -> (i32, i32) {
    %c0_i32 = arith.constant 0 : i32
    %c0_i32_0 = arith.constant 0 : i32
    return %arg0, %c0_i32 : i32, i32
  }
}

module attributes {stable_mosaic.version = 11 : i64} {
  func.func @_cross_attn_kernel(%arg0: i32, %arg1: memref<1x8x32xbf16, #tpu.memory_space<vmem>>, %arg2: memref<1x10x64xbf16, #tpu.memory_space<vmem>>, %arg3: memref<1x8x32xbf16, #tpu.memory_space<vmem>>) attributes {dimension_semantics = [#tpu.dimension_semantics<parallel>], iteration_bounds = array<i64: 2>, scalar_prefetch = 0 : i64, scratch_operands = 0 : i64, tpu.core_type = #tpu.core_type<tc>, window_params = [{transform_indices = @transform_0, window_bounds = array<i64: 1, 8, 32>}, {transform_indices = @transform_1, window_bounds = array<i64: 1, 10, 64>}, {transform_indices = @transform_2, window_bounds = array<i64: 1, 8, 32>}]} {
    %c0 = arith.constant 0 : index
    %c0_0 = arith.constant 0 : index
    %c0_1 = arith.constant 0 : index
    %0 = vector.load %arg1[%c0, %c0_0, %c0_1] : memref<1x8x32xbf16, #tpu.memory_space<vmem>>, vector<1x8x32xbf16>
    %1 = vector.shape_cast %0 : vector<1x8x32xbf16> to vector<8x32xbf16>
    %c0_2 = arith.constant 0 : index
    %c0_3 = arith.constant 0 : index
    %c0_4 = arith.constant 0 : index
    %2 = vector.load %arg2[%c0_2, %c0_3, %c0_4] : memref<1x10x64xbf16, #tpu.memory_space<vmem>>, vector<1x10x64xbf16>
    %3 = vector.shape_cast %2 : vector<1x10x64xbf16> to vector<10x64xbf16>
    %4 = vector.extract_strided_slice %1 {offsets = [0, 0], sizes = [8, 8], strides = [1, 1]} : vector<8x32xbf16> to vector<8x8xbf16>
    %5 = vector.extract_strided_slice %3 {offsets = [0, 0], sizes = [10, 8], strides = [1, 1]} : vector<10x64xbf16> to vector<10x8xbf16>
    %6 = vector.extract_strided_slice %3 {offsets = [0, 32], sizes = [10, 8], strides = [1, 1]} : vector<10x64xbf16> to vector<10x8xbf16>
    %cst = arith.constant dense<0.000000e+00> : vector<8x10xf32>
    %7 = tpu.matmul %4, %5, %cst {dimension_numbers = #tpu.dot_dimension_numbers<[1], [1], [0], [0], [0, 0, 1, 0], [], []>} : vector<8x8xbf16>, vector<10x8xbf16>, vector<8x10xf32> -> vector<8x10xf32>
    %cst_5 = arith.constant dense<0xFF800000> : vector<8xf32>
    %8 = vector.multi_reduction <maximumf>, %7, %cst_5 [1] : vector<8x10xf32> to vector<8xf32>
    %9 = vector.shape_cast %8 : vector<8xf32> to vector<8x1xf32>
    %10 = vector.broadcast %9 : vector<8x1xf32> to vector<8x10xf32>
    %11 = arith.subf %7, %10 : vector<8x10xf32>
    %12 = math.exp %11 : vector<8x10xf32>
    %cst_6 = arith.constant dense<0.000000e+00> : vector<8xf32>
    %13 = vector.multi_reduction <add>, %12, %cst_6 [1] : vector<8x10xf32> to vector<8xf32>
    %14 = vector.shape_cast %13 : vector<8xf32> to vector<8x1xf32>
    %15 = tpu.reciprocal %14 {approx = true} : vector<8x1xf32> -> vector<8x1xf32>
    %16 = vector.broadcast %15 : vector<8x1xf32> to vector<8x10xf32>
    %17 = arith.mulf %12, %16 : vector<8x10xf32>
    %18 = arith.truncf %17 : vector<8x10xf32> to vector<8x10xbf16>
    %cst_7 = arith.constant dense<0.000000e+00> : vector<8x8xf32>
    %19 = tpu.matmul %18, %6, %cst_7 {dimension_numbers = #tpu.dot_dimension_numbers<[1], [0], [0], [1], [0, 0, 1, 1], [], []>} : vector<8x10xbf16>, vector<10x8xbf16>, vector<8x8xf32> -> vector<8x8xf32>
    %20 = arith.truncf %19 : vector<8x8xf32> to vector<8x8xbf16>
    %c0_8 = arith.constant 0 : index
    %c0_9 = arith.constant 0 : index
    %c0_10 = arith.constant 0 : index
    %21 = vector.load %arg3[%c0_8, %c0_9, %c0_10] : memref<1x8x32xbf16, #tpu.memory_space<vmem>>, vector<1x8x8xbf16>
    %22 = vector.shape_cast %21 : vector<1x8x8xbf16> to vector<8x8xbf16>
    %23 = vector.shape_cast %20 : vector<8x8xbf16> to vector<1x8x8xbf16>
    tpu.vector_store %arg3[%c0_8, %c0_9, %c0_10], %23 {strides = array<i32>} : memref<1x8x32xbf16, #tpu.memory_space<vmem>>, vector<1x8x8xbf16>,
    %24 = vector.extract_strided_slice %1 {offsets = [0, 8], sizes = [8, 8], strides = [1, 1]} : vector<8x32xbf16> to vector<8x8xbf16>
    %25 = vector.extract_strided_slice %3 {offsets = [0, 8], sizes = [10, 8], strides = [1, 1]} : vector<10x64xbf16> to vector<10x8xbf16>
    %26 = vector.extract_strided_slice %3 {offsets = [0, 40], sizes = [10, 8], strides = [1, 1]} : vector<10x64xbf16> to vector<10x8xbf16>
    %cst_11 = arith.constant dense<0.000000e+00> : vector<8x10xf32>
    %27 = tpu.matmul %24, %25, %cst_11 {dimension_numbers = #tpu.dot_dimension_numbers<[1], [1], [0], [0], [0, 0, 1, 0], [], []>} : vector<8x8xbf16>, vector<10x8xbf16>, vector<8x10xf32> -> vector<8x10xf32>
    %cst_12 = arith.constant dense<0xFF800000> : vector<8xf32>
    %28 = vector.multi_reduction <maximumf>, %27, %cst_12 [1] : vector<8x10xf32> to vector<8xf32>
    %29 = vector.shape_cast %28 : vector<8xf32> to vector<8x1xf32>
    %30 = vector.broadcast %29 : vector<8x1xf32> to vector<8x10xf32>
    %31 = arith.subf %27, %30 : vector<8x10xf32>
    %32 = math.exp %31 : vector<8x10xf32>
    %cst_13 = arith.constant dense<0.000000e+00> : vector<8xf32>
    %33 = vector.multi_reduction <add>, %32, %cst_13 [1] : vector<8x10xf32> to vector<8xf32>
    %34 = vector.shape_cast %33 : vector<8xf32> to vector<8x1xf32>
    %35 = tpu.reciprocal %34 {approx = true} : vector<8x1xf32> -> vector<8x1xf32>
    %36 = vector.broadcast %35 : vector<8x1xf32> to vector<8x10xf32>
    %37 = arith.mulf %32, %36 : vector<8x10xf32>
    %38 = arith.truncf %37 : vector<8x10xf32> to vector<8x10xbf16>
    %cst_14 = arith.constant dense<0.000000e+00> : vector<8x8xf32>
    %39 = tpu.matmul %38, %26, %cst_14 {dimension_numbers = #tpu.dot_dimension_numbers<[1], [0], [0], [1], [0, 0, 1, 1], [], []>} : vector<8x10xbf16>, vector<10x8xbf16>, vector<8x8xf32> -> vector<8x8xf32>
    %40 = arith.truncf %39 : vector<8x8xf32> to vector<8x8xbf16>
    %c0_15 = arith.constant 0 : index
    %c0_16 = arith.constant 0 : index
    %c8 = arith.constant 8 : index
    %41 = vector.load %arg3[%c0_15, %c0_16, %c8] : memref<1x8x32xbf16, #tpu.memory_space<vmem>>, vector<1x8x8xbf16>
    %42 = vector.shape_cast %41 : vector<1x8x8xbf16> to vector<8x8xbf16>
    %43 = vector.shape_cast %40 : vector<8x8xbf16> to vector<1x8x8xbf16>
    tpu.vector_store %arg3[%c0_15, %c0_16, %c8], %43 {strides = array<i32>} : memref<1x8x32xbf16, #tpu.memory_space<vmem>>, vector<1x8x8xbf16>,
    %44 = vector.extract_strided_slice %1 {offsets = [0, 16], sizes = [8, 8], strides = [1, 1]} : vector<8x32xbf16> to vector<8x8xbf16>
    %45 = vector.extract_strided_slice %3 {offsets = [0, 16], sizes = [10, 8], strides = [1, 1]} : vector<10x64xbf16> to vector<10x8xbf16>
    %46 = vector.extract_strided_slice %3 {offsets = [0, 48], sizes = [10, 8], strides = [1, 1]} : vector<10x64xbf16> to vector<10x8xbf16>
    %cst_17 = arith.constant dense<0.000000e+00> : vector<8x10xf32>
    %47 = tpu.matmul %44, %45, %cst_17 {dimension_numbers = #tpu.dot_dimension_numbers<[1], [1], [0], [0], [0, 0, 1, 0], [], []>} : vector<8x8xbf16>, vector<10x8xbf16>, vector<8x10xf32> -> vector<8x10xf32>
    %cst_18 = arith.constant dense<0xFF800000> : vector<8xf32>
    %48 = vector.multi_reduction <maximumf>, %47, %cst_18 [1] : vector<8x10xf32> to vector<8xf32>
    %49 = vector.shape_cast %48 : vector<8xf32> to vector<8x1xf32>
    %50 = vector.broadcast %49 : vector<8x1xf32> to vector<8x10xf32>
    %51 = arith.subf %47, %50 : vector<8x10xf32>
    %52 = math.exp %51 : vector<8x10xf32>
    %cst_19 = arith.constant dense<0.000000e+00> : vector<8xf32>
    %53 = vector.multi_reduction <add>, %52, %cst_19 [1] : vector<8x10xf32> to vector<8xf32>
    %54 = vector.shape_cast %53 : vector<8xf32> to vector<8x1xf32>
    %55 = tpu.reciprocal %54 {approx = true} : vector<8x1xf32> -> vector<8x1xf32>
    %56 = vector.broadcast %55 : vector<8x1xf32> to vector<8x10xf32>
    %57 = arith.mulf %52, %56 : vector<8x10xf32>
    %58 = arith.truncf %57 : vector<8x10xf32> to vector<8x10xbf16>
    %cst_20 = arith.constant dense<0.000000e+00> : vector<8x8xf32>
    %59 = tpu.matmul %58, %46, %cst_20 {dimension_numbers = #tpu.dot_dimension_numbers<[1], [0], [0], [1], [0, 0, 1, 1], [], []>} : vector<8x10xbf16>, vector<10x8xbf16>, vector<8x8xf32> -> vector<8x8xf32>
    %60 = arith.truncf %59 : vector<8x8xf32> to vector<8x8xbf16>
    %c0_21 = arith.constant 0 : index
    %c0_22 = arith.constant 0 : index
    %c16 = arith.constant 16 : index
    %61 = vector.load %arg3[%c0_21, %c0_22, %c16] : memref<1x8x32xbf16, #tpu.memory_space<vmem>>, vector<1x8x8xbf16>
    %62 = vector.shape_cast %61 : vector<1x8x8xbf16> to vector<8x8xbf16>
    %63 = vector.shape_cast %60 : vector<8x8xbf16> to vector<1x8x8xbf16>
    tpu.vector_store %arg3[%c0_21, %c0_22, %c16], %63 {strides = array<i32>} : memref<1x8x32xbf16, #tpu.memory_space<vmem>>, vector<1x8x8xbf16>,
    %64 = vector.extract_strided_slice %1 {offsets = [0, 24], sizes = [8, 8], strides = [1, 1]} : vector<8x32xbf16> to vector<8x8xbf16>
    %65 = vector.extract_strided_slice %3 {offsets = [0, 24], sizes = [10, 8], strides = [1, 1]} : vector<10x64xbf16> to vector<10x8xbf16>
    %66 = vector.extract_strided_slice %3 {offsets = [0, 56], sizes = [10, 8], strides = [1, 1]} : vector<10x64xbf16> to vector<10x8xbf16>
    %cst_23 = arith.constant dense<0.000000e+00> : vector<8x10xf32>
    %67 = tpu.matmul %64, %65, %cst_23 {dimension_numbers = #tpu.dot_dimension_numbers<[1], [1], [0], [0], [0, 0, 1, 0], [], []>} : vector<8x8xbf16>, vector<10x8xbf16>, vector<8x10xf32> -> vector<8x10xf32>
    %cst_24 = arith.constant dense<0xFF800000> : vector<8xf32>
    %68 = vector.multi_reduction <maximumf>, %67, %cst_24 [1] : vector<8x10xf32> to vector<8xf32>
    %69 = vector.shape_cast %68 : vector<8xf32> to vector<8x1xf32>
    %70 = vector.broadcast %69 : vector<8x1xf32> to vector<8x10xf32>
    %71 = arith.subf %67, %70 : vector<8x10xf32>
    %72 = math.exp %71 : vector<8x10xf32>
    %cst_25 = arith.constant dense<0.000000e+00> : vector<8xf32>
    %73 = vector.multi_reduction <add>, %72, %cst_25 [1] : vector<8x10xf32> to vector<8xf32>
    %74 = vector.shape_cast %73 : vector<8xf32> to vector<8x1xf32>
    %75 = tpu.reciprocal %74 {approx = true} : vector<8x1xf32> -> vector<8x1xf32>
    %76 = vector.broadcast %75 : vector<8x1xf32> to vector<8x10xf32>
    %77 = arith.mulf %72, %76 : vector<8x10xf32>
    %78 = arith.truncf %77 : vector<8x10xf32> to vector<8x10xbf16>
    %cst_26 = arith.constant dense<0.000000e+00> : vector<8x8xf32>
    %79 = tpu.matmul %78, %66, %cst_26 {dimension_numbers = #tpu.dot_dimension_numbers<[1], [0], [0], [1], [0, 0, 1, 1], [], []>} : vector<8x10xbf16>, vector<10x8xbf16>, vector<8x8xf32> -> vector<8x8xf32>
    %80 = arith.truncf %79 : vector<8x8xf32> to vector<8x8xbf16>
    %c0_27 = arith.constant 0 : index
    %c0_28 = arith.constant 0 : index
    %c24 = arith.constant 24 : index
    %81 = vector.load %arg3[%c0_27, %c0_28, %c24] : memref<1x8x32xbf16, #tpu.memory_space<vmem>>, vector<1x8x8xbf16>
    %82 = vector.shape_cast %81 : vector<1x8x8xbf16> to vector<8x8xbf16>
    %83 = vector.shape_cast %80 : vector<8x8xbf16> to vector<1x8x8xbf16>
    tpu.vector_store %arg3[%c0_27, %c0_28, %c24], %83 {strides = array<i32>} : memref<1x8x32xbf16, #tpu.memory_space<vmem>>, vector<1x8x8xbf16>,
    return
  }
  func.func @transform_0(%arg0: i32) -> (i32, i32, i32) {
    %c0_i32 = arith.constant 0 : i32
    %c0_i32_0 = arith.constant 0 : i32
    %c0_i32_1 = arith.constant 0 : i32
    return %arg0, %c0_i32, %c0_i32_0 : i32, i32, i32
  }
  func.func @transform_1(%arg0: i32) -> (i32, i32, i32) {
    %c0_i32 = arith.constant 0 : i32
    %c0_i32_0 = arith.constant 0 : i32
    %c0_i32_1 = arith.constant 0 : i32
    return %arg0, %c0_i32, %c0_i32_0 : i32, i32, i32
  }
  func.func @transform_2(%arg0: i32) -> (i32, i32, i32) {
    %c0_i32 = arith.constant 0 : i32
    %c0_i32_0 = arith.constant 0 : i32
    %c0_i32_1 = arith.constant 0 : i32
    return %arg0, %c0_i32, %c0_i32_0 : i32, i32, i32
  }
}

module attributes {stable_mosaic.version = 11 : i64} {
  func.func @_ffn_res_ln_kernel(%arg0: i32, %arg1: memref<16x32xbf16, #tpu.memory_space<vmem>>, %arg2: memref<32x64xbf16, #tpu.memory_space<vmem>>, %arg3: memref<1x64xf32, #tpu.memory_space<vmem>>, %arg4: memref<64x32xbf16, #tpu.memory_space<vmem>>, %arg5: memref<1x32xf32, #tpu.memory_space<vmem>>, %arg6: memref<1x32xf32, #tpu.memory_space<vmem>>, %arg7: memref<1x32xf32, #tpu.memory_space<vmem>>, %arg8: memref<16x32xbf16, #tpu.memory_space<vmem>>) attributes {dimension_semantics = [#tpu.dimension_semantics<parallel>], iteration_bounds = array<i64: 1>, scalar_prefetch = 0 : i64, scratch_operands = 0 : i64, tpu.core_type = #tpu.core_type<tc>, window_params = [{transform_indices = @transform_0, window_bounds = array<i64: 16, 32>}, {pipeline_mode = #tpu.pipeline_mode<synchronous>, transform_indices = @transform_1, window_bounds = array<i64: 32, 64>}, {pipeline_mode = #tpu.pipeline_mode<synchronous>, transform_indices = @transform_2, window_bounds = array<i64: 1, 64>}, {pipeline_mode = #tpu.pipeline_mode<synchronous>, transform_indices = @transform_3, window_bounds = array<i64: 64, 32>}, {pipeline_mode = #tpu.pipeline_mode<synchronous>, transform_indices = @transform_4, window_bounds = array<i64: 1, 32>}, {pipeline_mode = #tpu.pipeline_mode<synchronous>, transform_indices = @transform_5, window_bounds = array<i64: 1, 32>}, {pipeline_mode = #tpu.pipeline_mode<synchronous>, transform_indices = @transform_6, window_bounds = array<i64: 1, 32>}, {transform_indices = @transform_7, window_bounds = array<i64: 16, 32>}]} {
    %c0 = arith.constant 0 : index
    %c0_0 = arith.constant 0 : index
    %0 = vector.load %arg1[%c0, %c0_0] : memref<16x32xbf16, #tpu.memory_space<vmem>>, vector<16x32xbf16>
    %1 = arith.extf %0 : vector<16x32xbf16> to vector<16x32xf32>
    %cst = arith.constant 0.000000e+00 : f32
    %2 = vector.broadcast %cst : f32 to vector<16x32xf32>
    %c0_1 = arith.constant 0 : index
    %c0_2 = arith.constant 0 : index
    %3 = vector.load %arg2[%c0_1, %c0_2] : memref<32x64xbf16, #tpu.memory_space<vmem>>, vector<32x64xbf16>
    %c0_3 = arith.constant 0 : index
    %c0_4 = arith.constant 0 : index
    %4 = vector.load %arg3[%c0_3, %c0_4] : memref<1x64xf32, #tpu.memory_space<vmem>>, vector<1x64xf32>
    %cst_5 = arith.constant dense<0.000000e+00> : vector<16x64xf32>
    %5 = tpu.matmul %0, %3, %cst_5 {dimension_numbers = #tpu.dot_dimension_numbers<[1], [0], [0], [1], [0, 0, 1, 1], [], []>} : vector<16x32xbf16>, vector<32x64xbf16>, vector<16x64xf32> -> vector<16x64xf32>
    %6 = vector.broadcast %4 : vector<1x64xf32> to vector<16x64xf32>
    %7 = arith.addf %5, %6 : vector<16x64xf32>
    %cst_6 = arith.constant 0.000000e+00 : f32
    %8 = vector.broadcast %cst_6 : f32 to vector<16x64xf32>
    %9 = arith.maximumf %7, %8 : vector<16x64xf32>
    %c0_7 = arith.constant 0 : index
    %c0_8 = arith.constant 0 : index
    %10 = vector.load %arg4[%c0_7, %c0_8] : memref<64x32xbf16, #tpu.memory_space<vmem>>, vector<64x32xbf16>
    %11 = arith.truncf %9 : vector<16x64xf32> to vector<16x64xbf16>
    %cst_9 = arith.constant dense<0.000000e+00> : vector<16x32xf32>
    %12 = tpu.matmul %11, %10, %cst_9 {dimension_numbers = #tpu.dot_dimension_numbers<[1], [0], [0], [1], [0, 0, 1, 1], [], []>} : vector<16x64xbf16>, vector<64x32xbf16>, vector<16x32xf32> -> vector<16x32xf32>
    %13 = arith.addf %2, %12 : vector<16x32xf32>
    %14 = arith.addf %1, %13 : vector<16x32xf32>
    %c0_10 = arith.constant 0 : index
    %c0_11 = arith.constant 0 : index
    %15 = vector.load %arg5[%c0_10, %c0_11] : memref<1x32xf32, #tpu.memory_space<vmem>>, vector<1x32xf32>
    %16 = vector.broadcast %15 : vector<1x32xf32> to vector<16x32xf32>
    %17 = arith.addf %14, %16 : vector<16x32xf32>
    %cst_12 = arith.constant dense<0.000000e+00> : vector<16xf32>
    %18 = vector.multi_reduction <add>, %17, %cst_12 [1] : vector<16x32xf32> to vector<16xf32>
    %19 = vector.shape_cast %18 : vector<16xf32> to vector<16x1xf32>
    %cst_13 = arith.constant 3.200000e+01 : f32
    %20 = vector.broadcast %cst_13 : f32 to vector<16x1xf32>
    %21 = arith.divf %19, %20 : vector<16x1xf32>
    %22 = vector.broadcast %21 : vector<16x1xf32> to vector<16x32xf32>
    %23 = arith.subf %17, %22 : vector<16x32xf32>
    %24 = arith.mulf %23, %23 : vector<16x32xf32>
    %cst_14 = arith.constant dense<0.000000e+00> : vector<16xf32>
    %25 = vector.multi_reduction <add>, %24, %cst_14 [1] : vector<16x32xf32> to vector<16xf32>
    %26 = vector.shape_cast %25 : vector<16xf32> to vector<16x1xf32>
    %cst_15 = arith.constant 3.200000e+01 : f32
    %27 = vector.broadcast %cst_15 : f32 to vector<16x1xf32>
    %28 = arith.divf %26, %27 : vector<16x1xf32>
    %29 = vector.broadcast %21 : vector<16x1xf32> to vector<16x32xf32>
    %30 = arith.subf %17, %29 : vector<16x32xf32>
    %cst_16 = arith.constant 9.99999974E-6 : f32
    %31 = vector.broadcast %cst_16 : f32 to vector<16x1xf32>
    %32 = arith.addf %28, %31 : vector<16x1xf32>
    %33 = math.rsqrt %32 : vector<16x1xf32>
    %34 = vector.broadcast %33 : vector<16x1xf32> to vector<16x32xf32>
    %35 = arith.mulf %30, %34 : vector<16x32xf32>
    %c0_17 = arith.constant 0 : index
    %c0_18 = arith.constant 0 : index
    %36 = vector.load %arg6[%c0_17, %c0_18] : memref<1x32xf32, #tpu.memory_space<vmem>>, vector<1x32xf32>
    %37 = vector.broadcast %36 : vector<1x32xf32> to vector<16x32xf32>
    %38 = arith.mulf %35, %37 : vector<16x32xf32>
    %c0_19 = arith.constant 0 : index
    %c0_20 = arith.constant 0 : index
    %39 = vector.load %arg7[%c0_19, %c0_20] : memref<1x32xf32, #tpu.memory_space<vmem>>, vector<1x32xf32>
    %40 = vector.broadcast %39 : vector<1x32xf32> to vector<16x32xf32>
    %41 = arith.addf %38, %40 : vector<16x32xf32>
    %42 = arith.truncf %41 : vector<16x32xf32> to vector<16x32xbf16>
    %c0_21 = arith.constant 0 : index
    %c0_22 = arith.constant 0 : index
    %43 = vector.load %arg8[%c0_21, %c0_22] : memref<16x32xbf16, #tpu.memory_space<vmem>>, vector<16x32xbf16>
    tpu.vector_store %arg8[%c0_21, %c0_22], %42 {strides = array<i32>} : memref<16x32xbf16, #tpu.memory_space<vmem>>, vector<16x32xbf16>,
    return
  }
  func.func @transform_0(%arg0: i32) -> (i32, i32) {
    %c0_i32 = arith.constant 0 : i32
    %c0_i32_0 = arith.constant 0 : i32
    return %arg0, %c0_i32 : i32, i32
  }
  func.func @transform_1(%arg0: i32) -> (i32, i32) {
    %c0_i32 = arith.constant 0 : i32
    %c0_i32_0 = arith.constant 0 : i32
    %c0_i32_1 = arith.constant 0 : i32
    return %c0_i32, %c0_i32_0 : i32, i32
  }
  func.func @transform_2(%arg0: i32) -> (i32, i32) {
    %c0_i32 = arith.constant 0 : i32
    %c0_i32_0 = arith.constant 0 : i32
    %c0_i32_1 = arith.constant 0 : i32
    return %c0_i32, %c0_i32_0 : i32, i32
  }
  func.func @transform_3(%arg0: i32) -> (i32, i32) {
    %c0_i32 = arith.constant 0 : i32
    %c0_i32_0 = arith.constant 0 : i32
    %c0_i32_1 = arith.constant 0 : i32
    return %c0_i32, %c0_i32_0 : i32, i32
  }
  func.func @transform_4(%arg0: i32) -> (i32, i32) {
    %c0_i32 = arith.constant 0 : i32
    %c0_i32_0 = arith.constant 0 : i32
    %c0_i32_1 = arith.constant 0 : i32
    return %c0_i32, %c0_i32_0 : i32, i32
  }
  func.func @transform_5(%arg0: i32) -> (i32, i32) {
    %c0_i32 = arith.constant 0 : i32
    %c0_i32_0 = arith.constant 0 : i32
    %c0_i32_1 = arith.constant 0 : i32
    return %c0_i32, %c0_i32_0 : i32, i32
  }
  func.func @transform_6(%arg0: i32) -> (i32, i32) {
    %c0_i32 = arith.constant 0 : i32
    %c0_i32_0 = arith.constant 0 : i32
    %c0_i32_1 = arith.constant 0 : i32
    return %c0_i32, %c0_i32_0 : i32, i32
  }
  func.func @transform_7(%arg0: i32) -> (i32, i32) {
    %c0_i32 = arith.constant 0 : i32
    %c0_i32_0 = arith.constant 0 : i32
    return %arg0, %c0_i32 : i32, i32
  }
}

module attributes {stable_mosaic.version = 11 : i64} {
  func.func @_ln_kernel(%arg0: i32, %arg1: memref<16x32xbf16, #tpu.memory_space<vmem>>, %arg2: memref<1x32xf32, #tpu.memory_space<vmem>>, %arg3: memref<1x32xf32, #tpu.memory_space<vmem>>, %arg4: memref<16x32xbf16, #tpu.memory_space<vmem>>) attributes {dimension_semantics = [#tpu.dimension_semantics<parallel>], iteration_bounds = array<i64: 1>, scalar_prefetch = 0 : i64, scratch_operands = 0 : i64, tpu.core_type = #tpu.core_type<tc>, window_params = [{transform_indices = @transform_0, window_bounds = array<i64: 16, 32>}, {pipeline_mode = #tpu.pipeline_mode<synchronous>, transform_indices = @transform_1, window_bounds = array<i64: 1, 32>}, {pipeline_mode = #tpu.pipeline_mode<synchronous>, transform_indices = @transform_2, window_bounds = array<i64: 1, 32>}, {transform_indices = @transform_3, window_bounds = array<i64: 16, 32>}]} {
    %c0 = arith.constant 0 : index
    %c0_0 = arith.constant 0 : index
    %0 = vector.load %arg1[%c0, %c0_0] : memref<16x32xbf16, #tpu.memory_space<vmem>>, vector<16x32xbf16>
    %1 = arith.extf %0 : vector<16x32xbf16> to vector<16x32xf32>
    %cst = arith.constant dense<0.000000e+00> : vector<16xf32>
    %2 = vector.multi_reduction <add>, %1, %cst [1] : vector<16x32xf32> to vector<16xf32>
    %3 = vector.shape_cast %2 : vector<16xf32> to vector<16x1xf32>
    %cst_1 = arith.constant 3.200000e+01 : f32
    %4 = vector.broadcast %cst_1 : f32 to vector<16x1xf32>
    %5 = arith.divf %3, %4 : vector<16x1xf32>
    %6 = vector.broadcast %5 : vector<16x1xf32> to vector<16x32xf32>
    %7 = arith.subf %1, %6 : vector<16x32xf32>
    %8 = arith.mulf %7, %7 : vector<16x32xf32>
    %cst_2 = arith.constant dense<0.000000e+00> : vector<16xf32>
    %9 = vector.multi_reduction <add>, %8, %cst_2 [1] : vector<16x32xf32> to vector<16xf32>
    %10 = vector.shape_cast %9 : vector<16xf32> to vector<16x1xf32>
    %cst_3 = arith.constant 3.200000e+01 : f32
    %11 = vector.broadcast %cst_3 : f32 to vector<16x1xf32>
    %12 = arith.divf %10, %11 : vector<16x1xf32>
    %13 = vector.broadcast %5 : vector<16x1xf32> to vector<16x32xf32>
    %14 = arith.subf %1, %13 : vector<16x32xf32>
    %cst_4 = arith.constant 9.99999974E-6 : f32
    %15 = vector.broadcast %cst_4 : f32 to vector<16x1xf32>
    %16 = arith.addf %12, %15 : vector<16x1xf32>
    %17 = math.rsqrt %16 : vector<16x1xf32>
    %18 = vector.broadcast %17 : vector<16x1xf32> to vector<16x32xf32>
    %19 = arith.mulf %14, %18 : vector<16x32xf32>
    %c0_5 = arith.constant 0 : index
    %c0_6 = arith.constant 0 : index
    %20 = vector.load %arg2[%c0_5, %c0_6] : memref<1x32xf32, #tpu.memory_space<vmem>>, vector<1x32xf32>
    %21 = vector.broadcast %20 : vector<1x32xf32> to vector<16x32xf32>
    %22 = arith.mulf %19, %21 : vector<16x32xf32>
    %c0_7 = arith.constant 0 : index
    %c0_8 = arith.constant 0 : index
    %23 = vector.load %arg3[%c0_7, %c0_8] : memref<1x32xf32, #tpu.memory_space<vmem>>, vector<1x32xf32>
    %24 = vector.broadcast %23 : vector<1x32xf32> to vector<16x32xf32>
    %25 = arith.addf %22, %24 : vector<16x32xf32>
    %26 = arith.truncf %25 : vector<16x32xf32> to vector<16x32xbf16>
    %c0_9 = arith.constant 0 : index
    %c0_10 = arith.constant 0 : index
    %27 = vector.load %arg4[%c0_9, %c0_10] : memref<16x32xbf16, #tpu.memory_space<vmem>>, vector<16x32xbf16>
    tpu.vector_store %arg4[%c0_9, %c0_10], %26 {strides = array<i32>} : memref<16x32xbf16, #tpu.memory_space<vmem>>, vector<16x32xbf16>,
    return
  }
  func.func @transform_0(%arg0: i32) -> (i32, i32) {
    %c0_i32 = arith.constant 0 : i32
    %c0_i32_0 = arith.constant 0 : i32
    return %arg0, %c0_i32 : i32, i32
  }
  func.func @transform_1(%arg0: i32) -> (i32, i32) {
    %c0_i32 = arith.constant 0 : i32
    %c0_i32_0 = arith.constant 0 : i32
    %c0_i32_1 = arith.constant 0 : i32
    return %c0_i32, %c0_i32_0 : i32, i32
  }
  func.func @transform_2(%arg0: i32) -> (i32, i32) {
    %c0_i32 = arith.constant 0 : i32
    %c0_i32_0 = arith.constant 0 : i32
    %c0_i32_1 = arith.constant 0 : i32
    return %c0_i32, %c0_i32_0 : i32, i32
  }
  func.func @transform_3(%arg0: i32) -> (i32, i32) {
    %c0_i32 = arith.constant 0 : i32
    %c0_i32_0 = arith.constant 0 : i32
    return %arg0, %c0_i32 : i32, i32
  }
}

module attributes {stable_mosaic.version = 11 : i64} {
  func.func @_proj_softmax_kernel(%arg0: i32, %arg1: memref<16x32xbf16, #tpu.memory_space<vmem>>, %arg2: memref<32x32xbf16, #tpu.memory_space<vmem>>, %arg3: memref<1x32xf32, #tpu.memory_space<vmem>>, %arg4: memref<16x32xf32, #tpu.memory_space<vmem>>) attributes {dimension_semantics = [#tpu.dimension_semantics<parallel>], iteration_bounds = array<i64: 1>, scalar_prefetch = 0 : i64, scratch_operands = 0 : i64, tpu.core_type = #tpu.core_type<tc>, window_params = [{transform_indices = @transform_0, window_bounds = array<i64: 16, 32>}, {pipeline_mode = #tpu.pipeline_mode<synchronous>, transform_indices = @transform_1, window_bounds = array<i64: 32, 32>}, {pipeline_mode = #tpu.pipeline_mode<synchronous>, transform_indices = @transform_2, window_bounds = array<i64: 1, 32>}, {transform_indices = @transform_3, window_bounds = array<i64: 16, 32>}]} {
    %c0 = arith.constant 0 : index
    %c0_0 = arith.constant 0 : index
    %0 = vector.load %arg1[%c0, %c0_0] : memref<16x32xbf16, #tpu.memory_space<vmem>>, vector<16x32xbf16>
    %c0_1 = arith.constant 0 : index
    %c0_2 = arith.constant 0 : index
    %1 = vector.load %arg2[%c0_1, %c0_2] : memref<32x32xbf16, #tpu.memory_space<vmem>>, vector<32x32xbf16>
    %cst = arith.constant dense<0.000000e+00> : vector<16x32xf32>
    %2 = tpu.matmul %0, %1, %cst {dimension_numbers = #tpu.dot_dimension_numbers<[1], [0], [0], [1], [0, 0, 1, 1], [], []>} : vector<16x32xbf16>, vector<32x32xbf16>, vector<16x32xf32> -> vector<16x32xf32>
    %c0_3 = arith.constant 0 : index
    %c0_4 = arith.constant 0 : index
    %3 = vector.load %arg3[%c0_3, %c0_4] : memref<1x32xf32, #tpu.memory_space<vmem>>, vector<1x32xf32>
    %4 = vector.broadcast %3 : vector<1x32xf32> to vector<16x32xf32>
    %5 = arith.addf %2, %4 : vector<16x32xf32>
    %cst_5 = arith.constant dense<0xFF800000> : vector<16xf32>
    %6 = vector.multi_reduction <maximumf>, %5, %cst_5 [1] : vector<16x32xf32> to vector<16xf32>
    %7 = vector.shape_cast %6 : vector<16xf32> to vector<16x1xf32>
    %8 = vector.broadcast %7 : vector<16x1xf32> to vector<16x32xf32>
    %9 = arith.subf %5, %8 : vector<16x32xf32>
    %10 = math.exp %9 : vector<16x32xf32>
    %cst_6 = arith.constant dense<0.000000e+00> : vector<16xf32>
    %11 = vector.multi_reduction <add>, %10, %cst_6 [1] : vector<16x32xf32> to vector<16xf32>
    %12 = vector.shape_cast %11 : vector<16xf32> to vector<16x1xf32>
    %13 = vector.broadcast %12 : vector<16x1xf32> to vector<16x32xf32>
    %14 = arith.divf %10, %13 : vector<16x32xf32>
    %c0_7 = arith.constant 0 : index
    %c0_8 = arith.constant 0 : index
    %15 = vector.load %arg4[%c0_7, %c0_8] : memref<16x32xf32, #tpu.memory_space<vmem>>, vector<16x32xf32>
    tpu.vector_store %arg4[%c0_7, %c0_8], %14 {strides = array<i32>} : memref<16x32xf32, #tpu.memory_space<vmem>>, vector<16x32xf32>,
    return
  }
  func.func @transform_0(%arg0: i32) -> (i32, i32) {
    %c0_i32 = arith.constant 0 : i32
    %c0_i32_0 = arith.constant 0 : i32
    return %arg0, %c0_i32 : i32, i32
  }
  func.func @transform_1(%arg0: i32) -> (i32, i32) {
    %c0_i32 = arith.constant 0 : i32
    %c0_i32_0 = arith.constant 0 : i32
    %c0_i32_1 = arith.constant 0 : i32
    return %c0_i32, %c0_i32_0 : i32, i32
  }
  func.func @transform_2(%arg0: i32) -> (i32, i32) {
    %c0_i32 = arith.constant 0 : i32
    %c0_i32_0 = arith.constant 0 : i32
    %c0_i32_1 = arith.constant 0 : i32
    return %c0_i32, %c0_i32_0 : i32, i32
  }
  func.func @transform_3(%arg0: i32) -> (i32, i32) {
    %c0_i32 = arith.constant 0 : i32
    %c0_i32_0 = arith.constant 0 : i32
    return %arg0, %c0_i32 : i32, i32
  }
}

</mosaic_0001>

<llo_original>
// kernel: aiayn_forward.29
$region0: #{aiayn_forward.29}
  #allocation0 [shape = 'u32[]', space=smem, size = 0x4, offset = 0x4, fixed_abs, tag = 'smem constant byte address 0x4 - core index']
  #allocation1 [shape = 'u32[72,128]{1,0:T(1,128)}', space=vmem, size = 0x9000, scoped, tag = 'internal scratch']
  %s0 = inlined_call_operand.vmem [shape: bf16[20,32], index: 0, kind: input, shape index: {}]
  %s1 = inlined_call_operand.vmem [shape: bf16[32,32], index: 1, kind: input, shape index: {}]
  %s2 = inlined_call_operand.vmem [shape: f32[1,32], index: 2, kind: input, shape index: {}]
  %s3 = inlined_call_operand.vmem [shape: bf16[20,32], index: 3, kind: input, shape index: {}]
  %s4 = inlined_call_operand.vmem [shape: f32[1,32], index: 4, kind: input, shape index: {}]
  %s5 = inlined_call_operand.vmem [shape: f32[1,32], index: 5, kind: input, shape index: {}]
  %s6 = inlined_call_operand.vmem [shape: bf16[20,32], index: 6, kind: output, shape index: {}]
  %s7 = sld [smem:[#allocation0]]
  $region34: #{aiayn_forward.29} parent=0
    _
  %s9 = ssub.s32 1, %s7
  %s10 = scalar_select 0, %s9, %s7
  // Predicated region
  $region2: #{aiayn_forward.29} parent=0 // pred_check
    _
  $region3: #{aiayn_forward.29} parent=0 // pred_check_branch
    %12 = sbr.rel (0) target = $region5
  $region4: #{aiayn_forward.29} parent=0 // pred_region
    _
  $region5: #{aiayn_forward.29} parent=0 // pred_fallthru
    _
  // Predicated region
  $region6: #{aiayn_forward.29} parent=0 // pred_check
    _
  $region7: #{aiayn_forward.29} parent=0 // pred_check_branch
    %14 = sbr.rel (0) target = $region9
  $region8: #{aiayn_forward.29} parent=0 // pred_region
    _
  $region9: #{aiayn_forward.29} parent=0 // pred_fallthru
    _
  // Predicated region
  $region10: #{aiayn_forward.29} parent=0 // pred_check
    _
  $region11: #{aiayn_forward.29} parent=0 // pred_check_branch
    %16 = sbr.rel (0) target = $region13
  $region12: #{aiayn_forward.29} parent=0 // pred_region
    _
  $region13: #{aiayn_forward.29} parent=0 // pred_fallthru
    _
  // Predicated region
  $region14: #{aiayn_forward.29} parent=0 // pred_check
    _
  $region15: #{aiayn_forward.29} parent=0 // pred_check_branch
    %18 = sbr.rel (0) target = $region17
  $region16: #{aiayn_forward.29} parent=0 // pred_region
    _
  $region17: #{aiayn_forward.29} parent=0 // pred_fallthru
    _
  // Predicated region
  $region18: #{aiayn_forward.29} parent=0 // pred_check
    _
  $region19: #{aiayn_forward.29} parent=0 // pred_check_branch
    %20 = sbr.rel (0) target = $region21
  $region20: #{aiayn_forward.29} parent=0 // pred_region
    _
  $region21: #{aiayn_forward.29} parent=0 // pred_fallthru
    _
  // Predicated region
  $region22: #{aiayn_forward.29} parent=0 // pred_check
    _
  $region23: #{aiayn_forward.29} parent=0 // pred_check_branch
    %22 = sbr.rel (0) target = $region25
  $region24: #{aiayn_forward.29} parent=0 // pred_region
    _
  $region25: #{aiayn_forward.29} parent=0 // pred_fallthru
    _
  %v24 = vld [vmem:[%s0] sm:$0xf]
  %v25 = vld [vmem:[%s0 + $0x4] sm:$0xf]
  %v26 = vld [vmem:[%s0 + $0x8] sm:$0x3]
  %v27 = vld [vmem:[%s1] sm:$0xf]
  %v28 = vld [vmem:[%s1 + $0x4] sm:$0xf]
  %v29 = vld [vmem:[%s1 + $0x8] sm:$0xf]
  %v30 = vld [vmem:[%s1 + $0xc] sm:$0xf]
  %v31 = vld [vmem:[%s2] sm:$0x1]
  %v33 = vperm.slane %v31, 0
  %v38 = vunpack.c.l.b16 %v24
  %v39 = vunpack.c.l.b16 %v25
  %v40 = vunpack.c.l.b16 %v26
  %v41 = vpack.c.b16 %v39, %v38
  %v42 = vpack.c.b16 %v40, %v40
  %v47 = vunpack.c.l.b16 %v27
  %v48 = vunpack.c.l.b16 %v28
  %v49 = vunpack.c.l.b16 %v29
  %v50 = vunpack.c.l.b16 %v30
  %v51 = vpack.c.b16 %v48, %v47
  %v52 = vpack.c.b16 %v50, %v49
  %vm55 = vcmask 261120
  %v57 = vsel %vm55, %v41, 0
  %v60 = vsel %vm55, %v42, 0
  %62 = vmatpush.bf16.msra.mxu0 0
  %63 = vmatpush.bf16.msra.mxu0 0
  %64 = vmatpush.bf16.msra.mxu0 0
  %65 = vmatpush.bf16.msra.mxu0 0
  %66 = vmatpush.bf16.msra.mxu0 0
  %67 = vmatpush.bf16.msra.mxu0 0
  %68 = vmatpush.bf16.msra.mxu0 %v52
  %69 = vmatpush.bf16.msra.mxu0 %v51
  %70 = vmatmul.bf16.gmra.mxu0 %v57
  %v71 = vpop.f32.mrf.mxu0
  %v72 = vadd.f32 %v33, %v71
  %v73 = vpop.f32.mrf.mxu0
  %v74 = vadd.f32 %v33, %v73
  %75 = vmatmul.bf16.gmra.mxu0 %v60
  %v76 = vpop.f32.mrf.mxu0
  %v77 = vadd.f32 %v33, %v76
  %v78 = vpop.f32.mrf.mxu0
  %79 = vdwg.mxu0
  %v80 = vld [vmem:[%s3] sm:$0xf]
  %v81 = vld [vmem:[%s3 + $0x4] sm:$0xf]
  %v82 = vld [vmem:[%s3 + $0x8] sm:$0x3]
  %v83 = vunpack.c.l.bf16 %v80
  %v84 = vunpack.c.l.bf16 %v81
  %v85 = vunpack.c.l.bf16 %v82
  %v86 = vadd.f32 %v83, %v72
  %v87 = vadd.f32 %v84, %v74
  %v88 = vadd.f32 %v85, %v77
  %v89 = vsel %vm55, %v86, 0.0
  %90 = vadd.xlane.f32.xlu0 %v89
  %v91 = vpop.xlane.xlu0 %90
  %v92 = vsel %vm55, %v87, 0.0
  %93 = vadd.xlane.f32.xlu0 %v92
  %v94 = vpop.xlane.xlu0 %93
  %vm95 = vcmask 257024
  %v96 = vsel %vm95, %v88, 0.0
  %97 = vadd.xlane.f32.xlu0 %v96
  %v98 = vpop.xlane.xlu0 %97
  %v99 = vrcp.pop 32.0
  %v100 = vmul.f32 32.0, %v99
  %v101 = vsub.f32 1.0, %v100
  %v102 = vmul.f32 %v99, %v101
  %v103 = vadd.f32 %v99, %v102
  %vm104 = vweird.f32 %v99
  %v105 = vsel %vm104, %v99, %v103
  %v106 = vmul.f32 %v91, %v105
  %v107 = vmul.f32 %v94, %v105
  %v108 = vmul.f32 %v98, %v105
  %v109 = vsub.f32 %v86, %v106
  %v110 = vsub.f32 %v87, %v107
  %v111 = vsub.f32 %v88, %v108
  %v112 = vmul.f32 %v109, %v109
  %v113 = vmul.f32 %v110, %v110
  %v114 = vmul.f32 %v111, %v111
  %v115 = vsel %vm55, %v112, 0.0
  %116 = vadd.xlane.f32.xlu0 %v115
  %v117 = vpop.xlane.xlu0 %116
  %v118 = vsel %vm55, %v113, 0.0
  %119 = vadd.xlane.f32.xlu0 %v118
  %v120 = vpop.xlane.xlu0 %119
  %v121 = vsel %vm95, %v114, 0.0
  %122 = vadd.xlane.f32.xlu0 %v121
  %v123 = vpop.xlane.xlu0 %122
  %v124 = vmul.f32 %v117, %v105
  %v125 = vmul.f32 %v120, %v105
  %v126 = vmul.f32 %v123, %v105
  %v127 = vadd.f32 %v124, 1e-05
  %v128 = vadd.f32 %v125, 1e-05
  %v129 = vadd.f32 %v126, 1e-05
  %v130 = vrsqrt.pop %v127
  %v131 = vmul.f32 %v130, %v127
  %v132 = vmul.f32 %v131, %v130
  %v133 = vmul.f32 0.5, %v132
  %v134 = vsub.f32 1.5, %v133
  %v135 = vmul.f32 %v130, %v134
  %vm136 = vweird.f32 %v127
  %vm137 = vweird.f32 %v130
  %vm138 = vmor %vm136, %vm137
  %v139 = vsel %vm138, %v130, %v135
  %v140 = vrsqrt.pop %v128
  %v141 = vmul.f32 %v140, %v128
  %v142 = vmul.f32 %v141, %v140
  %v143 = vmul.f32 0.5, %v142
  %v144 = vsub.f32 1.5, %v143
  %v145 = vmul.f32 %v140, %v144
  %vm146 = vweird.f32 %v128
  %vm147 = vweird.f32 %v140
  %vm148 = vmor %vm146, %vm147
  %v149 = vsel %vm148, %v140, %v145
  %v150 = vrsqrt.pop %v129
  %v151 = vmul.f32 %v150, %v129
  %v152 = vmul.f32 %v151, %v150
  %v153 = vmul.f32 0.5, %v152
  %v154 = vsub.f32 1.5, %v153
  %v155 = vmul.f32 %v150, %v154
  %vm156 = vweird.f32 %v129
  %vm157 = vweird.f32 %v150
  %vm158 = vmor %vm156, %vm157
  %v159 = vsel %vm158, %v150, %v155
  %v160 = vmul.f32 %v109, %v139
  %v161 = vmul.f32 %v110, %v149
  %v162 = vmul.f32 %v111, %v159
  %v163 = vld [vmem:[%s4] sm:$0x1]
  %v165 = vperm.slane %v163, 0
  %v167 = vmul.f32 %v160, %v165
  %v168 = vmul.f32 %v161, %v165
  %v169 = vmul.f32 %v162, %v165
  %v170 = vld [vmem:[%s5] sm:$0x1]
  %v172 = vperm.slane %v170, 0
  %v174 = vadd.f32 %v167, %v172
  %v175 = vadd.f32 %v168, %v172
  %v176 = vadd.f32 %v169, %v172
  %v177 = vpack.c.bf16 %v174, %v174
  %v178 = vpack.c.bf16 %v175, %v175
  %v179 = vpack.c.bf16 %v176, %v176
  %180 = vst.msk [vmem:[%s6] sm:$0xf] %vm95, %v177
  %181 = vst.msk [vmem:[%s6 + $0x4] sm:$0xf] %vm95, %v178
  %vm182 = vcmask 254976
  %183 = vst.msk [vmem:[%s6 + $0x8] sm:$0x3] %vm182, %v179
  // Predicated region
  $region26: #{aiayn_forward.29} parent=0 // pred_check
    _
  $region27: #{aiayn_forward.29} parent=0 // pred_check_branch
    %185 = sbr.rel (0) target = $region29
  $region28: #{aiayn_forward.29} parent=0 // pred_region
    _
  $region29: #{aiayn_forward.29} parent=0 // pred_fallthru
    _
  // Predicated region
  $region30: #{aiayn_forward.29} parent=0 // pred_check
    _
  $region31: #{aiayn_forward.29} parent=0 // pred_check_branch
    %187 = sbr.rel (0) target = $region33
  $region32: #{aiayn_forward.29} parent=0 // pred_region
    _
  $region33: #{aiayn_forward.29} parent=0 // pred_fallthru
    _

// kernel: aiayn_forward.27
$region0: #{aiayn_forward.27}
  #allocation0 [shape = 'u32[]', space=smem, size = 0x4, offset = 0x4, fixed_abs, tag = 'smem constant byte address 0x4 - core index']
  #allocation1 [shape = 'u32[72,128]{1,0:T(1,128)}', space=vmem, size = 0x9000, scoped, tag = 'internal scratch']
  %s0 = inlined_call_operand.vmem [shape: bf16[20,32], index: 0, kind: input, shape index: {}]
  %s1 = inlined_call_operand.vmem [shape: bf16[32,96], index: 1, kind: input, shape index: {}]
  %s2 = inlined_call_operand.vmem [shape: f32[1,96], index: 2, kind: input, shape index: {}]
  %s3 = inlined_call_operand.vmem [shape: bf16[20,96], index: 3, kind: output, shape index: {}]
  %s4 = sld [smem:[#allocation0]]
  $region22: #{aiayn_forward.27} parent=0
    _
  %s6 = ssub.s32 1, %s4
  %s7 = scalar_select 0, %s6, %s4
  // Predicated region
  $region2: #{aiayn_forward.27} parent=0 // pred_check
    _
  $region3: #{aiayn_forward.27} parent=0 // pred_check_branch
    %9 = sbr.rel (0) target = $region5
  $region4: #{aiayn_forward.27} parent=0 // pred_region
    _
  $region5: #{aiayn_forward.27} parent=0 // pred_fallthru
    _
  // Predicated region
  $region6: #{aiayn_forward.27} parent=0 // pred_check
    _
  $region7: #{aiayn_forward.27} parent=0 // pred_check_branch
    %11 = sbr.rel (0) target = $region9
  $region8: #{aiayn_forward.27} parent=0 // pred_region
    _
  $region9: #{aiayn_forward.27} parent=0 // pred_fallthru
    _
  // Predicated region
  $region10: #{aiayn_forward.27} parent=0 // pred_check
    _
  $region11: #{aiayn_forward.27} parent=0 // pred_check_branch
    %13 = sbr.rel (0) target = $region13
  $region12: #{aiayn_forward.27} parent=0 // pred_region
    _
  $region13: #{aiayn_forward.27} parent=0 // pred_fallthru
    _
  %v15 = vld [vmem:[%s0] sm:$0xf]
  %v16 = vld [vmem:[%s0 + $0x4] sm:$0xf]
  %v17 = vld [vmem:[%s0 + $0x8] sm:$0x3]
  %v18 = vld [vmem:[%s1] sm:$0xf]
  %v19 = vld [vmem:[%s1 + $0x4] sm:$0xf]
  %v20 = vld [vmem:[%s1 + $0x8] sm:$0xf]
  %v21 = vld [vmem:[%s1 + $0xc] sm:$0xf]
  %v22 = vld [vmem:[%s2] sm:$0x1]
  %v24 = vperm.slane %v22, 0
  %v29 = vunpack.c.l.b16 %v15
  %v30 = vunpack.c.l.b16 %v16
  %v31 = vunpack.c.l.b16 %v17
  %v32 = vpack.c.b16 %v30, %v29
  %v33 = vpack.c.b16 %v31, %v31
  %v38 = vunpack.c.l.b16 %v18
  %v39 = vunpack.c.l.b16 %v19
  %v40 = vunpack.c.l.b16 %v20
  %v41 = vunpack.c.l.b16 %v21
  %v42 = vpack.c.b16 %v39, %v38
  %v43 = vpack.c.b16 %v41, %v40
  %vm46 = vcmask 261120
  %v48 = vsel %vm46, %v32, 0
  %v51 = vsel %vm46, %v33, 0
  %53 = vmatpush.bf16.msra.mxu0 0
  %54 = vmatpush.bf16.msra.mxu0 0
  %55 = vmatpush.bf16.msra.mxu0 0
  %56 = vmatpush.bf16.msra.mxu0 0
  %57 = vmatpush.bf16.msra.mxu0 0
  %58 = vmatpush.bf16.msra.mxu0 0
  %59 = vmatpush.bf16.msra.mxu0 %v43
  %60 = vmatpush.bf16.msra.mxu0 %v42
  %61 = vmatmul.bf16.gmra.mxu0 %v48
  %v62 = vpop.f32.mrf.mxu0
  %v63 = vadd.f32 %v24, %v62
  %v64 = vpop.f32.mrf.mxu0
  %v65 = vadd.f32 %v24, %v64
  %66 = vmatmul.bf16.gmra.mxu0 %v51
  %v67 = vpop.f32.mrf.mxu0
  %v68 = vadd.f32 %v24, %v67
  %v69 = vpop.f32.mrf.mxu0
  %70 = vdwg.mxu0
  %v71 = vpack.c.bf16 %v63, %v63
  %v72 = vpack.c.bf16 %v65, %v65
  %v73 = vpack.c.bf16 %v68, %v68
  %vm74 = vcmask 781312
  %75 = vst.msk [vmem:[%s3] sm:$0xf] %vm74, %v71
  %76 = vst.msk [vmem:[%s3 + $0x4] sm:$0xf] %vm74, %v72
  %vm77 = vcmask 779264
  %78 = vst.msk [vmem:[%s3 + $0x8] sm:$0x3] %vm77, %v73
  // Predicated region
  $region14: #{aiayn_forward.27} parent=0 // pred_check
    _
  $region15: #{aiayn_forward.27} parent=0 // pred_check_branch
    %80 = sbr.rel (0) target = $region17
  $region16: #{aiayn_forward.27} parent=0 // pred_region
    _
  $region17: #{aiayn_forward.27} parent=0 // pred_fallthru
    _
  // Predicated region
  $region18: #{aiayn_forward.27} parent=0 // pred_check
    _
  $region19: #{aiayn_forward.27} parent=0 // pred_check_branch
    %82 = sbr.rel (0) target = $region21
  $region20: #{aiayn_forward.27} parent=0 // pred_region
    _
  $region21: #{aiayn_forward.27} parent=0 // pred_fallthru
    _

// kernel: aiayn_forward.28
$region0: #{aiayn_forward.28}
  #allocation0 [shape = 'u32[]', space=smem, size = 0x4, offset = 0x4, fixed_abs, tag = 'smem constant byte address 0x4 - core index']
  #allocation1 [shape = 'u32[72,128]{1,0:T(1,128)}', space=vmem, size = 0x9000, scoped, tag = 'internal scratch']
  %s0 = inlined_call_operand.vmem [shape: bf16[2,10,96], index: 0, kind: input, shape index: {}]
  %s1 = inlined_call_operand.vmem [shape: bf16[2,10,32], index: 1, kind: output, shape index: {}]
  %s2 = sld [smem:[#allocation0]]
  $region37: #{aiayn_forward.28} parent=0
    _
  %s4 = ssub.s32 1, %s2
  %s5 = scalar_select 0, %s4, %s2
  loop: start=0, step=1, limit=4
  $region2: #{aiayn_forward.28} parent=0 // loop_pre_header
    _
  $region3: #{aiayn_forward.28} parent=0 // loop_header
    %s7 = sphi 0, %s11
    %p8 = scmp.ge.s32.totalorder %s7, 4
    %s17 = sphi 0, %s19
    %s20 = sphi 0, %s17
    %s21 = sphi 0, %s20
    %s37 = sphi 0, %s21
    %s43 = sphi 0, %s45
    %s46 = sphi 0, %s43
    %s47 = sphi 0, %s46
    %s63 = sphi 0, %s47
  $region4: #{aiayn_forward.28} parent=0 // loop_header_branch
    %10 = sbr.rel (%p8) target = $region8
  $region5: #{aiayn_forward.28} parent=0 // loop_body
    %s12 = ssub.s32 %s7, 1
    %s13 = ssub.s32 %s7, 2
    %s14 = sadd.s32 %s7, 1
    %s15 = ssub.s32 %s7, %s14
    %p16 = scmp.eq.s32.totalorder %s15, 0
    %s18 = sadd.s32 %s17, 1
    %s19 = scalar_select %p16, %s17, %s18
    %p22 = pneg %p16
    %p23 = scmp.eq.s32.totalorder %s7, 1
    %p24 = por %p22, %p23
    %p25 = scmp.ne.s32.totalorder %s17, %s20
    %p26 = scmp.eq.s32.totalorder %s7, 0
    %p27 = por %p25, %p26
    %p28 = scmp.ne.s32.totalorder %s17, %s20
    %p29 = scmp.eq.s32.totalorder %s12, 1
    %p30 = por %p28, %p29
    %p31 = scmp.ne.s32.totalorder %s20, %s21
    %p32 = scmp.eq.s32.totalorder %s12, 0
    %p33 = por %p31, %p32
    %p34 = scmp.ne.s32.totalorder %s20, %s21
    %p35 = scmp.eq.s32.totalorder %s13, 1
    %p36 = por %p34, %p35
    %p38 = scmp.ne.s32.totalorder %s21, %s37
    %p39 = scmp.eq.s32.totalorder %s13, 0
    %p40 = por %p38, %p39
    %s41 = ssub.s32 %s7, %s14
    %p42 = scmp.eq.s32.totalorder %s41, 0
    %s44 = sadd.s32 %s43, 1
    %s45 = scalar_select %p42, %s43, %s44
    %p48 = pneg %p42
    %p49 = scmp.eq.s32.totalorder %s7, 1
    %p50 = por %p48, %p49
    %p51 = scmp.ne.s32.totalorder %s43, %s46
    %p52 = scmp.eq.s32.totalorder %s7, 0
    %p53 = por %p51, %p52
    %p54 = scmp.ne.s32.totalorder %s43, %s46
    %p55 = scmp.eq.s32.totalorder %s12, 1
    %p56 = por %p54, %p55
    %p57 = scmp.ne.s32.totalorder %s46, %s47
    %p58 = scmp.eq.s32.totalorder %s12, 0
    %p59 = por %p57, %p58
    %p60 = scmp.ne.s32.totalorder %s46, %s47
    %p61 = scmp.eq.s32.totalorder %s13, 1
    %p62 = por %p60, %p61
    %p64 = scmp.ne.s32.totalorder %s47, %s63
    %p65 = scmp.eq.s32.totalorder %s13, 0
    %p66 = por %p64, %p65
    %p67 = scmp.le.s32.totalorder 1, %s7
    %p68 = scmp.lt.s32.totalorder %s7, 3
    %p69 = pnand %p67, %p68
    %p70 = pneg %p69
    // Predicated region
    $region9: #{aiayn_forward.28} parent=5 // pred_check
      _
    $region10: #{aiayn_forward.28} parent=5 // pred_check_branch
      %72 = sbr.rel (%p69) target = $region12
    $region11: #{aiayn_forward.28} parent=5 // pred_region
      %s73 = ssub.s32 %s7, 1
    $region12: #{aiayn_forward.28} parent=5 // pred_fallthru
      _
    %p74 = scmp.lt.s32.totalorder %s7, 2
    // Predicated region
    $region13: #{aiayn_forward.28} parent=5 // pred_check
      %p75 = pneg %p74
    $region14: #{aiayn_forward.28} parent=5 // pred_check_branch
      %77 = sbr.rel (%p75) target = $region16
    $region15: #{aiayn_forward.28} parent=5 // pred_region
      // Predicated region
      $region17: #{aiayn_forward.28} parent=15 // pred_check
        %p78 = pneg %p27
      $region18: #{aiayn_forward.28} parent=15 // pred_check_branch
        %80 = sbr.rel (%p78) target = $region20
      $region19: #{aiayn_forward.28} parent=15 // pred_region
        %p81 = scmp.lt.s32.totalorder %s7, 1
        %s82 = scalar_select %p81, %s7, 1
        %s83 = smul.addr %s82, 2
        %s84 = smul.addr %s83, 4
        %s85 = scalar_lea.vmem %s0, %s84
      $region20: #{aiayn_forward.28} parent=15 // pred_fallthru
        _
    $region16: #{aiayn_forward.28} parent=5 // pred_fallthru
      _
    %p86 = scmp.le.s32.totalorder 1, %s7
    %p87 = scmp.lt.s32.totalorder %s7, 3
    %p88 = pnand %p86, %p87
    %p89 = pneg %p88
    // Predicated region
    $region21: #{aiayn_forward.28} parent=5 // pred_check
      _
    $region22: #{aiayn_forward.28} parent=5 // pred_check_branch
      %91 = sbr.rel (%p88) target = $region24
    $region23: #{aiayn_forward.28} parent=5 // pred_region
      %s92 = ssub.s32 %s7, 1
      %p93 = scmp.lt.s32.totalorder %s12, 1
      %s94 = scalar_select %p93, %s12, 1
      %s95 = smul.addr %s94, 2
      %s96 = smul.addr %s95, 4
      %s97 = scalar_lea.vmem %s0, %s96
      %p98 = pneg %p33
      %p99 = pneg %p30
      %p100 = pneg %p59
      %p101 = pneg %p56
      %p102 = scmp.lt.s32.totalorder %s12, 1
      %s103 = scalar_select %p102, %s12, 1
      %s104 = smul.addr %s103, 2
      %s105 = smul.addr %s104, 4
      %s106 = scalar_lea.vmem %s1, %s105
      %p107 = scmp.lt.s32.totalorder %s12, 1
      %s108 = scalar_select %p107, %s12, 1
      %s109 = smul.addr %s108, 2
      %s110 = smul.addr %s109, 4
      %s111 = scalar_lea.vmem %s0, %s110
      %p112 = scmp.lt.s32.totalorder %s12, 1
      %s113 = scalar_select %p112, %s12, 1
      %s114 = smul.addr %s113, 2
      %s115 = smul.addr %s114, 4
      %s116 = scalar_lea.vmem %s1, %s115
      %v118 = vld [vmem:[%s111] sm:$0xf]
      %v119 = vld [vmem:[%s111 + $0x4] sm:$0x1]
      %v122 = vunpack.c.l.b16 %v118
      %v123 = vunpack.c.l.b16 %v119
      %v124 = vpack.c.b16 %v123, %v122
      %125 = vrot.lane.b32.xlu0 %v124, 96
      %v126 = vpop.permute.xlu0 %125
      %vm127 = vcmask 64512
      %v129 = vsel %vm127, %v124, 0
      %v132 = vsel %vm127, %v126, 0
      %134 = vmatpush.bf16.xpose.msra.mxu0 0
      %135 = vmatpush.bf16.xpose.msra.mxu0 0
      %136 = vmatpush.bf16.xpose.msra.mxu0 0
      %137 = vmatpush.bf16.xpose.msra.mxu0 0
      %138 = vmatpush.bf16.xpose.msra.mxu0 0
      %139 = vmatpush.bf16.xpose.msra.mxu0 0
      %140 = vmatpush.bf16.xpose.msra.mxu0 0
      %141 = vmatpush.bf16.xpose.msra.mxu0 %v132
      %142 = vmatmul.bf16.gmra.mxu0 %v129
      %v143 = vpop.f32.mrf.mxu0
      %v144 = vadd.f32 0.0, %v143
      %v145 = vpop.f32.mrf.mxu0
      %v146 = vadd.f32 0.0, %v145
      %147 = vdwg.mxu0
      %vm148 = vcmask 80896
      %v149 = vsel %vm148, %v144, -inf
      %150 = vmax.xlane.f32.xlu0 %v149
      %v151 = vpop.xlane.xlu0 %150
      %vm152 = vcmask 74752
      %v153 = vsel %vm152, %v146, -inf
      %154 = vmax.xlane.f32.xlu0 %v153
      %v155 = vpop.xlane.xlu0 %154
      %v156 = vsub.f32 %v144, %v151
      %v157 = vsub.f32 %v146, %v155
      %v158 = vmul.f32 %v156, 1.442695
      %v159 = vpow.pop %v158
      %v160 = vmul.f32 %v157, 1.442695
      %v161 = vpow.pop %v160
      %v162 = vsel %vm148, %v159, 0.0
      %163 = vadd.xlane.f32.xlu0 %v162
      %v164 = vpop.xlane.xlu0 %163
      %v165 = vsel %vm152, %v161, 0.0
      %166 = vadd.xlane.f32.xlu0 %v165
      %v167 = vpop.xlane.xlu0 %166
      %v168 = vrcp.pop %v164
      %v169 = vrcp.pop %v167
      %v170 = vmul.f32 %v159, %v168
      %v171 = vmul.f32 %v161, %v169
      %v172 = vpack.c.bf16 %v171, %v170
      %173 = vrot.lane.b32.xlu0 %v124, 64
      %v174 = vpop.permute.xlu0 %173
      %v176 = vsel %vm148, %v172, 0
      %vm178 = vcmask 1044480
      %v180 = vsel %vm178, %v174, 0
      %182 = vmatpush.bf16.msra.mxu0 0
      %183 = vmatpush.bf16.msra.mxu0 0
      %184 = vmatpush.bf16.msra.mxu0 0
      %185 = vmatpush.bf16.msra.mxu0 0
      %186 = vmatpush.bf16.msra.mxu0 0
      %187 = vmatpush.bf16.msra.mxu0 0
      %188 = vmatpush.bf16.msra.mxu0 0
      %189 = vmatpush.bf16.msra.mxu0 %v180
      %190 = vmatmul.bf16.gmra.mxu0 %v176
      %v191 = vpop.f32.mrf.mxu0
      %v192 = vadd.f32 0.0, %v191
      %v193 = vpop.f32.mrf.mxu0
      %v194 = vadd.f32 0.0, %v193
      %195 = vdwg.mxu0
      %v196 = vpack.c.bf16 %v192, %v192
      %v197 = vpack.c.bf16 %v194, %v194
      %vm198 = vcmask 60416
      %199 = vst.msk [vmem:[%s116] sm:$0xf] %vm198, %v196
      %vm200 = vcmask 57344
      %201 = vst.msk [vmem:[%s116 + $0x4] sm:$0x1] %vm200, %v197
      %202 = vrot.lane.b32.xlu0 %v124, 120
      %v203 = vpop.permute.xlu0 %202
      %204 = vrot.lane.b32.xlu0 %v124, 88
      %v205 = vpop.permute.xlu0 %204
      %v207 = vsel %vm127, %v203, 0
      %v210 = vsel %vm127, %v205, 0
      %212 = vmatpush.bf16.xpose.msra.mxu0 0
      %213 = vmatpush.bf16.xpose.msra.mxu0 0
      %214 = vmatpush.bf16.xpose.msra.mxu0 0
      %215 = vmatpush.bf16.xpose.msra.mxu0 0
      %216 = vmatpush.bf16.xpose.msra.mxu0 0
      %217 = vmatpush.bf16.xpose.msra.mxu0 0
      %218 = vmatpush.bf16.xpose.msra.mxu0 0
      %219 = vmatpush.bf16.xpose.msra.mxu0 %v210
      %220 = vmatmul.bf16.gmra.mxu0 %v207
      %v221 = vpop.f32.mrf.mxu0
      %v222 = vadd.f32 0.0, %v221
      %v223 = vpop.f32.mrf.mxu0
      %v224 = vadd.f32 0.0, %v223
      %225 = vdwg.mxu0
      %v226 = vsel %vm148, %v222, -inf
      %227 = vmax.xlane.f32.xlu0 %v226
      %v228 = vpop.xlane.xlu0 %227
      %v229 = vsel %vm152, %v224, -inf
      %230 = vmax.xlane.f32.xlu0 %v229
      %v231 = vpop.xlane.xlu0 %230
      %v232 = vsub.f32 %v222, %v228
      %v233 = vsub.f32 %v224, %v231
      %v234 = vmul.f32 %v232, 1.442695
      %v235 = vpow.pop %v234
      %v236 = vmul.f32 %v233, 1.442695
      %v237 = vpow.pop %v236
      %v238 = vsel %vm148, %v235, 0.0
      %239 = vadd.xlane.f32.xlu0 %v238
      %v240 = vpop.xlane.xlu0 %239
      %v241 = vsel %vm152, %v237, 0.0
      %242 = vadd.xlane.f32.xlu0 %v241
      %v243 = vpop.xlane.xlu0 %242
      %v244 = vrcp.pop %v240
      %v245 = vrcp.pop %v243
      %v246 = vmul.f32 %v235, %v244
      %v247 = vmul.f32 %v237, %v245
      %v248 = vpack.c.bf16 %v247, %v246
      %249 = vrot.lane.b32.xlu0 %v124, 56
      %v250 = vpop.permute.xlu0 %249
      %v252 = vsel %vm148, %v248, 0
      %v255 = vsel %vm178, %v250, 0
      %257 = vmatpush.bf16.msra.mxu0 0
      %258 = vmatpush.bf16.msra.mxu0 0
      %259 = vmatpush.bf16.msra.mxu0 0
      %260 = vmatpush.bf16.msra.mxu0 0
      %261 = vmatpush.bf16.msra.mxu0 0
      %262 = vmatpush.bf16.msra.mxu0 0
      %263 = vmatpush.bf16.msra.mxu0 0
      %264 = vmatpush.bf16.msra.mxu0 %v255
      %265 = vmatmul.bf16.gmra.mxu0 %v252
      %v266 = vpop.f32.mrf.mxu0
      %v267 = vadd.f32 0.0, %v266
      %v268 = vpop.f32.mrf.mxu0
      %v269 = vadd.f32 0.0, %v268
      %270 = vdwg.mxu0
      %v271 = vpack.c.bf16 %v267, %v267
      %v272 = vpack.c.bf16 %v269, %v269
      %275 = vrot.lane.b32.xlu0 %v271, 8
      %v276 = vpop.permute.xlu0 %275
      %277 = vrot.lane.b32.xlu0 %v272, 8
      %v278 = vpop.permute.xlu0 %277
      %vm281 = vcmask 126016
      %282 = vst.msk [vmem:[%s116] sm:$0xf] %vm281, %v276
      %vm283 = vcmask 122944
      %284 = vst.msk [vmem:[%s116 + $0x4] sm:$0x1] %vm283, %v278
      %285 = vrot.lane.b32.xlu0 %v124, 112
      %v286 = vpop.permute.xlu0 %285
      %287 = vrot.lane.b32.xlu0 %v124, 80
      %v288 = vpop.permute.xlu0 %287
      %v290 = vsel %vm127, %v286, 0
      %v293 = vsel %vm127, %v288, 0
      %295 = vmatpush.bf16.xpose.msra.mxu0 0
      %296 = vmatpush.bf16.xpose.msra.mxu0 0
      %297 = vmatpush.bf16.xpose.msra.mxu0 0
      %298 = vmatpush.bf16.xpose.msra.mxu0 0
      %299 = vmatpush.bf16.xpose.msra.mxu0 0
      %300 = vmatpush.bf16.xpose.msra.mxu0 0
      %301 = vmatpush.bf16.xpose.msra.mxu0 0
      %302 = vmatpush.bf16.xpose.msra.mxu0 %v293
      %303 = vmatmul.bf16.gmra.mxu0 %v290
      %v304 = vpop.f32.mrf.mxu0
      %v305 = vadd.f32 0.0, %v304
      %v306 = vpop.f32.mrf.mxu0
      %v307 = vadd.f32 0.0, %v306
      %308 = vdwg.mxu0
      %v309 = vsel %vm148, %v305, -inf
      %310 = vmax.xlane.f32.xlu0 %v309
      %v311 = vpop.xlane.xlu0 %310
      %v312 = vsel %vm152, %v307, -inf
      %313 = vmax.xlane.f32.xlu0 %v312
      %v314 = vpop.xlane.xlu0 %313
      %v315 = vsub.f32 %v305, %v311
      %v316 = vsub.f32 %v307, %v314
      %v317 = vmul.f32 %v315, 1.442695
      %v318 = vpow.pop %v317
      %v319 = vmul.f32 %v316, 1.442695
      %v320 = vpow.pop %v319
      %v321 = vsel %vm148, %v318, 0.0
      %322 = vadd.xlane.f32.xlu0 %v321
      %v323 = vpop.xlane.xlu0 %322
      %v324 = vsel %vm152, %v320, 0.0
      %325 = vadd.xlane.f32.xlu0 %v324
      %v326 = vpop.xlane.xlu0 %325
      %v327 = vrcp.pop %v323
      %v328 = vrcp.pop %v326
      %v329 = vmul.f32 %v318, %v327
      %v330 = vmul.f32 %v320, %v328
      %v331 = vpack.c.bf16 %v330, %v329
      %332 = vrot.lane.b32.xlu0 %v124, 48
      %v333 = vpop.permute.xlu0 %332
      %v335 = vsel %vm148, %v331, 0
      %v338 = vsel %vm178, %v333, 0
      %340 = vmatpush.bf16.msra.mxu0 0
      %341 = vmatpush.bf16.msra.mxu0 0
      %342 = vmatpush.bf16.msra.mxu0 0
      %343 = vmatpush.bf16.msra.mxu0 0
      %344 = vmatpush.bf16.msra.mxu0 0
      %345 = vmatpush.bf16.msra.mxu0 0
      %346 = vmatpush.bf16.msra.mxu0 0
      %347 = vmatpush.bf16.msra.mxu0 %v338
      %348 = vmatmul.bf16.gmra.mxu0 %v335
      %v349 = vpop.f32.mrf.mxu0
      %v350 = vadd.f32 0.0, %v349
      %v351 = vpop.f32.mrf.mxu0
      %v352 = vadd.f32 0.0, %v351
      %353 = vdwg.mxu0
      %v354 = vpack.c.bf16 %v350, %v350
      %v355 = vpack.c.bf16 %v352, %v352
      %358 = vrot.lane.b32.xlu0 %v354, 16
      %v359 = vpop.permute.xlu0 %358
      %360 = vrot.lane.b32.xlu0 %v355, 16
      %v361 = vpop.permute.xlu0 %360
      %vm364 = vcmask 191616
      %365 = vst.msk [vmem:[%s116] sm:$0xf] %vm364, %v359
      %vm366 = vcmask 188544
      %367 = vst.msk [vmem:[%s116 + $0x4] sm:$0x1] %vm366, %v361
      %368 = vrot.lane.b32.xlu0 %v124, 104
      %v369 = vpop.permute.xlu0 %368
      %370 = vrot.lane.b32.xlu0 %v124, 72
      %v371 = vpop.permute.xlu0 %370
      %v373 = vsel %vm127, %v369, 0
      %v376 = vsel %vm127, %v371, 0
      %378 = vmatpush.bf16.xpose.msra.mxu0 0
      %379 = vmatpush.bf16.xpose.msra.mxu0 0
      %380 = vmatpush.bf16.xpose.msra.mxu0 0
      %381 = vmatpush.bf16.xpose.msra.mxu0 0
      %382 = vmatpush.bf16.xpose.msra.mxu0 0
      %383 = vmatpush.bf16.xpose.msra.mxu0 0
      %384 = vmatpush.bf16.xpose.msra.mxu0 0
      %385 = vmatpush.bf16.xpose.msra.mxu0 %v376
      %386 = vmatmul.bf16.gmra.mxu0 %v373
      %v387 = vpop.f32.mrf.mxu0
      %v388 = vadd.f32 0.0, %v387
      %v389 = vpop.f32.mrf.mxu0
      %v390 = vadd.f32 0.0, %v389
      %391 = vdwg.mxu0
      %v392 = vsel %vm148, %v388, -inf
      %393 = vmax.xlane.f32.xlu0 %v392
      %v394 = vpop.xlane.xlu0 %393
      %v395 = vsel %vm152, %v390, -inf
      %396 = vmax.xlane.f32.xlu0 %v395
      %v397 = vpop.xlane.xlu0 %396
      %v398 = vsub.f32 %v388, %v394
      %v399 = vsub.f32 %v390, %v397
      %v400 = vmul.f32 %v398, 1.442695
      %v401 = vpow.pop %v400
      %v402 = vmul.f32 %v399, 1.442695
      %v403 = vpow.pop %v402
      %v404 = vsel %vm148, %v401, 0.0
      %405 = vadd.xlane.f32.xlu0 %v404
      %v406 = vpop.xlane.xlu0 %405
      %v407 = vsel %vm152, %v403, 0.0
      %408 = vadd.xlane.f32.xlu0 %v407
      %v409 = vpop.xlane.xlu0 %408
      %v410 = vrcp.pop %v406
      %v411 = vrcp.pop %v409
      %v412 = vmul.f32 %v401, %v410
      %v413 = vmul.f32 %v403, %v411
      %v414 = vpack.c.bf16 %v413, %v412
      %415 = vrot.lane.b32.xlu0 %v124, 40
      %v416 = vpop.permute.xlu0 %415
      %v418 = vsel %vm148, %v414, 0
      %v421 = vsel %vm178, %v416, 0
      %423 = vmatpush.bf16.msra.mxu0 0
      %424 = vmatpush.bf16.msra.mxu0 0
      %425 = vmatpush.bf16.msra.mxu0 0
      %426 = vmatpush.bf16.msra.mxu0 0
      %427 = vmatpush.bf16.msra.mxu0 0
      %428 = vmatpush.bf16.msra.mxu0 0
      %429 = vmatpush.bf16.msra.mxu0 0
      %430 = vmatpush.bf16.msra.mxu0 %v421
      %431 = vmatmul.bf16.gmra.mxu0 %v418
      %v432 = vpop.f32.mrf.mxu0
      %v433 = vadd.f32 0.0, %v432
      %v434 = vpop.f32.mrf.mxu0
      %v435 = vadd.f32 0.0, %v434
      %436 = vdwg.mxu0
      %v437 = vpack.c.bf16 %v433, %v433
      %v438 = vpack.c.bf16 %v435, %v435
      %441 = vrot.lane.b32.xlu0 %v437, 24
      %v442 = vpop.permute.xlu0 %441
      %443 = vrot.lane.b32.xlu0 %v438, 24
      %v444 = vpop.permute.xlu0 %443
      %vm447 = vcmask 257216
      %448 = vst.msk [vmem:[%s116] sm:$0xf] %vm447, %v442
      %vm449 = vcmask 254144
      %450 = vst.msk [vmem:[%s116 + $0x4] sm:$0x1] %vm449, %v444
      %p451 = scmp.lt.s32.totalorder %s12, 1
      %s452 = scalar_select %p451, %s12, 1
      %s453 = smul.addr %s452, 2
      %s454 = smul.addr %s453, 4
      %s455 = scalar_lea.vmem %s1, %s454
      // Predicated region
      $region25: #{aiayn_forward.28} parent=23 // pred_check
        %p456 = pneg %p56
      $region26: #{aiayn_forward.28} parent=23 // pred_check_branch
        %458 = sbr.rel (%p456) target = $region28
      $region27: #{aiayn_forward.28} parent=23 // pred_region
        _
      $region28: #{aiayn_forward.28} parent=23 // pred_fallthru
        _
    $region24: #{aiayn_forward.28} parent=5 // pred_fallthru
      _
    %p459 = scmp.le.s32.totalorder 2, %s7
    // Predicated region
    $region29: #{aiayn_forward.28} parent=5 // pred_check
      %p460 = pneg %p459
    $region30: #{aiayn_forward.28} parent=5 // pred_check_branch
      %462 = sbr.rel (%p460) target = $region32
    $region31: #{aiayn_forward.28} parent=5 // pred_region
      %s463 = ssub.s32 %s7, 2
      // Predicated region
      $region33: #{aiayn_forward.28} parent=31 // pred_check
        %p464 = pneg %p62
      $region34: #{aiayn_forward.28} parent=31 // pred_check_branch
        %466 = sbr.rel (%p464) target = $region36
      $region35: #{aiayn_forward.28} parent=31 // pred_region
        %p467 = scmp.lt.s32.totalorder %s13, 1
        %s468 = scalar_select %p467, %s13, 1
        %s469 = smul.addr %s468, 2
        %s470 = smul.addr %s469, 4
        %s471 = scalar_lea.vmem %s1, %s470
      $region36: #{aiayn_forward.28} parent=31 // pred_fallthru
        _
    $region32: #{aiayn_forward.28} parent=5 // pred_fallthru
      _
  $region6: #{aiayn_forward.28} parent=0 // loop_footer
    %s11 = sadd.s32 1, %s7
  $region7: #{aiayn_forward.28} parent=0 // loop_footer_branch
    %6 = sbr.rel target = $region3
  $region8: #{aiayn_forward.28} parent=0 // loop_exit
    _

// kernel: aiayn_forward.30
$region0: #{aiayn_forward.30}
  #allocation0 [shape = 'u32[]', space=smem, size = 0x4, offset = 0x4, fixed_abs, tag = 'smem constant byte address 0x4 - core index']
  #allocation1 [shape = 'u32[72,128]{1,0:T(1,128)}', space=vmem, size = 0x9000, scoped, tag = 'internal scratch']
  %s0 = inlined_call_operand.vmem [shape: bf16[20,32], index: 0, kind: input, shape index: {}]
  %s1 = inlined_call_operand.vmem [shape: bf16[32,64], index: 1, kind: input, shape index: {}]
  %s2 = inlined_call_operand.vmem [shape: f32[1,64], index: 2, kind: input, shape index: {}]
  %s3 = inlined_call_operand.vmem [shape: bf16[64,32], index: 3, kind: input, shape index: {}]
  %s4 = inlined_call_operand.vmem [shape: f32[1,32], index: 4, kind: input, shape index: {}]
  %s5 = inlined_call_operand.vmem [shape: f32[1,32], index: 5, kind: input, shape index: {}]
  %s6 = inlined_call_operand.vmem [shape: f32[1,32], index: 6, kind: input, shape index: {}]
  %s7 = inlined_call_operand.vmem [shape: bf16[20,32], index: 7, kind: output, shape index: {}]
  %s8 = sld [smem:[#allocation0]]
  $region38: #{aiayn_forward.30} parent=0
    _
  %s10 = ssub.s32 1, %s8
  %s11 = scalar_select 0, %s10, %s8
  // Predicated region
  $region2: #{aiayn_forward.30} parent=0 // pred_check
    _
  $region3: #{aiayn_forward.30} parent=0 // pred_check_branch
    %13 = sbr.rel (0) target = $region5
  $region4: #{aiayn_forward.30} parent=0 // pred_region
    _
  $region5: #{aiayn_forward.30} parent=0 // pred_fallthru
    _
  // Predicated region
  $region6: #{aiayn_forward.30} parent=0 // pred_check
    _
  $region7: #{aiayn_forward.30} parent=0 // pred_check_branch
    %15 = sbr.rel (0) target = $region9
  $region8: #{aiayn_forward.30} parent=0 // pred_region
    _
  $region9: #{aiayn_forward.30} parent=0 // pred_fallthru
    _
  // Predicated region
  $region10: #{aiayn_forward.30} parent=0 // pred_check
    _
  $region11: #{aiayn_forward.30} parent=0 // pred_check_branch
    %17 = sbr.rel (0) target = $region13
  $region12: #{aiayn_forward.30} parent=0 // pred_region
    _
  $region13: #{aiayn_forward.30} parent=0 // pred_fallthru
    _
  // Predicated region
  $region14: #{aiayn_forward.30} parent=0 // pred_check
    _
  $region15: #{aiayn_forward.30} parent=0 // pred_check_branch
    %19 = sbr.rel (0) target = $region17
  $region16: #{aiayn_forward.30} parent=0 // pred_region
    _
  $region17: #{aiayn_forward.30} parent=0 // pred_fallthru
    _
  // Predicated region
  $region18: #{aiayn_forward.30} parent=0 // pred_check
    _
  $region19: #{aiayn_forward.30} parent=0 // pred_check_branch
    %21 = sbr.rel (0) target = $region21
  $region20: #{aiayn_forward.30} parent=0 // pred_region
    _
  $region21: #{aiayn_forward.30} parent=0 // pred_fallthru
    _
  // Predicated region
  $region22: #{aiayn_forward.30} parent=0 // pred_check
    _
  $region23: #{aiayn_forward.30} parent=0 // pred_check_branch
    %23 = sbr.rel (0) target = $region25
  $region24: #{aiayn_forward.30} parent=0 // pred_region
    _
  $region25: #{aiayn_forward.30} parent=0 // pred_fallthru
    _
  // Predicated region
  $region26: #{aiayn_forward.30} parent=0 // pred_check
    _
  $region27: #{aiayn_forward.30} parent=0 // pred_check_branch
    %25 = sbr.rel (0) target = $region29
  $region28: #{aiayn_forward.30} parent=0 // pred_region
    _
  $region29: #{aiayn_forward.30} parent=0 // pred_fallthru
    _
  %v27 = vld [vmem:[%s0] sm:$0xf]
  %v28 = vld [vmem:[%s0 + $0x4] sm:$0xf]
  %v29 = vld [vmem:[%s0 + $0x8] sm:$0x3]
  %v30 = vunpack.c.l.bf16 %v27
  %v31 = vunpack.c.l.bf16 %v28
  %v32 = vunpack.c.l.bf16 %v29
  %v33 = vld [vmem:[%s1] sm:$0xf]
  %v34 = vld [vmem:[%s1 + $0x4] sm:$0xf]
  %v35 = vld [vmem:[%s1 + $0x8] sm:$0xf]
  %v36 = vld [vmem:[%s1 + $0xc] sm:$0xf]
  %v37 = vld [vmem:[%s2] sm:$0x1]
  %v39 = vperm.slane %v37, 0
  %v44 = vunpack.c.l.b16 %v27
  %v45 = vunpack.c.l.b16 %v28
  %v46 = vunpack.c.l.b16 %v29
  %v47 = vpack.c.b16 %v45, %v44
  %v48 = vpack.c.b16 %v46, %v46
  %v53 = vunpack.c.l.b16 %v33
  %v54 = vunpack.c.l.b16 %v34
  %v55 = vunpack.c.l.b16 %v35
  %v56 = vunpack.c.l.b16 %v36
  %v57 = vpack.c.b16 %v54, %v53
  %v58 = vpack.c.b16 %v56, %v55
  %vm61 = vcmask 261120
  %v63 = vsel %vm61, %v47, 0
  %v66 = vsel %vm61, %v48, 0
  %68 = vmatpush.bf16.msra.mxu0 0
  %69 = vmatpush.bf16.msra.mxu0 0
  %70 = vmatpush.bf16.msra.mxu0 0
  %71 = vmatpush.bf16.msra.mxu0 0
  %72 = vmatpush.bf16.msra.mxu0 0
  %73 = vmatpush.bf16.msra.mxu0 0
  %74 = vmatpush.bf16.msra.mxu0 %v58
  %75 = vmatpush.bf16.msra.mxu0 %v57
  %76 = vmatmul.bf16.gmra.mxu0 %v63
  %v77 = vpop.f32.mrf.mxu0
  %v78 = vadd.f32 %v39, %v77
  %v79 = vpop.f32.mrf.mxu0
  %v80 = vadd.f32 %v39, %v79
  %81 = vmatmul.bf16.gmra.mxu0 %v66
  %v82 = vpop.f32.mrf.mxu0
  %v83 = vadd.f32 %v39, %v82
  %v84 = vpop.f32.mrf.mxu0
  %85 = vdwg.mxu0
  %v86 = vmax.f32 %v78, 0.0
  %v87 = vmax.f32 %v80, 0.0
  %v88 = vmax.f32 %v83, 0.0
  %v89 = vld [vmem:[%s3] sm:$0xf]
  %v90 = vld [vmem:[%s3 + $0x4] sm:$0xf]
  %v91 = vld [vmem:[%s3 + $0x8] sm:$0xf]
  %v92 = vld [vmem:[%s3 + $0xc] sm:$0xf]
  %v93 = vld [vmem:[%s3 + $0x10] sm:$0xf]
  %v94 = vld [vmem:[%s3 + $0x14] sm:$0xf]
  %v95 = vld [vmem:[%s3 + $0x18] sm:$0xf]
  %v96 = vld [vmem:[%s3 + $0x1c] sm:$0xf]
  %v97 = vpack.c.bf16 %v87, %v86
  %v98 = vpack.c.bf16 %v88, %v88
  %v107 = vunpack.c.l.b16 %v89
  %v108 = vunpack.c.l.b16 %v90
  %v109 = vunpack.c.l.b16 %v91
  %v110 = vunpack.c.l.b16 %v92
  %v111 = vunpack.c.l.b16 %v93
  %v112 = vunpack.c.l.b16 %v94
  %v113 = vunpack.c.l.b16 %v95
  %v114 = vunpack.c.l.b16 %v96
  %v115 = vpack.c.b16 %v108, %v107
  %v116 = vpack.c.b16 %v110, %v109
  %v117 = vpack.c.b16 %v112, %v111
  %v118 = vpack.c.b16 %v114, %v113
  %vm123 = vcmask 523264
  %v125 = vsel %vm123, %v97, 0
  %v128 = vsel %vm123, %v98, 0
  %130 = vmatpush.bf16.msra.mxu0 0
  %131 = vmatpush.bf16.msra.mxu0 0
  %132 = vmatpush.bf16.msra.mxu0 0
  %133 = vmatpush.bf16.msra.mxu0 0
  %134 = vmatpush.bf16.msra.mxu0 %v118
  %135 = vmatpush.bf16.msra.mxu0 %v117
  %136 = vmatpush.bf16.msra.mxu0 %v116
  %137 = vmatpush.bf16.msra.mxu0 %v115
  %138 = vmatmul.bf16.gmra.mxu0 %v125
  %v139 = vpop.f32.mrf.mxu0
  %v140 = vadd.f32 0.0, %v139
  %v141 = vpop.f32.mrf.mxu0
  %v142 = vadd.f32 0.0, %v141
  %143 = vmatmul.bf16.gmra.mxu0 %v128
  %v144 = vpop.f32.mrf.mxu0
  %v145 = vadd.f32 0.0, %v144
  %v146 = vpop.f32.mrf.mxu0
  %147 = vdwg.mxu0
  %v148 = vadd.f32 %v30, %v140
  %v149 = vadd.f32 %v31, %v142
  %v150 = vadd.f32 %v32, %v145
  %v151 = vld [vmem:[%s4] sm:$0x1]
  %v153 = vperm.slane %v151, 0
  %v155 = vadd.f32 %v148, %v153
  %v156 = vadd.f32 %v149, %v153
  %v157 = vadd.f32 %v150, %v153
  %v158 = vsel %vm61, %v155, 0.0
  %159 = vadd.xlane.f32.xlu0 %v158
  %v160 = vpop.xlane.xlu0 %159
  %v161 = vsel %vm61, %v156, 0.0
  %162 = vadd.xlane.f32.xlu0 %v161
  %v163 = vpop.xlane.xlu0 %162
  %vm164 = vcmask 257024
  %v165 = vsel %vm164, %v157, 0.0
  %166 = vadd.xlane.f32.xlu0 %v165
  %v167 = vpop.xlane.xlu0 %166
  %v168 = vrcp.pop 32.0
  %v169 = vmul.f32 32.0, %v168
  %v170 = vsub.f32 1.0, %v169
  %v171 = vmul.f32 %v168, %v170
  %v172 = vadd.f32 %v168, %v171
  %vm173 = vweird.f32 %v168
  %v174 = vsel %vm173, %v168, %v172
  %v175 = vmul.f32 %v160, %v174
  %v176 = vmul.f32 %v163, %v174
  %v177 = vmul.f32 %v167, %v174
  %v178 = vsub.f32 %v155, %v175
  %v179 = vsub.f32 %v156, %v176
  %v180 = vsub.f32 %v157, %v177
  %v181 = vmul.f32 %v178, %v178
  %v182 = vmul.f32 %v179, %v179
  %v183 = vmul.f32 %v180, %v180
  %v184 = vsel %vm61, %v181, 0.0
  %185 = vadd.xlane.f32.xlu0 %v184
  %v186 = vpop.xlane.xlu0 %185
  %v187 = vsel %vm61, %v182, 0.0
  %188 = vadd.xlane.f32.xlu0 %v187
  %v189 = vpop.xlane.xlu0 %188
  %v190 = vsel %vm164, %v183, 0.0
  %191 = vadd.xlane.f32.xlu0 %v190
  %v192 = vpop.xlane.xlu0 %191
  %v193 = vmul.f32 %v186, %v174
  %v194 = vmul.f32 %v189, %v174
  %v195 = vmul.f32 %v192, %v174
  %v196 = vadd.f32 %v193, 1e-05
  %v197 = vadd.f32 %v194, 1e-05
  %v198 = vadd.f32 %v195, 1e-05
  %v199 = vrsqrt.pop %v196
  %v200 = vmul.f32 %v199, %v196
  %v201 = vmul.f32 %v200, %v199
  %v202 = vmul.f32 0.5, %v201
  %v203 = vsub.f32 1.5, %v202
  %v204 = vmul.f32 %v199, %v203
  %vm205 = vweird.f32 %v196
  %vm206 = vweird.f32 %v199
  %vm207 = vmor %vm205, %vm206
  %v208 = vsel %vm207, %v199, %v204
  %v209 = vrsqrt.pop %v197
  %v210 = vmul.f32 %v209, %v197
  %v211 = vmul.f32 %v210, %v209
  %v212 = vmul.f32 0.5, %v211
  %v213 = vsub.f32 1.5, %v212
  %v214 = vmul.f32 %v209, %v213
  %vm215 = vweird.f32 %v197
  %vm216 = vweird.f32 %v209
  %vm217 = vmor %vm215, %vm216
  %v218 = vsel %vm217, %v209, %v214
  %v219 = vrsqrt.pop %v198
  %v220 = vmul.f32 %v219, %v198
  %v221 = vmul.f32 %v220, %v219
  %v222 = vmul.f32 0.5, %v221
  %v223 = vsub.f32 1.5, %v222
  %v224 = vmul.f32 %v219, %v223
  %vm225 = vweird.f32 %v198
  %vm226 = vweird.f32 %v219
  %vm227 = vmor %vm225, %vm226
  %v228 = vsel %vm227, %v219, %v224
  %v229 = vmul.f32 %v178, %v208
  %v230 = vmul.f32 %v179, %v218
  %v231 = vmul.f32 %v180, %v228
  %v232 = vld [vmem:[%s5] sm:$0x1]
  %v234 = vperm.slane %v232, 0
  %v236 = vmul.f32 %v229, %v234
  %v237 = vmul.f32 %v230, %v234
  %v238 = vmul.f32 %v231, %v234
  %v239 = vld [vmem:[%s6] sm:$0x1]
  %v241 = vperm.slane %v239, 0
  %v243 = vadd.f32 %v236, %v241
  %v244 = vadd.f32 %v237, %v241
  %v245 = vadd.f32 %v238, %v241
  %v246 = vpack.c.bf16 %v243, %v243
  %v247 = vpack.c.bf16 %v244, %v244
  %v248 = vpack.c.bf16 %v245, %v245
  %249 = vst.msk [vmem:[%s7] sm:$0xf] %vm164, %v246
  %250 = vst.msk [vmem:[%s7 + $0x4] sm:$0xf] %vm164, %v247
  %vm251 = vcmask 254976
  %252 = vst.msk [vmem:[%s7 + $0x8] sm:$0x3] %vm251, %v248
  // Predicated region
  $region30: #{aiayn_forward.30} parent=0 // pred_check
    _
  $region31: #{aiayn_forward.30} parent=0 // pred_check_branch
    %254 = sbr.rel (0) target = $region33
  $region32: #{aiayn_forward.30} parent=0 // pred_region
    _
  $region33: #{aiayn_forward.30} parent=0 // pred_fallthru
    _
  // Predicated region
  $region34: #{aiayn_forward.30} parent=0 // pred_check
    _
  $region35: #{aiayn_forward.30} parent=0 // pred_check_branch
    %256 = sbr.rel (0) target = $region37
  $region36: #{aiayn_forward.30} parent=0 // pred_region
    _
  $region37: #{aiayn_forward.30} parent=0 // pred_fallthru
    _

// kernel: aiayn_forward.40
$region0: #{aiayn_forward.40}
  #allocation0 [shape = 'u32[]', space=smem, size = 0x4, offset = 0x4, fixed_abs, tag = 'smem constant byte address 0x4 - core index']
  #allocation1 [shape = 'u32[72,128]{1,0:T(1,128)}', space=vmem, size = 0x9000, scoped, tag = 'internal scratch']
  %s0 = inlined_call_operand.vmem [shape: bf16[20,32], index: 0, kind: input, shape index: {}]
  %s1 = inlined_call_operand.vmem [shape: bf16[32,64], index: 1, kind: input, shape index: {}]
  %s2 = inlined_call_operand.vmem [shape: f32[1,64], index: 2, kind: input, shape index: {}]
  %s3 = inlined_call_operand.vmem [shape: bf16[20,64], index: 3, kind: output, shape index: {}]
  %s4 = sld [smem:[#allocation0]]
  $region22: #{aiayn_forward.40} parent=0
    _
  %s6 = ssub.s32 1, %s4
  %s7 = scalar_select 0, %s6, %s4
  // Predicated region
  $region2: #{aiayn_forward.40} parent=0 // pred_check
    _
  $region3: #{aiayn_forward.40} parent=0 // pred_check_branch
    %9 = sbr.rel (0) target = $region5
  $region4: #{aiayn_forward.40} parent=0 // pred_region
    _
  $region5: #{aiayn_forward.40} parent=0 // pred_fallthru
    _
  // Predicated region
  $region6: #{aiayn_forward.40} parent=0 // pred_check
    _
  $region7: #{aiayn_forward.40} parent=0 // pred_check_branch
    %11 = sbr.rel (0) target = $region9
  $region8: #{aiayn_forward.40} parent=0 // pred_region
    _
  $region9: #{aiayn_forward.40} parent=0 // pred_fallthru
    _
  // Predicated region
  $region10: #{aiayn_forward.40} parent=0 // pred_check
    _
  $region11: #{aiayn_forward.40} parent=0 // pred_check_branch
    %13 = sbr.rel (0) target = $region13
  $region12: #{aiayn_forward.40} parent=0 // pred_region
    _
  $region13: #{aiayn_forward.40} parent=0 // pred_fallthru
    _
  %v15 = vld [vmem:[%s0] sm:$0xf]
  %v16 = vld [vmem:[%s0 + $0x4] sm:$0xf]
  %v17 = vld [vmem:[%s0 + $0x8] sm:$0x3]
  %v18 = vld [vmem:[%s1] sm:$0xf]
  %v19 = vld [vmem:[%s1 + $0x4] sm:$0xf]
  %v20 = vld [vmem:[%s1 + $0x8] sm:$0xf]
  %v21 = vld [vmem:[%s1 + $0xc] sm:$0xf]
  %v22 = vld [vmem:[%s2] sm:$0x1]
  %v24 = vperm.slane %v22, 0
  %v29 = vunpack.c.l.b16 %v15
  %v30 = vunpack.c.l.b16 %v16
  %v31 = vunpack.c.l.b16 %v17
  %v32 = vpack.c.b16 %v30, %v29
  %v33 = vpack.c.b16 %v31, %v31
  %v38 = vunpack.c.l.b16 %v18
  %v39 = vunpack.c.l.b16 %v19
  %v40 = vunpack.c.l.b16 %v20
  %v41 = vunpack.c.l.b16 %v21
  %v42 = vpack.c.b16 %v39, %v38
  %v43 = vpack.c.b16 %v41, %v40
  %vm46 = vcmask 261120
  %v48 = vsel %vm46, %v32, 0
  %v51 = vsel %vm46, %v33, 0
  %53 = vmatpush.bf16.msra.mxu0 0
  %54 = vmatpush.bf16.msra.mxu0 0
  %55 = vmatpush.bf16.msra.mxu0 0
  %56 = vmatpush.bf16.msra.mxu0 0
  %57 = vmatpush.bf16.msra.mxu0 0
  %58 = vmatpush.bf16.msra.mxu0 0
  %59 = vmatpush.bf16.msra.mxu0 %v43
  %60 = vmatpush.bf16.msra.mxu0 %v42
  %61 = vmatmul.bf16.gmra.mxu0 %v48
  %v62 = vpop.f32.mrf.mxu0
  %v63 = vadd.f32 %v24, %v62
  %v64 = vpop.f32.mrf.mxu0
  %v65 = vadd.f32 %v24, %v64
  %66 = vmatmul.bf16.gmra.mxu0 %v51
  %v67 = vpop.f32.mrf.mxu0
  %v68 = vadd.f32 %v24, %v67
  %v69 = vpop.f32.mrf.mxu0
  %70 = vdwg.mxu0
  %v71 = vpack.c.bf16 %v63, %v63
  %v72 = vpack.c.bf16 %v65, %v65
  %v73 = vpack.c.bf16 %v68, %v68
  %vm74 = vcmask 519168
  %75 = vst.msk [vmem:[%s3] sm:$0xf] %vm74, %v71
  %76 = vst.msk [vmem:[%s3 + $0x4] sm:$0xf] %vm74, %v72
  %vm77 = vcmask 517120
  %78 = vst.msk [vmem:[%s3 + $0x8] sm:$0x3] %vm77, %v73
  // Predicated region
  $region14: #{aiayn_forward.40} parent=0 // pred_check
    _
  $region15: #{aiayn_forward.40} parent=0 // pred_check_branch
    %80 = sbr.rel (0) target = $region17
  $region16: #{aiayn_forward.40} parent=0 // pred_region
    _
  $region17: #{aiayn_forward.40} parent=0 // pred_fallthru
    _
  // Predicated region
  $region18: #{aiayn_forward.40} parent=0 // pred_check
    _
  $region19: #{aiayn_forward.40} parent=0 // pred_check_branch
    %82 = sbr.rel (0) target = $region21
  $region20: #{aiayn_forward.40} parent=0 // pred_region
    _
  $region21: #{aiayn_forward.40} parent=0 // pred_fallthru
    _

// kernel: aiayn_forward.35
$region0: #{aiayn_forward.35}
  #allocation0 [shape = 'u32[]', space=smem, size = 0x4, offset = 0x4, fixed_abs, tag = 'smem constant byte address 0x4 - core index']
  #allocation1 [shape = 'u32[72,128]{1,0:T(1,128)}', space=vmem, size = 0x9000, scoped, tag = 'internal scratch']
  %s0 = inlined_call_operand.vmem [shape: bf16[20,32], index: 0, kind: input, shape index: {}]
  %s1 = inlined_call_operand.vmem [shape: f32[1,32], index: 1, kind: input, shape index: {}]
  %s2 = inlined_call_operand.vmem [shape: f32[1,32], index: 2, kind: input, shape index: {}]
  %s3 = inlined_call_operand.vmem [shape: bf16[20,32], index: 3, kind: output, shape index: {}]
  %s4 = sld [smem:[#allocation0]]
  $region22: #{aiayn_forward.35} parent=0
    _
  %s6 = ssub.s32 1, %s4
  %s7 = scalar_select 0, %s6, %s4
  // Predicated region
  $region2: #{aiayn_forward.35} parent=0 // pred_check
    _
  $region3: #{aiayn_forward.35} parent=0 // pred_check_branch
    %9 = sbr.rel (0) target = $region5
  $region4: #{aiayn_forward.35} parent=0 // pred_region
    _
  $region5: #{aiayn_forward.35} parent=0 // pred_fallthru
    _
  // Predicated region
  $region6: #{aiayn_forward.35} parent=0 // pred_check
    _
  $region7: #{aiayn_forward.35} parent=0 // pred_check_branch
    %11 = sbr.rel (0) target = $region9
  $region8: #{aiayn_forward.35} parent=0 // pred_region
    _
  $region9: #{aiayn_forward.35} parent=0 // pred_fallthru
    _
  // Predicated region
  $region10: #{aiayn_forward.35} parent=0 // pred_check
    _
  $region11: #{aiayn_forward.35} parent=0 // pred_check_branch
    %13 = sbr.rel (0) target = $region13
  $region12: #{aiayn_forward.35} parent=0 // pred_region
    _
  $region13: #{aiayn_forward.35} parent=0 // pred_fallthru
    _
  %v14 = vld [vmem:[%s0] sm:$0xf]
  %v15 = vld [vmem:[%s0 + $0x4] sm:$0xf]
  %v16 = vld [vmem:[%s0 + $0x8] sm:$0x3]
  %v17 = vunpack.c.l.bf16 %v14
  %v18 = vunpack.c.l.bf16 %v15
  %v19 = vunpack.c.l.bf16 %v16
  %vm20 = vcmask 261120
  %v21 = vsel %vm20, %v17, 0.0
  %22 = vadd.xlane.f32.xlu0 %v21
  %v23 = vpop.xlane.xlu0 %22
  %v24 = vsel %vm20, %v18, 0.0
  %25 = vadd.xlane.f32.xlu0 %v24
  %v26 = vpop.xlane.xlu0 %25
  %vm27 = vcmask 257024
  %v28 = vsel %vm27, %v19, 0.0
  %29 = vadd.xlane.f32.xlu0 %v28
  %v30 = vpop.xlane.xlu0 %29
  %v31 = vrcp.pop 32.0
  %v32 = vmul.f32 32.0, %v31
  %v33 = vsub.f32 1.0, %v32
  %v34 = vmul.f32 %v31, %v33
  %v35 = vadd.f32 %v31, %v34
  %vm36 = vweird.f32 %v31
  %v37 = vsel %vm36, %v31, %v35
  %v38 = vmul.f32 %v23, %v37
  %v39 = vmul.f32 %v26, %v37
  %v40 = vmul.f32 %v30, %v37
  %v41 = vsub.f32 %v17, %v38
  %v42 = vsub.f32 %v18, %v39
  %v43 = vsub.f32 %v19, %v40
  %v44 = vmul.f32 %v41, %v41
  %v45 = vmul.f32 %v42, %v42
  %v46 = vmul.f32 %v43, %v43
  %v47 = vsel %vm20, %v44, 0.0
  %48 = vadd.xlane.f32.xlu0 %v47
  %v49 = vpop.xlane.xlu0 %48
  %v50 = vsel %vm20, %v45, 0.0
  %51 = vadd.xlane.f32.xlu0 %v50
  %v52 = vpop.xlane.xlu0 %51
  %v53 = vsel %vm27, %v46, 0.0
  %54 = vadd.xlane.f32.xlu0 %v53
  %v55 = vpop.xlane.xlu0 %54
  %v56 = vmul.f32 %v49, %v37
  %v57 = vmul.f32 %v52, %v37
  %v58 = vmul.f32 %v55, %v37
  %v59 = vadd.f32 %v56, 1e-05
  %v60 = vadd.f32 %v57, 1e-05
  %v61 = vadd.f32 %v58, 1e-05
  %v62 = vrsqrt.pop %v59
  %v63 = vmul.f32 %v62, %v59
  %v64 = vmul.f32 %v63, %v62
  %v65 = vmul.f32 0.5, %v64
  %v66 = vsub.f32 1.5, %v65
  %v67 = vmul.f32 %v62, %v66
  %vm68 = vweird.f32 %v59
  %vm69 = vweird.f32 %v62
  %vm70 = vmor %vm68, %vm69
  %v71 = vsel %vm70, %v62, %v67
  %v72 = vrsqrt.pop %v60
  %v73 = vmul.f32 %v72, %v60
  %v74 = vmul.f32 %v73, %v72
  %v75 = vmul.f32 0.5, %v74
  %v76 = vsub.f32 1.5, %v75
  %v77 = vmul.f32 %v72, %v76
  %vm78 = vweird.f32 %v60
  %vm79 = vweird.f32 %v72
  %vm80 = vmor %vm78, %vm79
  %v81 = vsel %vm80, %v72, %v77
  %v82 = vrsqrt.pop %v61
  %v83 = vmul.f32 %v82, %v61
  %v84 = vmul.f32 %v83, %v82
  %v85 = vmul.f32 0.5, %v84
  %v86 = vsub.f32 1.5, %v85
  %v87 = vmul.f32 %v82, %v86
  %vm88 = vweird.f32 %v61
  %vm89 = vweird.f32 %v82
  %vm90 = vmor %vm88, %vm89
  %v91 = vsel %vm90, %v82, %v87
  %v92 = vmul.f32 %v41, %v71
  %v93 = vmul.f32 %v42, %v81
  %v94 = vmul.f32 %v43, %v91
  %v95 = vld [vmem:[%s1] sm:$0x1]
  %v97 = vperm.slane %v95, 0
  %v99 = vmul.f32 %v92, %v97
  %v100 = vmul.f32 %v93, %v97
  %v101 = vmul.f32 %v94, %v97
  %v102 = vld [vmem:[%s2] sm:$0x1]
  %v104 = vperm.slane %v102, 0
  %v106 = vadd.f32 %v99, %v104
  %v107 = vadd.f32 %v100, %v104
  %v108 = vadd.f32 %v101, %v104
  %v109 = vpack.c.bf16 %v106, %v106
  %v110 = vpack.c.bf16 %v107, %v107
  %v111 = vpack.c.bf16 %v108, %v108
  %112 = vst.msk [vmem:[%s3] sm:$0xf] %vm27, %v109
  %113 = vst.msk [vmem:[%s3 + $0x4] sm:$0xf] %vm27, %v110
  %vm114 = vcmask 254976
  %115 = vst.msk [vmem:[%s3 + $0x8] sm:$0x3] %vm114, %v111
  // Predicated region
  $region14: #{aiayn_forward.35} parent=0 // pred_check
    _
  $region15: #{aiayn_forward.35} parent=0 // pred_check_branch
    %117 = sbr.rel (0) target = $region17
  $region16: #{aiayn_forward.35} parent=0 // pred_region
    _
  $region17: #{aiayn_forward.35} parent=0 // pred_fallthru
    _
  // Predicated region
  $region18: #{aiayn_forward.35} parent=0 // pred_check
    _
  $region19: #{aiayn_forward.35} parent=0 // pred_check_branch
    %119 = sbr.rel (0) target = $region21
  $region20: #{aiayn_forward.35} parent=0 // pred_region
    _
  $region21: #{aiayn_forward.35} parent=0 // pred_fallthru
    _

// kernel: aiayn_forward.36
$region0: #{aiayn_forward.36}
  #allocation0 [shape = 'u32[]', space=smem, size = 0x4, offset = 0x4, fixed_abs, tag = 'smem constant byte address 0x4 - core index']
  #allocation1 [shape = 'u32[72,128]{1,0:T(1,128)}', space=vmem, size = 0x9000, scoped, tag = 'internal scratch']
  %s0 = inlined_call_operand.vmem [shape: bf16[16,32], index: 0, kind: input, shape index: {}]
  %s1 = inlined_call_operand.vmem [shape: bf16[32,96], index: 1, kind: input, shape index: {}]
  %s2 = inlined_call_operand.vmem [shape: f32[1,96], index: 2, kind: input, shape index: {}]
  %s3 = inlined_call_operand.vmem [shape: bf16[16,96], index: 3, kind: output, shape index: {}]
  %s4 = sld [smem:[#allocation0]]
  $region22: #{aiayn_forward.36} parent=0
    _
  %s6 = ssub.s32 1, %s4
  %s7 = scalar_select 0, %s6, %s4
  // Predicated region
  $region2: #{aiayn_forward.36} parent=0 // pred_check
    _
  $region3: #{aiayn_forward.36} parent=0 // pred_check_branch
    %9 = sbr.rel (0) target = $region5
  $region4: #{aiayn_forward.36} parent=0 // pred_region
    _
  $region5: #{aiayn_forward.36} parent=0 // pred_fallthru
    _
  // Predicated region
  $region6: #{aiayn_forward.36} parent=0 // pred_check
    _
  $region7: #{aiayn_forward.36} parent=0 // pred_check_branch
    %11 = sbr.rel (0) target = $region9
  $region8: #{aiayn_forward.36} parent=0 // pred_region
    _
  $region9: #{aiayn_forward.36} parent=0 // pred_fallthru
    _
  // Predicated region
  $region10: #{aiayn_forward.36} parent=0 // pred_check
    _
  $region11: #{aiayn_forward.36} parent=0 // pred_check_branch
    %13 = sbr.rel (0) target = $region13
  $region12: #{aiayn_forward.36} parent=0 // pred_region
    _
  $region13: #{aiayn_forward.36} parent=0 // pred_fallthru
    _
  %v15 = vld [vmem:[%s0] sm:$0xf]
  %v16 = vld [vmem:[%s0 + $0x4] sm:$0xf]
  %v17 = vld [vmem:[%s1] sm:$0xf]
  %v18 = vld [vmem:[%s1 + $0x4] sm:$0xf]
  %v19 = vld [vmem:[%s1 + $0x8] sm:$0xf]
  %v20 = vld [vmem:[%s1 + $0xc] sm:$0xf]
  %v21 = vld [vmem:[%s2] sm:$0x1]
  %v23 = vperm.slane %v21, 0
  %v27 = vunpack.c.l.b16 %v15
  %v28 = vunpack.c.l.b16 %v16
  %v29 = vpack.c.b16 %v28, %v27
  %v34 = vunpack.c.l.b16 %v17
  %v35 = vunpack.c.l.b16 %v18
  %v36 = vunpack.c.l.b16 %v19
  %v37 = vunpack.c.l.b16 %v20
  %v38 = vpack.c.b16 %v35, %v34
  %v39 = vpack.c.b16 %v37, %v36
  %vm42 = vcmask 261120
  %v44 = vsel %vm42, %v29, 0
  %46 = vmatpush.bf16.msra.mxu0 0
  %47 = vmatpush.bf16.msra.mxu0 0
  %48 = vmatpush.bf16.msra.mxu0 0
  %49 = vmatpush.bf16.msra.mxu0 0
  %50 = vmatpush.bf16.msra.mxu0 0
  %51 = vmatpush.bf16.msra.mxu0 0
  %52 = vmatpush.bf16.msra.mxu0 %v39
  %53 = vmatpush.bf16.msra.mxu0 %v38
  %54 = vmatmul.bf16.gmra.mxu0 %v44
  %v55 = vpop.f32.mrf.mxu0
  %v56 = vadd.f32 %v23, %v55
  %v57 = vpop.f32.mrf.mxu0
  %v58 = vadd.f32 %v23, %v57
  %59 = vdwg.mxu0
  %v60 = vpack.c.bf16 %v56, %v56
  %v61 = vpack.c.bf16 %v58, %v58
  %vm62 = vcmask 781312
  %63 = vst.msk [vmem:[%s3] sm:$0xf] %vm62, %v60
  %64 = vst.msk [vmem:[%s3 + $0x4] sm:$0xf] %vm62, %v61
  // Predicated region
  $region14: #{aiayn_forward.36} parent=0 // pred_check
    _
  $region15: #{aiayn_forward.36} parent=0 // pred_check_branch
    %66 = sbr.rel (0) target = $region17
  $region16: #{aiayn_forward.36} parent=0 // pred_region
    _
  $region17: #{aiayn_forward.36} parent=0 // pred_fallthru
    _
  // Predicated region
  $region18: #{aiayn_forward.36} parent=0 // pred_check
    _
  $region19: #{aiayn_forward.36} parent=0 // pred_check_branch
    %68 = sbr.rel (0) target = $region21
  $region20: #{aiayn_forward.36} parent=0 // pred_region
    _
  $region21: #{aiayn_forward.36} parent=0 // pred_fallthru
    _

// kernel: aiayn_forward.38
$region0: #{aiayn_forward.38}
  #allocation0 [shape = 'u32[]', space=smem, size = 0x4, offset = 0x4, fixed_abs, tag = 'smem constant byte address 0x4 - core index']
  #allocation1 [shape = 'u32[72,128]{1,0:T(1,128)}', space=vmem, size = 0x9000, scoped, tag = 'internal scratch']
  %s0 = inlined_call_operand.vmem [shape: bf16[16,32], index: 0, kind: input, shape index: {}]
  %s1 = inlined_call_operand.vmem [shape: bf16[32,32], index: 1, kind: input, shape index: {}]
  %s2 = inlined_call_operand.vmem [shape: f32[1,32], index: 2, kind: input, shape index: {}]
  %s3 = inlined_call_operand.vmem [shape: bf16[16,32], index: 3, kind: input, shape index: {}]
  %s4 = inlined_call_operand.vmem [shape: f32[1,32], index: 4, kind: input, shape index: {}]
  %s5 = inlined_call_operand.vmem [shape: f32[1,32], index: 5, kind: input, shape index: {}]
  %s6 = inlined_call_operand.vmem [shape: bf16[16,32], index: 6, kind: output, shape index: {}]
  %s7 = sld [smem:[#allocation0]]
  $region34: #{aiayn_forward.38} parent=0
    _
  %s9 = ssub.s32 1, %s7
  %s10 = scalar_select 0, %s9, %s7
  // Predicated region
  $region2: #{aiayn_forward.38} parent=0 // pred_check
    _
  $region3: #{aiayn_forward.38} parent=0 // pred_check_branch
    %12 = sbr.rel (0) target = $region5
  $region4: #{aiayn_forward.38} parent=0 // pred_region
    _
  $region5: #{aiayn_forward.38} parent=0 // pred_fallthru
    _
  // Predicated region
  $region6: #{aiayn_forward.38} parent=0 // pred_check
    _
  $region7: #{aiayn_forward.38} parent=0 // pred_check_branch
    %14 = sbr.rel (0) target = $region9
  $region8: #{aiayn_forward.38} parent=0 // pred_region
    _
  $region9: #{aiayn_forward.38} parent=0 // pred_fallthru
    _
  // Predicated region
  $region10: #{aiayn_forward.38} parent=0 // pred_check
    _
  $region11: #{aiayn_forward.38} parent=0 // pred_check_branch
    %16 = sbr.rel (0) target = $region13
  $region12: #{aiayn_forward.38} parent=0 // pred_region
    _
  $region13: #{aiayn_forward.38} parent=0 // pred_fallthru
    _
  // Predicated region
  $region14: #{aiayn_forward.38} parent=0 // pred_check
    _
  $region15: #{aiayn_forward.38} parent=0 // pred_check_branch
    %18 = sbr.rel (0) target = $region17
  $region16: #{aiayn_forward.38} parent=0 // pred_region
    _
  $region17: #{aiayn_forward.38} parent=0 // pred_fallthru
    _
  // Predicated region
  $region18: #{aiayn_forward.38} parent=0 // pred_check
    _
  $region19: #{aiayn_forward.38} parent=0 // pred_check_branch
    %20 = sbr.rel (0) target = $region21
  $region20: #{aiayn_forward.38} parent=0 // pred_region
    _
  $region21: #{aiayn_forward.38} parent=0 // pred_fallthru
    _
  // Predicated region
  $region22: #{aiayn_forward.38} parent=0 // pred_check
    _
  $region23: #{aiayn_forward.38} parent=0 // pred_check_branch
    %22 = sbr.rel (0) target = $region25
  $region24: #{aiayn_forward.38} parent=0 // pred_region
    _
  $region25: #{aiayn_forward.38} parent=0 // pred_fallthru
    _
  %v24 = vld [vmem:[%s0] sm:$0xf]
  %v25 = vld [vmem:[%s0 + $0x4] sm:$0xf]
  %v26 = vld [vmem:[%s1] sm:$0xf]
  %v27 = vld [vmem:[%s1 + $0x4] sm:$0xf]
  %v28 = vld [vmem:[%s1 + $0x8] sm:$0xf]
  %v29 = vld [vmem:[%s1 + $0xc] sm:$0xf]
  %v30 = vld [vmem:[%s2] sm:$0x1]
  %v32 = vperm.slane %v30, 0
  %v36 = vunpack.c.l.b16 %v24
  %v37 = vunpack.c.l.b16 %v25
  %v38 = vpack.c.b16 %v37, %v36
  %v43 = vunpack.c.l.b16 %v26
  %v44 = vunpack.c.l.b16 %v27
  %v45 = vunpack.c.l.b16 %v28
  %v46 = vunpack.c.l.b16 %v29
  %v47 = vpack.c.b16 %v44, %v43
  %v48 = vpack.c.b16 %v46, %v45
  %vm51 = vcmask 261120
  %v53 = vsel %vm51, %v38, 0
  %55 = vmatpush.bf16.msra.mxu0 0
  %56 = vmatpush.bf16.msra.mxu0 0
  %57 = vmatpush.bf16.msra.mxu0 0
  %58 = vmatpush.bf16.msra.mxu0 0
  %59 = vmatpush.bf16.msra.mxu0 0
  %60 = vmatpush.bf16.msra.mxu0 0
  %61 = vmatpush.bf16.msra.mxu0 %v48
  %62 = vmatpush.bf16.msra.mxu0 %v47
  %63 = vmatmul.bf16.gmra.mxu0 %v53
  %v64 = vpop.f32.mrf.mxu0
  %v65 = vadd.f32 %v32, %v64
  %v66 = vpop.f32.mrf.mxu0
  %v67 = vadd.f32 %v32, %v66
  %68 = vdwg.mxu0
  %v69 = vld [vmem:[%s3] sm:$0xf]
  %v70 = vld [vmem:[%s3 + $0x4] sm:$0xf]
  %v71 = vunpack.c.l.bf16 %v69
  %v72 = vunpack.c.l.bf16 %v70
  %v73 = vadd.f32 %v71, %v65
  %v74 = vadd.f32 %v72, %v67
  %v75 = vsel %vm51, %v73, 0.0
  %76 = vadd.xlane.f32.xlu0 %v75
  %v77 = vpop.xlane.xlu0 %76
  %v78 = vsel %vm51, %v74, 0.0
  %79 = vadd.xlane.f32.xlu0 %v78
  %v80 = vpop.xlane.xlu0 %79
  %v81 = vrcp.pop 32.0
  %v82 = vmul.f32 32.0, %v81
  %v83 = vsub.f32 1.0, %v82
  %v84 = vmul.f32 %v81, %v83
  %v85 = vadd.f32 %v81, %v84
  %vm86 = vweird.f32 %v81
  %v87 = vsel %vm86, %v81, %v85
  %v88 = vmul.f32 %v77, %v87
  %v89 = vmul.f32 %v80, %v87
  %v90 = vsub.f32 %v73, %v88
  %v91 = vsub.f32 %v74, %v89
  %v92 = vmul.f32 %v90, %v90
  %v93 = vmul.f32 %v91, %v91
  %v94 = vsel %vm51, %v92, 0.0
  %95 = vadd.xlane.f32.xlu0 %v94
  %v96 = vpop.xlane.xlu0 %95
  %v97 = vsel %vm51, %v93, 0.0
  %98 = vadd.xlane.f32.xlu0 %v97
  %v99 = vpop.xlane.xlu0 %98
  %v100 = vmul.f32 %v96, %v87
  %v101 = vmul.f32 %v99, %v87
  %v102 = vadd.f32 %v100, 1e-05
  %v103 = vadd.f32 %v101, 1e-05
  %v104 = vrsqrt.pop %v102
  %v105 = vmul.f32 %v104, %v102
  %v106 = vmul.f32 %v105, %v104
  %v107 = vmul.f32 0.5, %v106
  %v108 = vsub.f32 1.5, %v107
  %v109 = vmul.f32 %v104, %v108
  %vm110 = vweird.f32 %v102
  %vm111 = vweird.f32 %v104
  %vm112 = vmor %vm110, %vm111
  %v113 = vsel %vm112, %v104, %v109
  %v114 = vrsqrt.pop %v103
  %v115 = vmul.f32 %v114, %v103
  %v116 = vmul.f32 %v115, %v114
  %v117 = vmul.f32 0.5, %v116
  %v118 = vsub.f32 1.5, %v117
  %v119 = vmul.f32 %v114, %v118
  %vm120 = vweird.f32 %v103
  %vm121 = vweird.f32 %v114
  %vm122 = vmor %vm120, %vm121
  %v123 = vsel %vm122, %v114, %v119
  %v124 = vmul.f32 %v90, %v113
  %v125 = vmul.f32 %v91, %v123
  %v126 = vld [vmem:[%s4] sm:$0x1]
  %v128 = vperm.slane %v126, 0
  %v130 = vmul.f32 %v124, %v128
  %v131 = vmul.f32 %v125, %v128
  %v132 = vld [vmem:[%s5] sm:$0x1]
  %v134 = vperm.slane %v132, 0
  %v136 = vadd.f32 %v130, %v134
  %v137 = vadd.f32 %v131, %v134
  %v138 = vpack.c.bf16 %v136, %v136
  %v139 = vpack.c.bf16 %v137, %v137
  %vm140 = vcmask 257024
  %141 = vst.msk [vmem:[%s6] sm:$0xf] %vm140, %v138
  %142 = vst.msk [vmem:[%s6 + $0x4] sm:$0xf] %vm140, %v139
  // Predicated region
  $region26: #{aiayn_forward.38} parent=0 // pred_check
    _
  $region27: #{aiayn_forward.38} parent=0 // pred_check_branch
    %144 = sbr.rel (0) target = $region29
  $region28: #{aiayn_forward.38} parent=0 // pred_region
    _
  $region29: #{aiayn_forward.38} parent=0 // pred_fallthru
    _
  // Predicated region
  $region30: #{aiayn_forward.38} parent=0 // pred_check
    _
  $region31: #{aiayn_forward.38} parent=0 // pred_check_branch
    %146 = sbr.rel (0) target = $region33
  $region32: #{aiayn_forward.38} parent=0 // pred_region
    _
  $region33: #{aiayn_forward.38} parent=0 // pred_fallthru
    _

// kernel: aiayn_forward.39
$region0: #{aiayn_forward.39}
  #allocation0 [shape = 'u32[]', space=smem, size = 0x4, offset = 0x4, fixed_abs, tag = 'smem constant byte address 0x4 - core index']
  #allocation1 [shape = 'u32[72,128]{1,0:T(1,128)}', space=vmem, size = 0x9000, scoped, tag = 'internal scratch']
  %s0 = inlined_call_operand.vmem [shape: bf16[16,32], index: 0, kind: input, shape index: {}]
  %s1 = inlined_call_operand.vmem [shape: bf16[32,32], index: 1, kind: input, shape index: {}]
  %s2 = inlined_call_operand.vmem [shape: f32[1,32], index: 2, kind: input, shape index: {}]
  %s3 = inlined_call_operand.vmem [shape: bf16[16,32], index: 3, kind: output, shape index: {}]
  %s4 = sld [smem:[#allocation0]]
  $region22: #{aiayn_forward.39} parent=0
    _
  %s6 = ssub.s32 1, %s4
  %s7 = scalar_select 0, %s6, %s4
  // Predicated region
  $region2: #{aiayn_forward.39} parent=0 // pred_check
    _
  $region3: #{aiayn_forward.39} parent=0 // pred_check_branch
    %9 = sbr.rel (0) target = $region5
  $region4: #{aiayn_forward.39} parent=0 // pred_region
    _
  $region5: #{aiayn_forward.39} parent=0 // pred_fallthru
    _
  // Predicated region
  $region6: #{aiayn_forward.39} parent=0 // pred_check
    _
  $region7: #{aiayn_forward.39} parent=0 // pred_check_branch
    %11 = sbr.rel (0) target = $region9
  $region8: #{aiayn_forward.39} parent=0 // pred_region
    _
  $region9: #{aiayn_forward.39} parent=0 // pred_fallthru
    _
  // Predicated region
  $region10: #{aiayn_forward.39} parent=0 // pred_check
    _
  $region11: #{aiayn_forward.39} parent=0 // pred_check_branch
    %13 = sbr.rel (0) target = $region13
  $region12: #{aiayn_forward.39} parent=0 // pred_region
    _
  $region13: #{aiayn_forward.39} parent=0 // pred_fallthru
    _
  %v15 = vld [vmem:[%s0] sm:$0xf]
  %v16 = vld [vmem:[%s0 + $0x4] sm:$0xf]
  %v17 = vld [vmem:[%s1] sm:$0xf]
  %v18 = vld [vmem:[%s1 + $0x4] sm:$0xf]
  %v19 = vld [vmem:[%s1 + $0x8] sm:$0xf]
  %v20 = vld [vmem:[%s1 + $0xc] sm:$0xf]
  %v21 = vld [vmem:[%s2] sm:$0x1]
  %v23 = vperm.slane %v21, 0
  %v27 = vunpack.c.l.b16 %v15
  %v28 = vunpack.c.l.b16 %v16
  %v29 = vpack.c.b16 %v28, %v27
  %v34 = vunpack.c.l.b16 %v17
  %v35 = vunpack.c.l.b16 %v18
  %v36 = vunpack.c.l.b16 %v19
  %v37 = vunpack.c.l.b16 %v20
  %v38 = vpack.c.b16 %v35, %v34
  %v39 = vpack.c.b16 %v37, %v36
  %vm42 = vcmask 261120
  %v44 = vsel %vm42, %v29, 0
  %46 = vmatpush.bf16.msra.mxu0 0
  %47 = vmatpush.bf16.msra.mxu0 0
  %48 = vmatpush.bf16.msra.mxu0 0
  %49 = vmatpush.bf16.msra.mxu0 0
  %50 = vmatpush.bf16.msra.mxu0 0
  %51 = vmatpush.bf16.msra.mxu0 0
  %52 = vmatpush.bf16.msra.mxu0 %v39
  %53 = vmatpush.bf16.msra.mxu0 %v38
  %54 = vmatmul.bf16.gmra.mxu0 %v44
  %v55 = vpop.f32.mrf.mxu0
  %v56 = vadd.f32 %v23, %v55
  %v57 = vpop.f32.mrf.mxu0
  %v58 = vadd.f32 %v23, %v57
  %59 = vdwg.mxu0
  %v60 = vpack.c.bf16 %v56, %v56
  %v61 = vpack.c.bf16 %v58, %v58
  %vm62 = vcmask 257024
  %63 = vst.msk [vmem:[%s3] sm:$0xf] %vm62, %v60
  %64 = vst.msk [vmem:[%s3 + $0x4] sm:$0xf] %vm62, %v61
  // Predicated region
  $region14: #{aiayn_forward.39} parent=0 // pred_check
    _
  $region15: #{aiayn_forward.39} parent=0 // pred_check_branch
    %66 = sbr.rel (0) target = $region17
  $region16: #{aiayn_forward.39} parent=0 // pred_region
    _
  $region17: #{aiayn_forward.39} parent=0 // pred_fallthru
    _
  // Predicated region
  $region18: #{aiayn_forward.39} parent=0 // pred_check
    _
  $region19: #{aiayn_forward.39} parent=0 // pred_check_branch
    %68 = sbr.rel (0) target = $region21
  $region20: #{aiayn_forward.39} parent=0 // pred_region
    _
  $region21: #{aiayn_forward.39} parent=0 // pred_fallthru
    _

// kernel: aiayn_forward.37
$region0: #{aiayn_forward.37}
  #allocation0 [shape = 'u32[]', space=smem, size = 0x4, offset = 0x4, fixed_abs, tag = 'smem constant byte address 0x4 - core index']
  #allocation1 [shape = 'u32[72,128]{1,0:T(1,128)}', space=vmem, size = 0x9000, scoped, tag = 'internal scratch']
  %s0 = inlined_call_operand.vmem [shape: bf16[2,8,96], index: 0, kind: input, shape index: {}]
  %s1 = inlined_call_operand.vmem [shape: bf16[2,8,32], index: 1, kind: output, shape index: {}]
  %s2 = sld [smem:[#allocation0]]
  $region37: #{aiayn_forward.37} parent=0
    _
  %s4 = ssub.s32 1, %s2
  %s5 = scalar_select 0, %s4, %s2
  loop: start=0, step=1, limit=4
  $region2: #{aiayn_forward.37} parent=0 // loop_pre_header
    _
  $region3: #{aiayn_forward.37} parent=0 // loop_header
    %s7 = sphi 0, %s11
    %p8 = scmp.ge.s32.totalorder %s7, 4
    %s17 = sphi 0, %s19
    %s20 = sphi 0, %s17
    %s21 = sphi 0, %s20
    %s37 = sphi 0, %s21
    %s43 = sphi 0, %s45
    %s46 = sphi 0, %s43
    %s47 = sphi 0, %s46
    %s63 = sphi 0, %s47
  $region4: #{aiayn_forward.37} parent=0 // loop_header_branch
    %10 = sbr.rel (%p8) target = $region8
  $region5: #{aiayn_forward.37} parent=0 // loop_body
    %s12 = ssub.s32 %s7, 1
    %s13 = ssub.s32 %s7, 2
    %s14 = sadd.s32 %s7, 1
    %s15 = ssub.s32 %s7, %s14
    %p16 = scmp.eq.s32.totalorder %s15, 0
    %s18 = sadd.s32 %s17, 1
    %s19 = scalar_select %p16, %s17, %s18
    %p22 = pneg %p16
    %p23 = scmp.eq.s32.totalorder %s7, 1
    %p24 = por %p22, %p23
    %p25 = scmp.ne.s32.totalorder %s17, %s20
    %p26 = scmp.eq.s32.totalorder %s7, 0
    %p27 = por %p25, %p26
    %p28 = scmp.ne.s32.totalorder %s17, %s20
    %p29 = scmp.eq.s32.totalorder %s12, 1
    %p30 = por %p28, %p29
    %p31 = scmp.ne.s32.totalorder %s20, %s21
    %p32 = scmp.eq.s32.totalorder %s12, 0
    %p33 = por %p31, %p32
    %p34 = scmp.ne.s32.totalorder %s20, %s21
    %p35 = scmp.eq.s32.totalorder %s13, 1
    %p36 = por %p34, %p35
    %p38 = scmp.ne.s32.totalorder %s21, %s37
    %p39 = scmp.eq.s32.totalorder %s13, 0
    %p40 = por %p38, %p39
    %s41 = ssub.s32 %s7, %s14
    %p42 = scmp.eq.s32.totalorder %s41, 0
    %s44 = sadd.s32 %s43, 1
    %s45 = scalar_select %p42, %s43, %s44
    %p48 = pneg %p42
    %p49 = scmp.eq.s32.totalorder %s7, 1
    %p50 = por %p48, %p49
    %p51 = scmp.ne.s32.totalorder %s43, %s46
    %p52 = scmp.eq.s32.totalorder %s7, 0
    %p53 = por %p51, %p52
    %p54 = scmp.ne.s32.totalorder %s43, %s46
    %p55 = scmp.eq.s32.totalorder %s12, 1
    %p56 = por %p54, %p55
    %p57 = scmp.ne.s32.totalorder %s46, %s47
    %p58 = scmp.eq.s32.totalorder %s12, 0
    %p59 = por %p57, %p58
    %p60 = scmp.ne.s32.totalorder %s46, %s47
    %p61 = scmp.eq.s32.totalorder %s13, 1
    %p62 = por %p60, %p61
    %p64 = scmp.ne.s32.totalorder %s47, %s63
    %p65 = scmp.eq.s32.totalorder %s13, 0
    %p66 = por %p64, %p65
    %p67 = scmp.le.s32.totalorder 1, %s7
    %p68 = scmp.lt.s32.totalorder %s7, 3
    %p69 = pnand %p67, %p68
    %p70 = pneg %p69
    // Predicated region
    $region9: #{aiayn_forward.37} parent=5 // pred_check
      _
    $region10: #{aiayn_forward.37} parent=5 // pred_check_branch
      %72 = sbr.rel (%p69) target = $region12
    $region11: #{aiayn_forward.37} parent=5 // pred_region
      %s73 = ssub.s32 %s7, 1
    $region12: #{aiayn_forward.37} parent=5 // pred_fallthru
      _
    %p74 = scmp.lt.s32.totalorder %s7, 2
    // Predicated region
    $region13: #{aiayn_forward.37} parent=5 // pred_check
      %p75 = pneg %p74
    $region14: #{aiayn_forward.37} parent=5 // pred_check_branch
      %77 = sbr.rel (%p75) target = $region16
    $region15: #{aiayn_forward.37} parent=5 // pred_region
      // Predicated region
      $region17: #{aiayn_forward.37} parent=15 // pred_check
        %p78 = pneg %p27
      $region18: #{aiayn_forward.37} parent=15 // pred_check_branch
        %80 = sbr.rel (%p78) target = $region20
      $region19: #{aiayn_forward.37} parent=15 // pred_region
        %p81 = scmp.lt.s32.totalorder %s7, 1
        %s82 = scalar_select %p81, %s7, 1
        %s83 = smul.addr %s82, 4
        %s84 = scalar_lea.vmem %s0, %s83
      $region20: #{aiayn_forward.37} parent=15 // pred_fallthru
        _
    $region16: #{aiayn_forward.37} parent=5 // pred_fallthru
      _
    %p85 = scmp.le.s32.totalorder 1, %s7
    %p86 = scmp.lt.s32.totalorder %s7, 3
    %p87 = pnand %p85, %p86
    %p88 = pneg %p87
    // Predicated region
    $region21: #{aiayn_forward.37} parent=5 // pred_check
      _
    $region22: #{aiayn_forward.37} parent=5 // pred_check_branch
      %90 = sbr.rel (%p87) target = $region24
    $region23: #{aiayn_forward.37} parent=5 // pred_region
      %s91 = ssub.s32 %s7, 1
      %p92 = scmp.lt.s32.totalorder %s12, 1
      %s93 = scalar_select %p92, %s12, 1
      %s94 = smul.addr %s93, 4
      %s95 = scalar_lea.vmem %s0, %s94
      %p96 = pneg %p33
      %p97 = pneg %p30
      %p98 = pneg %p59
      %p99 = pneg %p56
      %p100 = scmp.lt.s32.totalorder %s12, 1
      %s101 = scalar_select %p100, %s12, 1
      %s102 = smul.addr %s101, 4
      %s103 = scalar_lea.vmem %s1, %s102
      %p104 = scmp.lt.s32.totalorder %s12, 1
      %s105 = scalar_select %p104, %s12, 1
      %s106 = smul.addr %s105, 4
      %s107 = scalar_lea.vmem %s0, %s106
      %p108 = scmp.lt.s32.totalorder %s12, 1
      %s109 = scalar_select %p108, %s12, 1
      %s110 = smul.addr %s109, 4
      %s111 = scalar_lea.vmem %s1, %s110
      %v113 = vld [vmem:[%s107] sm:$0xf]
      %v114 = vlaneseq
      %v115 = vshrl.u32 %v114, 7
      %v116 = vlaneseq
      %v117 = vand.u32 %v116, 127
      %vm118 = vcmp.le.s32.totalorder %v117, %v115
      %v120 = vunpack.c.l.b16 %v113
      %v121 = vpack.c.b16 %v120, %v120
      %122 = vrot.lane.b32.xlu0 %v121, 96
      %v123 = vpop.permute.xlu0 %122
      %vm124 = vcmask 64512
      %v126 = vsel %vm124, %v113, 0
      %v129 = vsel %vm124, %v123, 0
      %131 = vmatpush.bf16.xpose.msra.mxu0 0
      %132 = vmatpush.bf16.xpose.msra.mxu0 0
      %133 = vmatpush.bf16.xpose.msra.mxu0 0
      %134 = vmatpush.bf16.xpose.msra.mxu0 0
      %135 = vmatpush.bf16.xpose.msra.mxu0 0
      %136 = vmatpush.bf16.xpose.msra.mxu0 0
      %137 = vmatpush.bf16.xpose.msra.mxu0 0
      %138 = vmatpush.bf16.xpose.msra.mxu0 %v129
      %139 = vmatmul.bf16.gmra.mxu0 %v126
      %v140 = vpop.f32.mrf.mxu0
      %v141 = vadd.f32 0.0, %v140
      %v142 = vpop.f32.mrf.mxu0
      %143 = vdwg.mxu0
      %v144 = vsel %vm118, %v141, -inf
      %v145 = vsel %vm124, %v144, -inf
      %146 = vmax.xlane.f32.xlu0 %v145
      %v147 = vpop.xlane.xlu0 %146
      %v148 = vsub.f32 %v144, %v147
      %v149 = vmul.f32 %v148, 1.442695
      %v150 = vpow.pop %v149
      %v151 = vsel %vm124, %v150, 0.0
      %152 = vadd.xlane.f32.xlu0 %v151
      %v153 = vpop.xlane.xlu0 %152
      %v154 = vrcp.pop %v153
      %v155 = vmul.f32 %v150, %v154
      %v156 = vpack.c.bf16 %v155, %v155
      %157 = vrot.lane.b32.xlu0 %v121, 64
      %v158 = vpop.permute.xlu0 %157
      %v160 = vsel %vm124, %v156, 0
      %vm162 = vcmask 1043456
      %v164 = vsel %vm162, %v158, 0
      %166 = vmatpush.bf16.msra.mxu0 0
      %167 = vmatpush.bf16.msra.mxu0 0
      %168 = vmatpush.bf16.msra.mxu0 0
      %169 = vmatpush.bf16.msra.mxu0 0
      %170 = vmatpush.bf16.msra.mxu0 0
      %171 = vmatpush.bf16.msra.mxu0 0
      %172 = vmatpush.bf16.msra.mxu0 0
      %173 = vmatpush.bf16.msra.mxu0 %v164
      %174 = vmatmul.bf16.gmra.mxu0 %v160
      %v175 = vpop.f32.mrf.mxu0
      %v176 = vadd.f32 0.0, %v175
      %v177 = vpop.f32.mrf.mxu0
      %178 = vdwg.mxu0
      %v179 = vpack.c.bf16 %v176, %v176
      %vm180 = vcmask 60416
      %181 = vst.msk [vmem:[%s111] sm:$0xf] %vm180, %v179
      %182 = vrot.lane.b32.xlu0 %v121, 120
      %v183 = vpop.permute.xlu0 %182
      %184 = vrot.lane.b32.xlu0 %v121, 88
      %v185 = vpop.permute.xlu0 %184
      %v187 = vsel %vm124, %v183, 0
      %v190 = vsel %vm124, %v185, 0
      %192 = vmatpush.bf16.xpose.msra.mxu0 0
      %193 = vmatpush.bf16.xpose.msra.mxu0 0
      %194 = vmatpush.bf16.xpose.msra.mxu0 0
      %195 = vmatpush.bf16.xpose.msra.mxu0 0
      %196 = vmatpush.bf16.xpose.msra.mxu0 0
      %197 = vmatpush.bf16.xpose.msra.mxu0 0
      %198 = vmatpush.bf16.xpose.msra.mxu0 0
      %199 = vmatpush.bf16.xpose.msra.mxu0 %v190
      %200 = vmatmul.bf16.gmra.mxu0 %v187
      %v201 = vpop.f32.mrf.mxu0
      %v202 = vadd.f32 0.0, %v201
      %v203 = vpop.f32.mrf.mxu0
      %204 = vdwg.mxu0
      %v205 = vsel %vm118, %v202, -inf
      %v206 = vsel %vm124, %v205, -inf
      %207 = vmax.xlane.f32.xlu0 %v206
      %v208 = vpop.xlane.xlu0 %207
      %v209 = vsub.f32 %v205, %v208
      %v210 = vmul.f32 %v209, 1.442695
      %v211 = vpow.pop %v210
      %v212 = vsel %vm124, %v211, 0.0
      %213 = vadd.xlane.f32.xlu0 %v212
      %v214 = vpop.xlane.xlu0 %213
      %v215 = vrcp.pop %v214
      %v216 = vmul.f32 %v211, %v215
      %v217 = vpack.c.bf16 %v216, %v216
      %218 = vrot.lane.b32.xlu0 %v121, 56
      %v219 = vpop.permute.xlu0 %218
      %v221 = vsel %vm124, %v217, 0
      %v224 = vsel %vm162, %v219, 0
      %226 = vmatpush.bf16.msra.mxu0 0
      %227 = vmatpush.bf16.msra.mxu0 0
      %228 = vmatpush.bf16.msra.mxu0 0
      %229 = vmatpush.bf16.msra.mxu0 0
      %230 = vmatpush.bf16.msra.mxu0 0
      %231 = vmatpush.bf16.msra.mxu0 0
      %232 = vmatpush.bf16.msra.mxu0 0
      %233 = vmatpush.bf16.msra.mxu0 %v224
      %234 = vmatmul.bf16.gmra.mxu0 %v221
      %v235 = vpop.f32.mrf.mxu0
      %v236 = vadd.f32 0.0, %v235
      %v237 = vpop.f32.mrf.mxu0
      %238 = vdwg.mxu0
      %v239 = vpack.c.bf16 %v236, %v236
      %241 = vrot.lane.b32.xlu0 %v239, 8
      %v242 = vpop.permute.xlu0 %241
      %vm244 = vcmask 126016
      %245 = vst.msk [vmem:[%s111] sm:$0xf] %vm244, %v242
      %246 = vrot.lane.b32.xlu0 %v121, 112
      %v247 = vpop.permute.xlu0 %246
      %248 = vrot.lane.b32.xlu0 %v121, 80
      %v249 = vpop.permute.xlu0 %248
      %v251 = vsel %vm124, %v247, 0
      %v254 = vsel %vm124, %v249, 0
      %256 = vmatpush.bf16.xpose.msra.mxu0 0
      %257 = vmatpush.bf16.xpose.msra.mxu0 0
      %258 = vmatpush.bf16.xpose.msra.mxu0 0
      %259 = vmatpush.bf16.xpose.msra.mxu0 0
      %260 = vmatpush.bf16.xpose.msra.mxu0 0
      %261 = vmatpush.bf16.xpose.msra.mxu0 0
      %262 = vmatpush.bf16.xpose.msra.mxu0 0
      %263 = vmatpush.bf16.xpose.msra.mxu0 %v254
      %264 = vmatmul.bf16.gmra.mxu0 %v251
      %v265 = vpop.f32.mrf.mxu0
      %v266 = vadd.f32 0.0, %v265
      %v267 = vpop.f32.mrf.mxu0
      %268 = vdwg.mxu0
      %v269 = vsel %vm118, %v266, -inf
      %v270 = vsel %vm124, %v269, -inf
      %271 = vmax.xlane.f32.xlu0 %v270
      %v272 = vpop.xlane.xlu0 %271
      %v273 = vsub.f32 %v269, %v272
      %v274 = vmul.f32 %v273, 1.442695
      %v275 = vpow.pop %v274
      %v276 = vsel %vm124, %v275, 0.0
      %277 = vadd.xlane.f32.xlu0 %v276
      %v278 = vpop.xlane.xlu0 %277
      %v279 = vrcp.pop %v278
      %v280 = vmul.f32 %v275, %v279
      %v281 = vpack.c.bf16 %v280, %v280
      %282 = vrot.lane.b32.xlu0 %v121, 48
      %v283 = vpop.permute.xlu0 %282
      %v285 = vsel %vm124, %v281, 0
      %v288 = vsel %vm162, %v283, 0
      %290 = vmatpush.bf16.msra.mxu0 0
      %291 = vmatpush.bf16.msra.mxu0 0
      %292 = vmatpush.bf16.msra.mxu0 0
      %293 = vmatpush.bf16.msra.mxu0 0
      %294 = vmatpush.bf16.msra.mxu0 0
      %295 = vmatpush.bf16.msra.mxu0 0
      %296 = vmatpush.bf16.msra.mxu0 0
      %297 = vmatpush.bf16.msra.mxu0 %v288
      %298 = vmatmul.bf16.gmra.mxu0 %v285
      %v299 = vpop.f32.mrf.mxu0
      %v300 = vadd.f32 0.0, %v299
      %v301 = vpop.f32.mrf.mxu0
      %302 = vdwg.mxu0
      %v303 = vpack.c.bf16 %v300, %v300
      %305 = vrot.lane.b32.xlu0 %v303, 16
      %v306 = vpop.permute.xlu0 %305
      %vm308 = vcmask 191616
      %309 = vst.msk [vmem:[%s111] sm:$0xf] %vm308, %v306
      %310 = vrot.lane.b32.xlu0 %v121, 104
      %v311 = vpop.permute.xlu0 %310
      %312 = vrot.lane.b32.xlu0 %v121, 72
      %v313 = vpop.permute.xlu0 %312
      %v315 = vsel %vm124, %v311, 0
      %v318 = vsel %vm124, %v313, 0
      %320 = vmatpush.bf16.xpose.msra.mxu0 0
      %321 = vmatpush.bf16.xpose.msra.mxu0 0
      %322 = vmatpush.bf16.xpose.msra.mxu0 0
      %323 = vmatpush.bf16.xpose.msra.mxu0 0
      %324 = vmatpush.bf16.xpose.msra.mxu0 0
      %325 = vmatpush.bf16.xpose.msra.mxu0 0
      %326 = vmatpush.bf16.xpose.msra.mxu0 0
      %327 = vmatpush.bf16.xpose.msra.mxu0 %v318
      %328 = vmatmul.bf16.gmra.mxu0 %v315
      %v329 = vpop.f32.mrf.mxu0
      %v330 = vadd.f32 0.0, %v329
      %v331 = vpop.f32.mrf.mxu0
      %332 = vdwg.mxu0
      %v333 = vsel %vm118, %v330, -inf
      %v334 = vsel %vm124, %v333, -inf
      %335 = vmax.xlane.f32.xlu0 %v334
      %v336 = vpop.xlane.xlu0 %335
      %v337 = vsub.f32 %v333, %v336
      %v338 = vmul.f32 %v337, 1.442695
      %v339 = vpow.pop %v338
      %v340 = vsel %vm124, %v339, 0.0
      %341 = vadd.xlane.f32.xlu0 %v340
      %v342 = vpop.xlane.xlu0 %341
      %v343 = vrcp.pop %v342
      %v344 = vmul.f32 %v339, %v343
      %v345 = vpack.c.bf16 %v344, %v344
      %346 = vrot.lane.b32.xlu0 %v121, 40
      %v347 = vpop.permute.xlu0 %346
      %v349 = vsel %vm124, %v345, 0
      %v352 = vsel %vm162, %v347, 0
      %354 = vmatpush.bf16.msra.mxu0 0
      %355 = vmatpush.bf16.msra.mxu0 0
      %356 = vmatpush.bf16.msra.mxu0 0
      %357 = vmatpush.bf16.msra.mxu0 0
      %358 = vmatpush.bf16.msra.mxu0 0
      %359 = vmatpush.bf16.msra.mxu0 0
      %360 = vmatpush.bf16.msra.mxu0 0
      %361 = vmatpush.bf16.msra.mxu0 %v352
      %362 = vmatmul.bf16.gmra.mxu0 %v349
      %v363 = vpop.f32.mrf.mxu0
      %v364 = vadd.f32 0.0, %v363
      %v365 = vpop.f32.mrf.mxu0
      %366 = vdwg.mxu0
      %v367 = vpack.c.bf16 %v364, %v364
      %369 = vrot.lane.b32.xlu0 %v367, 24
      %v370 = vpop.permute.xlu0 %369
      %vm372 = vcmask 257216
      %373 = vst.msk [vmem:[%s111] sm:$0xf] %vm372, %v370
      %p374 = scmp.lt.s32.totalorder %s12, 1
      %s375 = scalar_select %p374, %s12, 1
      %s376 = smul.addr %s375, 4
      %s377 = scalar_lea.vmem %s1, %s376
      // Predicated region
      $region25: #{aiayn_forward.37} parent=23 // pred_check
        %p378 = pneg %p56
      $region26: #{aiayn_forward.37} parent=23 // pred_check_branch
        %380 = sbr.rel (%p378) target = $region28
      $region27: #{aiayn_forward.37} parent=23 // pred_region
        _
      $region28: #{aiayn_forward.37} parent=23 // pred_fallthru
        _
    $region24: #{aiayn_forward.37} parent=5 // pred_fallthru
      _
    %p381 = scmp.le.s32.totalorder 2, %s7
    // Predicated region
    $region29: #{aiayn_forward.37} parent=5 // pred_check
      %p382 = pneg %p381
    $region30: #{aiayn_forward.37} parent=5 // pred_check_branch
      %384 = sbr.rel (%p382) target = $region32
    $region31: #{aiayn_forward.37} parent=5 // pred_region
      %s385 = ssub.s32 %s7, 2
      // Predicated region
      $region33: #{aiayn_forward.37} parent=31 // pred_check
        %p386 = pneg %p62
      $region34: #{aiayn_forward.37} parent=31 // pred_check_branch
        %388 = sbr.rel (%p386) target = $region36
      $region35: #{aiayn_forward.37} parent=31 // pred_region
        %p389 = scmp.lt.s32.totalorder %s13, 1
        %s390 = scalar_select %p389, %s13, 1
        %s391 = smul.addr %s390, 4
        %s392 = scalar_lea.vmem %s1, %s391
      $region36: #{aiayn_forward.37} parent=31 // pred_fallthru
        _
    $region32: #{aiayn_forward.37} parent=5 // pred_fallthru
      _
  $region6: #{aiayn_forward.37} parent=0 // loop_footer
    %s11 = sadd.s32 1, %s7
  $region7: #{aiayn_forward.37} parent=0 // loop_footer_branch
    %6 = sbr.rel target = $region3
  $region8: #{aiayn_forward.37} parent=0 // loop_exit
    _

// kernel: aiayn_forward.41
$region0: #{aiayn_forward.41}
  #allocation0 [shape = 'u32[]', space=smem, size = 0x4, offset = 0x4, fixed_abs, tag = 'smem constant byte address 0x4 - core index']
  #allocation1 [shape = 'u32[72,128]{1,0:T(1,128)}', space=vmem, size = 0x9000, scoped, tag = 'internal scratch']
  %s0 = inlined_call_operand.vmem [shape: bf16[2,8,32], index: 0, kind: input, shape index: {}]
  %s1 = inlined_call_operand.vmem [shape: bf16[2,10,64], index: 1, kind: input, shape index: {}]
  %s2 = inlined_call_operand.vmem [shape: bf16[2,8,32], index: 2, kind: output, shape index: {}]
  %s3 = sld [smem:[#allocation0]]
  $region41: #{aiayn_forward.41} parent=0
    _
  %s5 = ssub.s32 1, %s3
  %s6 = scalar_select 0, %s5, %s3
  loop: start=0, step=1, limit=4
  $region2: #{aiayn_forward.41} parent=0 // loop_pre_header
    _
  $region3: #{aiayn_forward.41} parent=0 // loop_header
    %s8 = sphi 0, %s12
    %p9 = scmp.ge.s32.totalorder %s8, 4
    %s18 = sphi 0, %s20
    %s21 = sphi 0, %s18
    %s22 = sphi 0, %s21
    %s38 = sphi 0, %s22
    %s44 = sphi 0, %s46
    %s47 = sphi 0, %s44
    %s48 = sphi 0, %s47
    %s64 = sphi 0, %s48
    %s70 = sphi 0, %s72
    %s73 = sphi 0, %s70
    %s74 = sphi 0, %s73
    %s90 = sphi 0, %s74
  $region4: #{aiayn_forward.41} parent=0 // loop_header_branch
    %11 = sbr.rel (%p9) target = $region8
  $region5: #{aiayn_forward.41} parent=0 // loop_body
    %s13 = ssub.s32 %s8, 1
    %s14 = ssub.s32 %s8, 2
    %s15 = sadd.s32 %s8, 1
    %s16 = ssub.s32 %s8, %s15
    %p17 = scmp.eq.s32.totalorder %s16, 0
    %s19 = sadd.s32 %s18, 1
    %s20 = scalar_select %p17, %s18, %s19
    %p23 = pneg %p17
    %p24 = scmp.eq.s32.totalorder %s8, 1
    %p25 = por %p23, %p24
    %p26 = scmp.ne.s32.totalorder %s18, %s21
    %p27 = scmp.eq.s32.totalorder %s8, 0
    %p28 = por %p26, %p27
    %p29 = scmp.ne.s32.totalorder %s18, %s21
    %p30 = scmp.eq.s32.totalorder %s13, 1
    %p31 = por %p29, %p30
    %p32 = scmp.ne.s32.totalorder %s21, %s22
    %p33 = scmp.eq.s32.totalorder %s13, 0
    %p34 = por %p32, %p33
    %p35 = scmp.ne.s32.totalorder %s21, %s22
    %p36 = scmp.eq.s32.totalorder %s14, 1
    %p37 = por %p35, %p36
    %p39 = scmp.ne.s32.totalorder %s22, %s38
    %p40 = scmp.eq.s32.totalorder %s14, 0
    %p41 = por %p39, %p40
    %s42 = ssub.s32 %s8, %s15
    %p43 = scmp.eq.s32.totalorder %s42, 0
    %s45 = sadd.s32 %s44, 1
    %s46 = scalar_select %p43, %s44, %s45
    %p49 = pneg %p43
    %p50 = scmp.eq.s32.totalorder %s8, 1
    %p51 = por %p49, %p50
    %p52 = scmp.ne.s32.totalorder %s44, %s47
    %p53 = scmp.eq.s32.totalorder %s8, 0
    %p54 = por %p52, %p53
    %p55 = scmp.ne.s32.totalorder %s44, %s47
    %p56 = scmp.eq.s32.totalorder %s13, 1
    %p57 = por %p55, %p56
    %p58 = scmp.ne.s32.totalorder %s47, %s48
    %p59 = scmp.eq.s32.totalorder %s13, 0
    %p60 = por %p58, %p59
    %p61 = scmp.ne.s32.totalorder %s47, %s48
    %p62 = scmp.eq.s32.totalorder %s14, 1
    %p63 = por %p61, %p62
    %p65 = scmp.ne.s32.totalorder %s48, %s64
    %p66 = scmp.eq.s32.totalorder %s14, 0
    %p67 = por %p65, %p66
    %s68 = ssub.s32 %s8, %s15
    %p69 = scmp.eq.s32.totalorder %s68, 0
    %s71 = sadd.s32 %s70, 1
    %s72 = scalar_select %p69, %s70, %s71
    %p75 = pneg %p69
    %p76 = scmp.eq.s32.totalorder %s8, 1
    %p77 = por %p75, %p76
    %p78 = scmp.ne.s32.totalorder %s70, %s73
    %p79 = scmp.eq.s32.totalorder %s8, 0
    %p80 = por %p78, %p79
    %p81 = scmp.ne.s32.totalorder %s70, %s73
    %p82 = scmp.eq.s32.totalorder %s13, 1
    %p83 = por %p81, %p82
    %p84 = scmp.ne.s32.totalorder %s73, %s74
    %p85 = scmp.eq.s32.totalorder %s13, 0
    %p86 = por %p84, %p85
    %p87 = scmp.ne.s32.totalorder %s73, %s74
    %p88 = scmp.eq.s32.totalorder %s14, 1
    %p89 = por %p87, %p88
    %p91 = scmp.ne.s32.totalorder %s74, %s90
    %p92 = scmp.eq.s32.totalorder %s14, 0
    %p93 = por %p91, %p92
    %p94 = scmp.le.s32.totalorder 1, %s8
    %p95 = scmp.lt.s32.totalorder %s8, 3
    %p96 = pnand %p94, %p95
    %p97 = pneg %p96
    // Predicated region
    $region9: #{aiayn_forward.41} parent=5 // pred_check
      _
    $region10: #{aiayn_forward.41} parent=5 // pred_check_branch
      %99 = sbr.rel (%p96) target = $region12
    $region11: #{aiayn_forward.41} parent=5 // pred_region
      %s100 = ssub.s32 %s8, 1
    $region12: #{aiayn_forward.41} parent=5 // pred_fallthru
      _
    %p101 = scmp.lt.s32.totalorder %s8, 2
    // Predicated region
    $region13: #{aiayn_forward.41} parent=5 // pred_check
      %p102 = pneg %p101
    $region14: #{aiayn_forward.41} parent=5 // pred_check_branch
      %104 = sbr.rel (%p102) target = $region16
    $region15: #{aiayn_forward.41} parent=5 // pred_region
      // Predicated region
      $region17: #{aiayn_forward.41} parent=15 // pred_check
        %p105 = pneg %p28
      $region18: #{aiayn_forward.41} parent=15 // pred_check_branch
        %107 = sbr.rel (%p105) target = $region20
      $region19: #{aiayn_forward.41} parent=15 // pred_region
        %p108 = scmp.lt.s32.totalorder %s8, 1
        %s109 = scalar_select %p108, %s8, 1
        %s110 = smul.addr %s109, 4
        %s111 = scalar_lea.vmem %s0, %s110
      $region20: #{aiayn_forward.41} parent=15 // pred_fallthru
        _
      // Predicated region
      $region21: #{aiayn_forward.41} parent=15 // pred_check
        %p112 = pneg %p54
      $region22: #{aiayn_forward.41} parent=15 // pred_check_branch
        %114 = sbr.rel (%p112) target = $region24
      $region23: #{aiayn_forward.41} parent=15 // pred_region
        %p115 = scmp.lt.s32.totalorder %s8, 1
        %s116 = scalar_select %p115, %s8, 1
        %s117 = smul.addr %s116, 2
        %s118 = smul.addr %s117, 4
        %s119 = scalar_lea.vmem %s1, %s118
      $region24: #{aiayn_forward.41} parent=15 // pred_fallthru
        _
    $region16: #{aiayn_forward.41} parent=5 // pred_fallthru
      _
    %p120 = scmp.le.s32.totalorder 1, %s8
    %p121 = scmp.lt.s32.totalorder %s8, 3
    %p122 = pnand %p120, %p121
    %p123 = pneg %p122
    // Predicated region
    $region25: #{aiayn_forward.41} parent=5 // pred_check
      _
    $region26: #{aiayn_forward.41} parent=5 // pred_check_branch
      %125 = sbr.rel (%p122) target = $region28
    $region27: #{aiayn_forward.41} parent=5 // pred_region
      %s126 = ssub.s32 %s8, 1
      %p127 = scmp.lt.s32.totalorder %s13, 1
      %s128 = scalar_select %p127, %s13, 1
      %s129 = smul.addr %s128, 4
      %s130 = scalar_lea.vmem %s0, %s129
      %p131 = pneg %p34
      %p132 = pneg %p31
      %p133 = scmp.lt.s32.totalorder %s13, 1
      %s134 = scalar_select %p133, %s13, 1
      %s135 = smul.addr %s134, 2
      %s136 = smul.addr %s135, 4
      %s137 = scalar_lea.vmem %s1, %s136
      %p138 = pneg %p60
      %p139 = pneg %p57
      %p140 = pneg %p86
      %p141 = pneg %p83
      %p142 = scmp.lt.s32.totalorder %s13, 1
      %s143 = scalar_select %p142, %s13, 1
      %s144 = smul.addr %s143, 4
      %s145 = scalar_lea.vmem %s2, %s144
      %p146 = scmp.lt.s32.totalorder %s13, 1
      %s147 = scalar_select %p146, %s13, 1
      %s148 = smul.addr %s147, 4
      %s149 = scalar_lea.vmem %s0, %s148
      %p150 = scmp.lt.s32.totalorder %s13, 1
      %s151 = scalar_select %p150, %s13, 1
      %s152 = smul.addr %s151, 2
      %s153 = smul.addr %s152, 4
      %s154 = scalar_lea.vmem %s1, %s153
      %p155 = scmp.lt.s32.totalorder %s13, 1
      %s156 = scalar_select %p155, %s13, 1
      %s157 = smul.addr %s156, 4
      %s158 = scalar_lea.vmem %s2, %s157
      %v160 = vld [vmem:[%s149] sm:$0xf]
      %v161 = vld [vmem:[%s154] sm:$0xf]
      %v162 = vld [vmem:[%s154 + $0x4] sm:$0x1]
      %v165 = vunpack.c.l.b16 %v161
      %v166 = vunpack.c.l.b16 %v162
      %v167 = vpack.c.b16 %v166, %v165
      %vm168 = vcmask 64512
      %v170 = vsel %vm168, %v160, 0
      %v173 = vsel %vm168, %v167, 0
      %175 = vmatpush.bf16.xpose.msra.mxu0 0
      %176 = vmatpush.bf16.xpose.msra.mxu0 0
      %177 = vmatpush.bf16.xpose.msra.mxu0 0
      %178 = vmatpush.bf16.xpose.msra.mxu0 0
      %179 = vmatpush.bf16.xpose.msra.mxu0 0
      %180 = vmatpush.bf16.xpose.msra.mxu0 0
      %181 = vmatpush.bf16.xpose.msra.mxu0 0
      %182 = vmatpush.bf16.xpose.msra.mxu0 %v173
      %183 = vmatmul.bf16.gmra.mxu0 %v170
      %v184 = vpop.f32.mrf.mxu0
      %v185 = vadd.f32 0.0, %v184
      %v186 = vpop.f32.mrf.mxu0
      %187 = vdwg.mxu0
      %vm188 = vcmask 80896
      %v189 = vsel %vm188, %v185, -inf
      %190 = vmax.xlane.f32.xlu0 %v189
      %v191 = vpop.xlane.xlu0 %190
      %v192 = vsub.f32 %v185, %v191
      %v193 = vmul.f32 %v192, 1.442695
      %v194 = vpow.pop %v193
      %v195 = vsel %vm188, %v194, 0.0
      %196 = vadd.xlane.f32.xlu0 %v195
      %v197 = vpop.xlane.xlu0 %196
      %v198 = vrcp.pop %v197
      %v199 = vmul.f32 %v194, %v198
      %v200 = vpack.c.bf16 %v199, %v199
      %201 = vrot.lane.b32.xlu0 %v167, 96
      %v202 = vpop.permute.xlu0 %201
      %v204 = vsel %vm188, %v200, 0
      %vm206 = vcmask 1044480
      %v208 = vsel %vm206, %v202, 0
      %210 = vmatpush.bf16.msra.mxu0 0
      %211 = vmatpush.bf16.msra.mxu0 0
      %212 = vmatpush.bf16.msra.mxu0 0
      %213 = vmatpush.bf16.msra.mxu0 0
      %214 = vmatpush.bf16.msra.mxu0 0
      %215 = vmatpush.bf16.msra.mxu0 0
      %216 = vmatpush.bf16.msra.mxu0 0
      %217 = vmatpush.bf16.msra.mxu0 %v208
      %218 = vmatmul.bf16.gmra.mxu0 %v204
      %v219 = vpop.f32.mrf.mxu0
      %v220 = vadd.f32 0.0, %v219
      %v221 = vpop.f32.mrf.mxu0
      %222 = vdwg.mxu0
      %v223 = vpack.c.bf16 %v220, %v220
      %vm224 = vcmask 60416
      %225 = vst.msk [vmem:[%s158] sm:$0xf] %vm224, %v223
      %v227 = vunpack.c.l.b16 %v160
      %v228 = vpack.c.b16 %v227, %v227
      %229 = vrot.lane.b32.xlu0 %v228, 120
      %v230 = vpop.permute.xlu0 %229
      %231 = vrot.lane.b32.xlu0 %v167, 120
      %v232 = vpop.permute.xlu0 %231
      %v234 = vsel %vm168, %v230, 0
      %v237 = vsel %vm168, %v232, 0
      %239 = vmatpush.bf16.xpose.msra.mxu0 0
      %240 = vmatpush.bf16.xpose.msra.mxu0 0
      %241 = vmatpush.bf16.xpose.msra.mxu0 0
      %242 = vmatpush.bf16.xpose.msra.mxu0 0
      %243 = vmatpush.bf16.xpose.msra.mxu0 0
      %244 = vmatpush.bf16.xpose.msra.mxu0 0
      %245 = vmatpush.bf16.xpose.msra.mxu0 0
      %246 = vmatpush.bf16.xpose.msra.mxu0 %v237
      %247 = vmatmul.bf16.gmra.mxu0 %v234
      %v248 = vpop.f32.mrf.mxu0
      %v249 = vadd.f32 0.0, %v248
      %v250 = vpop.f32.mrf.mxu0
      %251 = vdwg.mxu0
      %v252 = vsel %vm188, %v249, -inf
      %253 = vmax.xlane.f32.xlu0 %v252
      %v254 = vpop.xlane.xlu0 %253
      %v255 = vsub.f32 %v249, %v254
      %v256 = vmul.f32 %v255, 1.442695
      %v257 = vpow.pop %v256
      %v258 = vsel %vm188, %v257, 0.0
      %259 = vadd.xlane.f32.xlu0 %v258
      %v260 = vpop.xlane.xlu0 %259
      %v261 = vrcp.pop %v260
      %v262 = vmul.f32 %v257, %v261
      %v263 = vpack.c.bf16 %v262, %v262
      %264 = vrot.lane.b32.xlu0 %v167, 88
      %v265 = vpop.permute.xlu0 %264
      %v267 = vsel %vm188, %v263, 0
      %v270 = vsel %vm206, %v265, 0
      %272 = vmatpush.bf16.msra.mxu0 0
      %273 = vmatpush.bf16.msra.mxu0 0
      %274 = vmatpush.bf16.msra.mxu0 0
      %275 = vmatpush.bf16.msra.mxu0 0
      %276 = vmatpush.bf16.msra.mxu0 0
      %277 = vmatpush.bf16.msra.mxu0 0
      %278 = vmatpush.bf16.msra.mxu0 0
      %279 = vmatpush.bf16.msra.mxu0 %v270
      %280 = vmatmul.bf16.gmra.mxu0 %v267
      %v281 = vpop.f32.mrf.mxu0
      %v282 = vadd.f32 0.0, %v281
      %v283 = vpop.f32.mrf.mxu0
      %284 = vdwg.mxu0
      %v285 = vpack.c.bf16 %v282, %v282
      %287 = vrot.lane.b32.xlu0 %v285, 8
      %v288 = vpop.permute.xlu0 %287
      %vm290 = vcmask 126016
      %291 = vst.msk [vmem:[%s158] sm:$0xf] %vm290, %v288
      %292 = vrot.lane.b32.xlu0 %v228, 112
      %v293 = vpop.permute.xlu0 %292
      %294 = vrot.lane.b32.xlu0 %v167, 112
      %v295 = vpop.permute.xlu0 %294
      %v297 = vsel %vm168, %v293, 0
      %v300 = vsel %vm168, %v295, 0
      %302 = vmatpush.bf16.xpose.msra.mxu0 0
      %303 = vmatpush.bf16.xpose.msra.mxu0 0
      %304 = vmatpush.bf16.xpose.msra.mxu0 0
      %305 = vmatpush.bf16.xpose.msra.mxu0 0
      %306 = vmatpush.bf16.xpose.msra.mxu0 0
      %307 = vmatpush.bf16.xpose.msra.mxu0 0
      %308 = vmatpush.bf16.xpose.msra.mxu0 0
      %309 = vmatpush.bf16.xpose.msra.mxu0 %v300
      %310 = vmatmul.bf16.gmra.mxu0 %v297
      %v311 = vpop.f32.mrf.mxu0
      %v312 = vadd.f32 0.0, %v311
      %v313 = vpop.f32.mrf.mxu0
      %314 = vdwg.mxu0
      %v315 = vsel %vm188, %v312, -inf
      %316 = vmax.xlane.f32.xlu0 %v315
      %v317 = vpop.xlane.xlu0 %316
      %v318 = vsub.f32 %v312, %v317
      %v319 = vmul.f32 %v318, 1.442695
      %v320 = vpow.pop %v319
      %v321 = vsel %vm188, %v320, 0.0
      %322 = vadd.xlane.f32.xlu0 %v321
      %v323 = vpop.xlane.xlu0 %322
      %v324 = vrcp.pop %v323
      %v325 = vmul.f32 %v320, %v324
      %v326 = vpack.c.bf16 %v325, %v325
      %327 = vrot.lane.b32.xlu0 %v167, 80
      %v328 = vpop.permute.xlu0 %327
      %v330 = vsel %vm188, %v326, 0
      %v333 = vsel %vm206, %v328, 0
      %335 = vmatpush.bf16.msra.mxu0 0
      %336 = vmatpush.bf16.msra.mxu0 0
      %337 = vmatpush.bf16.msra.mxu0 0
      %338 = vmatpush.bf16.msra.mxu0 0
      %339 = vmatpush.bf16.msra.mxu0 0
      %340 = vmatpush.bf16.msra.mxu0 0
      %341 = vmatpush.bf16.msra.mxu0 0
      %342 = vmatpush.bf16.msra.mxu0 %v333
      %343 = vmatmul.bf16.gmra.mxu0 %v330
      %v344 = vpop.f32.mrf.mxu0
      %v345 = vadd.f32 0.0, %v344
      %v346 = vpop.f32.mrf.mxu0
      %347 = vdwg.mxu0
      %v348 = vpack.c.bf16 %v345, %v345
      %350 = vrot.lane.b32.xlu0 %v348, 16
      %v351 = vpop.permute.xlu0 %350
      %vm353 = vcmask 191616
      %354 = vst.msk [vmem:[%s158] sm:$0xf] %vm353, %v351
      %355 = vrot.lane.b32.xlu0 %v228, 104
      %v356 = vpop.permute.xlu0 %355
      %357 = vrot.lane.b32.xlu0 %v167, 104
      %v358 = vpop.permute.xlu0 %357
      %v360 = vsel %vm168, %v356, 0
      %v363 = vsel %vm168, %v358, 0
      %365 = vmatpush.bf16.xpose.msra.mxu0 0
      %366 = vmatpush.bf16.xpose.msra.mxu0 0
      %367 = vmatpush.bf16.xpose.msra.mxu0 0
      %368 = vmatpush.bf16.xpose.msra.mxu0 0
      %369 = vmatpush.bf16.xpose.msra.mxu0 0
      %370 = vmatpush.bf16.xpose.msra.mxu0 0
      %371 = vmatpush.bf16.xpose.msra.mxu0 0
      %372 = vmatpush.bf16.xpose.msra.mxu0 %v363
      %373 = vmatmul.bf16.gmra.mxu0 %v360
      %v374 = vpop.f32.mrf.mxu0
      %v375 = vadd.f32 0.0, %v374
      %v376 = vpop.f32.mrf.mxu0
      %377 = vdwg.mxu0
      %v378 = vsel %vm188, %v375, -inf
      %379 = vmax.xlane.f32.xlu0 %v378
      %v380 = vpop.xlane.xlu0 %379
      %v381 = vsub.f32 %v375, %v380
      %v382 = vmul.f32 %v381, 1.442695
      %v383 = vpow.pop %v382
      %v384 = vsel %vm188, %v383, 0.0
      %385 = vadd.xlane.f32.xlu0 %v384
      %v386 = vpop.xlane.xlu0 %385
      %v387 = vrcp.pop %v386
      %v388 = vmul.f32 %v383, %v387
      %v389 = vpack.c.bf16 %v388, %v388
      %390 = vrot.lane.b32.xlu0 %v167, 72
      %v391 = vpop.permute.xlu0 %390
      %v393 = vsel %vm188, %v389, 0
      %v396 = vsel %vm206, %v391, 0
      %398 = vmatpush.bf16.msra.mxu0 0
      %399 = vmatpush.bf16.msra.mxu0 0
      %400 = vmatpush.bf16.msra.mxu0 0
      %401 = vmatpush.bf16.msra.mxu0 0
      %402 = vmatpush.bf16.msra.mxu0 0
      %403 = vmatpush.bf16.msra.mxu0 0
      %404 = vmatpush.bf16.msra.mxu0 0
      %405 = vmatpush.bf16.msra.mxu0 %v396
      %406 = vmatmul.bf16.gmra.mxu0 %v393
      %v407 = vpop.f32.mrf.mxu0
      %v408 = vadd.f32 0.0, %v407
      %v409 = vpop.f32.mrf.mxu0
      %410 = vdwg.mxu0
      %v411 = vpack.c.bf16 %v408, %v408
      %413 = vrot.lane.b32.xlu0 %v411, 24
      %v414 = vpop.permute.xlu0 %413
      %vm416 = vcmask 257216
      %417 = vst.msk [vmem:[%s158] sm:$0xf] %vm416, %v414
      %p418 = scmp.lt.s32.totalorder %s13, 1
      %s419 = scalar_select %p418, %s13, 1
      %s420 = smul.addr %s419, 4
      %s421 = scalar_lea.vmem %s2, %s420
      // Predicated region
      $region29: #{aiayn_forward.41} parent=27 // pred_check
        %p422 = pneg %p83
      $region30: #{aiayn_forward.41} parent=27 // pred_check_branch
        %424 = sbr.rel (%p422) target = $region32
      $region31: #{aiayn_forward.41} parent=27 // pred_region
        _
      $region32: #{aiayn_forward.41} parent=27 // pred_fallthru
        _
    $region28: #{aiayn_forward.41} parent=5 // pred_fallthru
      _
    %p425 = scmp.le.s32.totalorder 2, %s8
    // Predicated region
    $region33: #{aiayn_forward.41} parent=5 // pred_check
      %p426 = pneg %p425
    $region34: #{aiayn_forward.41} parent=5 // pred_check_branch
      %428 = sbr.rel (%p426) target = $region36
    $region35: #{aiayn_forward.41} parent=5 // pred_region
      %s429 = ssub.s32 %s8, 2
      // Predicated region
      $region37: #{aiayn_forward.41} parent=35 // pred_check
        %p430 = pneg %p89
      $region38: #{aiayn_forward.41} parent=35 // pred_check_branch
        %432 = sbr.rel (%p430) target = $region40
      $region39: #{aiayn_forward.41} parent=35 // pred_region
        %p433 = scmp.lt.s32.totalorder %s14, 1
        %s434 = scalar_select %p433, %s14, 1
        %s435 = smul.addr %s434, 4
        %s436 = scalar_lea.vmem %s2, %s435
      $region40: #{aiayn_forward.41} parent=35 // pred_fallthru
        _
    $region36: #{aiayn_forward.41} parent=5 // pred_fallthru
      _
  $region6: #{aiayn_forward.41} parent=0 // loop_footer
    %s12 = sadd.s32 1, %s8
  $region7: #{aiayn_forward.41} parent=0 // loop_footer_branch
    %7 = sbr.rel target = $region3
  $region8: #{aiayn_forward.41} parent=0 // loop_exit
    _

// kernel: aiayn_forward.43
$region0: #{aiayn_forward.43}
  #allocation0 [shape = 'u32[]', space=smem, size = 0x4, offset = 0x4, fixed_abs, tag = 'smem constant byte address 0x4 - core index']
  #allocation1 [shape = 'u32[72,128]{1,0:T(1,128)}', space=vmem, size = 0x9000, scoped, tag = 'internal scratch']
  %s0 = inlined_call_operand.vmem [shape: bf16[16,32], index: 0, kind: input, shape index: {}]
  %s1 = inlined_call_operand.vmem [shape: bf16[32,64], index: 1, kind: input, shape index: {}]
  %s2 = inlined_call_operand.vmem [shape: f32[1,64], index: 2, kind: input, shape index: {}]
  %s3 = inlined_call_operand.vmem [shape: bf16[64,32], index: 3, kind: input, shape index: {}]
  %s4 = inlined_call_operand.vmem [shape: f32[1,32], index: 4, kind: input, shape index: {}]
  %s5 = inlined_call_operand.vmem [shape: f32[1,32], index: 5, kind: input, shape index: {}]
  %s6 = inlined_call_operand.vmem [shape: f32[1,32], index: 6, kind: input, shape index: {}]
  %s7 = inlined_call_operand.vmem [shape: bf16[16,32], index: 7, kind: output, shape index: {}]
  %s8 = sld [smem:[#allocation0]]
  $region38: #{aiayn_forward.43} parent=0
    _
  %s10 = ssub.s32 1, %s8
  %s11 = scalar_select 0, %s10, %s8
  // Predicated region
  $region2: #{aiayn_forward.43} parent=0 // pred_check
    _
  $region3: #{aiayn_forward.43} parent=0 // pred_check_branch
    %13 = sbr.rel (0) target = $region5
  $region4: #{aiayn_forward.43} parent=0 // pred_region
    _
  $region5: #{aiayn_forward.43} parent=0 // pred_fallthru
    _
  // Predicated region
  $region6: #{aiayn_forward.43} parent=0 // pred_check
    _
  $region7: #{aiayn_forward.43} parent=0 // pred_check_branch
    %15 = sbr.rel (0) target = $region9
  $region8: #{aiayn_forward.43} parent=0 // pred_region
    _
  $region9: #{aiayn_forward.43} parent=0 // pred_fallthru
    _
  // Predicated region
  $region10: #{aiayn_forward.43} parent=0 // pred_check
    _
  $region11: #{aiayn_forward.43} parent=0 // pred_check_branch
    %17 = sbr.rel (0) target = $region13
  $region12: #{aiayn_forward.43} parent=0 // pred_region
    _
  $region13: #{aiayn_forward.43} parent=0 // pred_fallthru
    _
  // Predicated region
  $region14: #{aiayn_forward.43} parent=0 // pred_check
    _
  $region15: #{aiayn_forward.43} parent=0 // pred_check_branch
    %19 = sbr.rel (0) target = $region17
  $region16: #{aiayn_forward.43} parent=0 // pred_region
    _
  $region17: #{aiayn_forward.43} parent=0 // pred_fallthru
    _
  // Predicated region
  $region18: #{aiayn_forward.43} parent=0 // pred_check
    _
  $region19: #{aiayn_forward.43} parent=0 // pred_check_branch
    %21 = sbr.rel (0) target = $region21
  $region20: #{aiayn_forward.43} parent=0 // pred_region
    _
  $region21: #{aiayn_forward.43} parent=0 // pred_fallthru
    _
  // Predicated region
  $region22: #{aiayn_forward.43} parent=0 // pred_check
    _
  $region23: #{aiayn_forward.43} parent=0 // pred_check_branch
    %23 = sbr.rel (0) target = $region25
  $region24: #{aiayn_forward.43} parent=0 // pred_region
    _
  $region25: #{aiayn_forward.43} parent=0 // pred_fallthru
    _
  // Predicated region
  $region26: #{aiayn_forward.43} parent=0 // pred_check
    _
  $region27: #{aiayn_forward.43} parent=0 // pred_check_branch
    %25 = sbr.rel (0) target = $region29
  $region28: #{aiayn_forward.43} parent=0 // pred_region
    _
  $region29: #{aiayn_forward.43} parent=0 // pred_fallthru
    _
  %v27 = vld [vmem:[%s0] sm:$0xf]
  %v28 = vld [vmem:[%s0 + $0x4] sm:$0xf]
  %v29 = vunpack.c.l.bf16 %v27
  %v30 = vunpack.c.l.bf16 %v28
  %v31 = vld [vmem:[%s1] sm:$0xf]
  %v32 = vld [vmem:[%s1 + $0x4] sm:$0xf]
  %v33 = vld [vmem:[%s1 + $0x8] sm:$0xf]
  %v34 = vld [vmem:[%s1 + $0xc] sm:$0xf]
  %v35 = vld [vmem:[%s2] sm:$0x1]
  %v37 = vperm.slane %v35, 0
  %v41 = vunpack.c.l.b16 %v27
  %v42 = vunpack.c.l.b16 %v28
  %v43 = vpack.c.b16 %v42, %v41
  %v48 = vunpack.c.l.b16 %v31
  %v49 = vunpack.c.l.b16 %v32
  %v50 = vunpack.c.l.b16 %v33
  %v51 = vunpack.c.l.b16 %v34
  %v52 = vpack.c.b16 %v49, %v48
  %v53 = vpack.c.b16 %v51, %v50
  %vm56 = vcmask 261120
  %v58 = vsel %vm56, %v43, 0
  %60 = vmatpush.bf16.msra.mxu0 0
  %61 = vmatpush.bf16.msra.mxu0 0
  %62 = vmatpush.bf16.msra.mxu0 0
  %63 = vmatpush.bf16.msra.mxu0 0
  %64 = vmatpush.bf16.msra.mxu0 0
  %65 = vmatpush.bf16.msra.mxu0 0
  %66 = vmatpush.bf16.msra.mxu0 %v53
  %67 = vmatpush.bf16.msra.mxu0 %v52
  %68 = vmatmul.bf16.gmra.mxu0 %v58
  %v69 = vpop.f32.mrf.mxu0
  %v70 = vadd.f32 %v37, %v69
  %v71 = vpop.f32.mrf.mxu0
  %v72 = vadd.f32 %v37, %v71
  %73 = vdwg.mxu0
  %v74 = vmax.f32 %v70, 0.0
  %v75 = vmax.f32 %v72, 0.0
  %v76 = vld [vmem:[%s3] sm:$0xf]
  %v77 = vld [vmem:[%s3 + $0x4] sm:$0xf]
  %v78 = vld [vmem:[%s3 + $0x8] sm:$0xf]
  %v79 = vld [vmem:[%s3 + $0xc] sm:$0xf]
  %v80 = vld [vmem:[%s3 + $0x10] sm:$0xf]
  %v81 = vld [vmem:[%s3 + $0x14] sm:$0xf]
  %v82 = vld [vmem:[%s3 + $0x18] sm:$0xf]
  %v83 = vld [vmem:[%s3 + $0x1c] sm:$0xf]
  %v84 = vpack.c.bf16 %v75, %v74
  %v93 = vunpack.c.l.b16 %v76
  %v94 = vunpack.c.l.b16 %v77
  %v95 = vunpack.c.l.b16 %v78
  %v96 = vunpack.c.l.b16 %v79
  %v97 = vunpack.c.l.b16 %v80
  %v98 = vunpack.c.l.b16 %v81
  %v99 = vunpack.c.l.b16 %v82
  %v100 = vunpack.c.l.b16 %v83
  %v101 = vpack.c.b16 %v94, %v93
  %v102 = vpack.c.b16 %v96, %v95
  %v103 = vpack.c.b16 %v98, %v97
  %v104 = vpack.c.b16 %v100, %v99
  %vm109 = vcmask 523264
  %v111 = vsel %vm109, %v84, 0
  %113 = vmatpush.bf16.msra.mxu0 0
  %114 = vmatpush.bf16.msra.mxu0 0
  %115 = vmatpush.bf16.msra.mxu0 0
  %116 = vmatpush.bf16.msra.mxu0 0
  %117 = vmatpush.bf16.msra.mxu0 %v104
  %118 = vmatpush.bf16.msra.mxu0 %v103
  %119 = vmatpush.bf16.msra.mxu0 %v102
  %120 = vmatpush.bf16.msra.mxu0 %v101
  %121 = vmatmul.bf16.gmra.mxu0 %v111
  %v122 = vpop.f32.mrf.mxu0
  %v123 = vadd.f32 0.0, %v122
  %v124 = vpop.f32.mrf.mxu0
  %v125 = vadd.f32 0.0, %v124
  %126 = vdwg.mxu0
  %v127 = vadd.f32 %v29, %v123
  %v128 = vadd.f32 %v30, %v125
  %v129 = vld [vmem:[%s4] sm:$0x1]
  %v131 = vperm.slane %v129, 0
  %v133 = vadd.f32 %v127, %v131
  %v134 = vadd.f32 %v128, %v131
  %v135 = vsel %vm56, %v133, 0.0
  %136 = vadd.xlane.f32.xlu0 %v135
  %v137 = vpop.xlane.xlu0 %136
  %v138 = vsel %vm56, %v134, 0.0
  %139 = vadd.xlane.f32.xlu0 %v138
  %v140 = vpop.xlane.xlu0 %139
  %v141 = vrcp.pop 32.0
  %v142 = vmul.f32 32.0, %v141
  %v143 = vsub.f32 1.0, %v142
  %v144 = vmul.f32 %v141, %v143
  %v145 = vadd.f32 %v141, %v144
  %vm146 = vweird.f32 %v141
  %v147 = vsel %vm146, %v141, %v145
  %v148 = vmul.f32 %v137, %v147
  %v149 = vmul.f32 %v140, %v147
  %v150 = vsub.f32 %v133, %v148
  %v151 = vsub.f32 %v134, %v149
  %v152 = vmul.f32 %v150, %v150
  %v153 = vmul.f32 %v151, %v151
  %v154 = vsel %vm56, %v152, 0.0
  %155 = vadd.xlane.f32.xlu0 %v154
  %v156 = vpop.xlane.xlu0 %155
  %v157 = vsel %vm56, %v153, 0.0
  %158 = vadd.xlane.f32.xlu0 %v157
  %v159 = vpop.xlane.xlu0 %158
  %v160 = vmul.f32 %v156, %v147
  %v161 = vmul.f32 %v159, %v147
  %v162 = vadd.f32 %v160, 1e-05
  %v163 = vadd.f32 %v161, 1e-05
  %v164 = vrsqrt.pop %v162
  %v165 = vmul.f32 %v164, %v162
  %v166 = vmul.f32 %v165, %v164
  %v167 = vmul.f32 0.5, %v166
  %v168 = vsub.f32 1.5, %v167
  %v169 = vmul.f32 %v164, %v168
  %vm170 = vweird.f32 %v162
  %vm171 = vweird.f32 %v164
  %vm172 = vmor %vm170, %vm171
  %v173 = vsel %vm172, %v164, %v169
  %v174 = vrsqrt.pop %v163
  %v175 = vmul.f32 %v174, %v163
  %v176 = vmul.f32 %v175, %v174
  %v177 = vmul.f32 0.5, %v176
  %v178 = vsub.f32 1.5, %v177
  %v179 = vmul.f32 %v174, %v178
  %vm180 = vweird.f32 %v163
  %vm181 = vweird.f32 %v174
  %vm182 = vmor %vm180, %vm181
  %v183 = vsel %vm182, %v174, %v179
  %v184 = vmul.f32 %v150, %v173
  %v185 = vmul.f32 %v151, %v183
  %v186 = vld [vmem:[%s5] sm:$0x1]
  %v188 = vperm.slane %v186, 0
  %v190 = vmul.f32 %v184, %v188
  %v191 = vmul.f32 %v185, %v188
  %v192 = vld [vmem:[%s6] sm:$0x1]
  %v194 = vperm.slane %v192, 0
  %v196 = vadd.f32 %v190, %v194
  %v197 = vadd.f32 %v191, %v194
  %v198 = vpack.c.bf16 %v196, %v196
  %v199 = vpack.c.bf16 %v197, %v197
  %vm200 = vcmask 257024
  %201 = vst.msk [vmem:[%s7] sm:$0xf] %vm200, %v198
  %202 = vst.msk [vmem:[%s7 + $0x4] sm:$0xf] %vm200, %v199
  // Predicated region
  $region30: #{aiayn_forward.43} parent=0 // pred_check
    _
  $region31: #{aiayn_forward.43} parent=0 // pred_check_branch
    %204 = sbr.rel (0) target = $region33
  $region32: #{aiayn_forward.43} parent=0 // pred_region
    _
  $region33: #{aiayn_forward.43} parent=0 // pred_fallthru
    _
  // Predicated region
  $region34: #{aiayn_forward.43} parent=0 // pred_check
    _
  $region35: #{aiayn_forward.43} parent=0 // pred_check_branch
    %206 = sbr.rel (0) target = $region37
  $region36: #{aiayn_forward.43} parent=0 // pred_region
    _
  $region37: #{aiayn_forward.43} parent=0 // pred_fallthru
    _

// kernel: aiayn_forward.52
$region0: #{aiayn_forward.52}
  #allocation0 [shape = 'u32[]', space=smem, size = 0x4, offset = 0x4, fixed_abs, tag = 'smem constant byte address 0x4 - core index']
  #allocation1 [shape = 'u32[72,128]{1,0:T(1,128)}', space=vmem, size = 0x9000, scoped, tag = 'internal scratch']
  %s0 = inlined_call_operand.vmem [shape: bf16[16,32], index: 0, kind: input, shape index: {}]
  %s1 = inlined_call_operand.vmem [shape: f32[1,32], index: 1, kind: input, shape index: {}]
  %s2 = inlined_call_operand.vmem [shape: f32[1,32], index: 2, kind: input, shape index: {}]
  %s3 = inlined_call_operand.vmem [shape: bf16[16,32], index: 3, kind: output, shape index: {}]
  %s4 = sld [smem:[#allocation0]]
  $region22: #{aiayn_forward.52} parent=0
    _
  %s6 = ssub.s32 1, %s4
  %s7 = scalar_select 0, %s6, %s4
  // Predicated region
  $region2: #{aiayn_forward.52} parent=0 // pred_check
    _
  $region3: #{aiayn_forward.52} parent=0 // pred_check_branch
    %9 = sbr.rel (0) target = $region5
  $region4: #{aiayn_forward.52} parent=0 // pred_region
    _
  $region5: #{aiayn_forward.52} parent=0 // pred_fallthru
    _
  // Predicated region
  $region6: #{aiayn_forward.52} parent=0 // pred_check
    _
  $region7: #{aiayn_forward.52} parent=0 // pred_check_branch
    %11 = sbr.rel (0) target = $region9
  $region8: #{aiayn_forward.52} parent=0 // pred_region
    _
  $region9: #{aiayn_forward.52} parent=0 // pred_fallthru
    _
  // Predicated region
  $region10: #{aiayn_forward.52} parent=0 // pred_check
    _
  $region11: #{aiayn_forward.52} parent=0 // pred_check_branch
    %13 = sbr.rel (0) target = $region13
  $region12: #{aiayn_forward.52} parent=0 // pred_region
    _
  $region13: #{aiayn_forward.52} parent=0 // pred_fallthru
    _
  %v14 = vld [vmem:[%s0] sm:$0xf]
  %v15 = vld [vmem:[%s0 + $0x4] sm:$0xf]
  %v16 = vunpack.c.l.bf16 %v14
  %v17 = vunpack.c.l.bf16 %v15
  %vm18 = vcmask 261120
  %v19 = vsel %vm18, %v16, 0.0
  %20 = vadd.xlane.f32.xlu0 %v19
  %v21 = vpop.xlane.xlu0 %20
  %v22 = vsel %vm18, %v17, 0.0
  %23 = vadd.xlane.f32.xlu0 %v22
  %v24 = vpop.xlane.xlu0 %23
  %v25 = vrcp.pop 32.0
  %v26 = vmul.f32 32.0, %v25
  %v27 = vsub.f32 1.0, %v26
  %v28 = vmul.f32 %v25, %v27
  %v29 = vadd.f32 %v25, %v28
  %vm30 = vweird.f32 %v25
  %v31 = vsel %vm30, %v25, %v29
  %v32 = vmul.f32 %v21, %v31
  %v33 = vmul.f32 %v24, %v31
  %v34 = vsub.f32 %v16, %v32
  %v35 = vsub.f32 %v17, %v33
  %v36 = vmul.f32 %v34, %v34
  %v37 = vmul.f32 %v35, %v35
  %v38 = vsel %vm18, %v36, 0.0
  %39 = vadd.xlane.f32.xlu0 %v38
  %v40 = vpop.xlane.xlu0 %39
  %v41 = vsel %vm18, %v37, 0.0
  %42 = vadd.xlane.f32.xlu0 %v41
  %v43 = vpop.xlane.xlu0 %42
  %v44 = vmul.f32 %v40, %v31
  %v45 = vmul.f32 %v43, %v31
  %v46 = vadd.f32 %v44, 1e-05
  %v47 = vadd.f32 %v45, 1e-05
  %v48 = vrsqrt.pop %v46
  %v49 = vmul.f32 %v48, %v46
  %v50 = vmul.f32 %v49, %v48
  %v51 = vmul.f32 0.5, %v50
  %v52 = vsub.f32 1.5, %v51
  %v53 = vmul.f32 %v48, %v52
  %vm54 = vweird.f32 %v46
  %vm55 = vweird.f32 %v48
  %vm56 = vmor %vm54, %vm55
  %v57 = vsel %vm56, %v48, %v53
  %v58 = vrsqrt.pop %v47
  %v59 = vmul.f32 %v58, %v47
  %v60 = vmul.f32 %v59, %v58
  %v61 = vmul.f32 0.5, %v60
  %v62 = vsub.f32 1.5, %v61
  %v63 = vmul.f32 %v58, %v62
  %vm64 = vweird.f32 %v47
  %vm65 = vweird.f32 %v58
  %vm66 = vmor %vm64, %vm65
  %v67 = vsel %vm66, %v58, %v63
  %v68 = vmul.f32 %v34, %v57
  %v69 = vmul.f32 %v35, %v67
  %v70 = vld [vmem:[%s1] sm:$0x1]
  %v72 = vperm.slane %v70, 0
  %v74 = vmul.f32 %v68, %v72
  %v75 = vmul.f32 %v69, %v72
  %v76 = vld [vmem:[%s2] sm:$0x1]
  %v78 = vperm.slane %v76, 0
  %v80 = vadd.f32 %v74, %v78
  %v81 = vadd.f32 %v75, %v78
  %v82 = vpack.c.bf16 %v80, %v80
  %v83 = vpack.c.bf16 %v81, %v81
  %vm84 = vcmask 257024
  %85 = vst.msk [vmem:[%s3] sm:$0xf] %vm84, %v82
  %86 = vst.msk [vmem:[%s3 + $0x4] sm:$0xf] %vm84, %v83
  // Predicated region
  $region14: #{aiayn_forward.52} parent=0 // pred_check
    _
  $region15: #{aiayn_forward.52} parent=0 // pred_check_branch
    %88 = sbr.rel (0) target = $region17
  $region16: #{aiayn_forward.52} parent=0 // pred_region
    _
  $region17: #{aiayn_forward.52} parent=0 // pred_fallthru
    _
  // Predicated region
  $region18: #{aiayn_forward.52} parent=0 // pred_check
    _
  $region19: #{aiayn_forward.52} parent=0 // pred_check_branch
    %90 = sbr.rel (0) target = $region21
  $region20: #{aiayn_forward.52} parent=0 // pred_region
    _
  $region21: #{aiayn_forward.52} parent=0 // pred_fallthru
    _

// kernel: aiayn_forward.53
$region0: #{aiayn_forward.53}
  #allocation0 [shape = 'u32[]', space=smem, size = 0x4, offset = 0x4, fixed_abs, tag = 'smem constant byte address 0x4 - core index']
  #allocation1 [shape = 'u32[72,128]{1,0:T(1,128)}', space=vmem, size = 0x9000, scoped, tag = 'internal scratch']
  %s0 = inlined_call_operand.vmem [shape: bf16[16,32], index: 0, kind: input, shape index: {}]
  %s1 = inlined_call_operand.vmem [shape: bf16[32,32], index: 1, kind: input, shape index: {}]
  %s2 = inlined_call_operand.vmem [shape: f32[1,32], index: 2, kind: input, shape index: {}]
  %s3 = inlined_call_operand.vmem [shape: f32[16,32], index: 3, kind: output, shape index: {}]
  %s4 = sld [smem:[#allocation0]]
  $region22: #{aiayn_forward.53} parent=0
    _
  %s6 = ssub.s32 1, %s4
  %s7 = scalar_select 0, %s6, %s4
  // Predicated region
  $region2: #{aiayn_forward.53} parent=0 // pred_check
    _
  $region3: #{aiayn_forward.53} parent=0 // pred_check_branch
    %9 = sbr.rel (0) target = $region5
  $region4: #{aiayn_forward.53} parent=0 // pred_region
    _
  $region5: #{aiayn_forward.53} parent=0 // pred_fallthru
    _
  // Predicated region
  $region6: #{aiayn_forward.53} parent=0 // pred_check
    _
  $region7: #{aiayn_forward.53} parent=0 // pred_check_branch
    %11 = sbr.rel (0) target = $region9
  $region8: #{aiayn_forward.53} parent=0 // pred_region
    _
  $region9: #{aiayn_forward.53} parent=0 // pred_fallthru
    _
  // Predicated region
  $region10: #{aiayn_forward.53} parent=0 // pred_check
    _
  $region11: #{aiayn_forward.53} parent=0 // pred_check_branch
    %13 = sbr.rel (0) target = $region13
  $region12: #{aiayn_forward.53} parent=0 // pred_region
    _
  $region13: #{aiayn_forward.53} parent=0 // pred_fallthru
    _
  %v15 = vld [vmem:[%s0] sm:$0xf]
  %v16 = vld [vmem:[%s0 + $0x4] sm:$0xf]
  %v17 = vld [vmem:[%s1] sm:$0xf]
  %v18 = vld [vmem:[%s1 + $0x4] sm:$0xf]
  %v19 = vld [vmem:[%s1 + $0x8] sm:$0xf]
  %v20 = vld [vmem:[%s1 + $0xc] sm:$0xf]
  %v21 = vld [vmem:[%s2] sm:$0x1]
  %v23 = vperm.slane %v21, 0
  %v27 = vunpack.c.l.b16 %v15
  %v28 = vunpack.c.l.b16 %v16
  %v29 = vpack.c.b16 %v28, %v27
  %v34 = vunpack.c.l.b16 %v17
  %v35 = vunpack.c.l.b16 %v18
  %v36 = vunpack.c.l.b16 %v19
  %v37 = vunpack.c.l.b16 %v20
  %v38 = vpack.c.b16 %v35, %v34
  %v39 = vpack.c.b16 %v37, %v36
  %vm42 = vcmask 261120
  %v44 = vsel %vm42, %v29, 0
  %46 = vmatpush.bf16.msra.mxu0 0
  %47 = vmatpush.bf16.msra.mxu0 0
  %48 = vmatpush.bf16.msra.mxu0 0
  %49 = vmatpush.bf16.msra.mxu0 0
  %50 = vmatpush.bf16.msra.mxu0 0
  %51 = vmatpush.bf16.msra.mxu0 0
  %52 = vmatpush.bf16.msra.mxu0 %v39
  %53 = vmatpush.bf16.msra.mxu0 %v38
  %54 = vmatmul.bf16.gmra.mxu0 %v44
  %v55 = vpop.f32.mrf.mxu0
  %v56 = vadd.f32 %v23, %v55
  %v57 = vpop.f32.mrf.mxu0
  %v58 = vadd.f32 %v23, %v57
  %59 = vdwg.mxu0
  %v60 = vsel %vm42, %v56, -inf
  %61 = vmax.xlane.f32.xlu0 %v60
  %v62 = vpop.xlane.xlu0 %61
  %v63 = vsel %vm42, %v58, -inf
  %64 = vmax.xlane.f32.xlu0 %v63
  %v65 = vpop.xlane.xlu0 %64
  %v66 = vsub.f32 %v56, %v62
  %v67 = vsub.f32 %v58, %v65
  %v68 = vmul.f32 %v66, 1.442695
  %v69 = vpow.pop %v68
  %v70 = vmul.f32 %v67, 1.442695
  %v71 = vpow.pop %v70
  %v72 = vsel %vm42, %v69, 0.0
  %73 = vadd.xlane.f32.xlu0 %v72
  %v74 = vpop.xlane.xlu0 %73
  %v75 = vsel %vm42, %v71, 0.0
  %76 = vadd.xlane.f32.xlu0 %v75
  %v77 = vpop.xlane.xlu0 %76
  %v78 = vrcp.pop %v74
  %v79 = vmul.f32 %v74, %v78
  %v80 = vsub.f32 1.0, %v79
  %v81 = vmul.f32 %v78, %v80
  %v82 = vadd.f32 %v78, %v81
  %vm83 = vweird.f32 %v74
  %vm84 = vweird.f32 %v78
  %vm85 = vmor %vm83, %vm84
  %v86 = vsel %vm85, %v78, %v82
  %v87 = vand.u32 2147483647, %v74
  %vm88 = vcmp.eq.f32.partialorder %v87, 8.507059e+37
  %v89 = vand.u32 %v74, 2147483648
  %v90 = vor.u32 1.1754944e-38, %v89
  %v91 = vsel %vm88, %v90, %v86
  %v92 = vmul.f32 %v69, %v91
  %v93 = vrcp.pop %v77
  %v94 = vmul.f32 %v77, %v93
  %v95 = vsub.f32 1.0, %v94
  %v96 = vmul.f32 %v93, %v95
  %v97 = vadd.f32 %v93, %v96
  %vm98 = vweird.f32 %v77
  %vm99 = vweird.f32 %v93
  %vm100 = vmor %vm98, %vm99
  %v101 = vsel %vm100, %v93, %v97
  %v102 = vand.u32 2147483647, %v77
  %vm103 = vcmp.eq.f32.partialorder %v102, 8.507059e+37
  %v104 = vand.u32 %v77, 2147483648
  %v105 = vor.u32 1.1754944e-38, %v104
  %v106 = vsel %vm103, %v105, %v101
  %v107 = vmul.f32 %v71, %v106
  %108 = vst.msk [vmem:[%s3] sm:$0xff] %vm42, %v92
  %109 = vst.msk [vmem:[%s3 + $0x8] sm:$0xff] %vm42, %v107
  // Predicated region
  $region14: #{aiayn_forward.53} parent=0 // pred_check
    _
  $region15: #{aiayn_forward.53} parent=0 // pred_check_branch
    %111 = sbr.rel (0) target = $region17
  $region16: #{aiayn_forward.53} parent=0 // pred_region
    _
  $region17: #{aiayn_forward.53} parent=0 // pred_fallthru
    _
  // Predicated region
  $region18: #{aiayn_forward.53} parent=0 // pred_check
    _
  $region19: #{aiayn_forward.53} parent=0 // pred_check_branch
    %113 = sbr.rel (0) target = $region21
  $region20: #{aiayn_forward.53} parent=0 // pred_region
    _
  $region21: #{aiayn_forward.53} parent=0 // pred_fallthru
    _

</llo_original>
